<compile_context>
chip_gen: v7x
topology: tpu7x:2x2x1
jax: 0.10.0
libtpu: 0.0.40
codegen_flags: <defaults>
</compile_context>

<pallas_src>
import jax
import jax.numpy as jnp
from jax.experimental import pallas as pl
from jax.experimental.pallas import tpu as pltpu

B = 2
C, H, W = 3, 299, 299
K = C * H * W               # 268203
H1 = 128                    # fc1 out features
NCLS = 3                    # fc2 out features

NCORES = 2                  # leading 'parallel' grid axis (both TCs on v7x; sequential on v5e/v6e)
TK = 8192                   # K tile per grid step (W1 tile = 4 MB f32)
K_PAD = pl.cdiv(K, NCORES * TK) * (NCORES * TK)
STEPS_PER_CORE = K_PAD // (NCORES * TK)


def _fc1_partial_kernel(x_ref, w1_ref, p_ref, acc_ref):
    """Partial fc1 for one K-half: accumulate (B,TK)@(TK,H1) over the k axis."""
    k = pl.program_id(1)

    @pl.when(k == 0)
    def _():
        acc_ref[...] = jnp.zeros_like(acc_ref)

    acc_ref[...] += jnp.dot(x_ref[...], w1_ref[...],
                            preferred_element_type=jnp.float32)

    @pl.when(k == pl.num_programs(1) - 1)
    def _():
        p_ref[0] = acc_ref[...].astype(p_ref.dtype)


def _head_kernel(p_ref, b1_ref, w2_ref, b2_ref, o_ref):
    """Sum partials -> +b1 -> ReLU -> fc2 -> +b2 (tiny, single grid point)."""
    h = jnp.sum(p_ref[...], axis=0)                       # (B, H1)
    h = jnp.maximum(h + b1_ref[...], 0.0)
    out = jnp.dot(h, w2_ref[...], preferred_element_type=jnp.float32) + b2_ref[...]
    o_ref[...] = out.astype(o_ref.dtype)


def prepack_params(w1, b1, w2, b2):
    """One-time weight prep (NOT in the per-call path): transpose + zero-pad W1 along K."""
    w1t = jnp.pad(w1.T, ((0, K_PAD - K), (0, 0)))         # (K_PAD, H1)
    return w1t, b1.reshape(1, H1), w2.T, b2.reshape(1, NCLS)


@jax.jit
def cnn_model_forward(x, w1t, b1r, w2t, b2r):
    """x: (B, C, H, W) f32; weights prepacked by prepack_params."""
    xf = x.reshape(B, K)                                  # nn.Flatten (row-major, matches torch)
    xf = jnp.pad(xf, ((0, 0), (0, K_PAD - K)))            # zero pad K (contributes 0 to the sum)

    partials = pl.pallas_call(
        _fc1_partial_kernel,
        out_shape=jax.ShapeDtypeStruct((NCORES, B, H1), jnp.float32),
        grid_spec=pltpu.PrefetchScalarGridSpec(
            num_scalar_prefetch=0,
            grid=(NCORES, STEPS_PER_CORE),
            in_specs=[
                pl.BlockSpec((B, TK), lambda c, k: (0, c * STEPS_PER_CORE + k)),
                pl.BlockSpec((TK, H1), lambda c, k: (c * STEPS_PER_CORE + k, 0)),
            ],
            out_specs=pl.BlockSpec((1, B, H1), lambda c, k: (c, 0, 0)),
            scratch_shapes=[pltpu.VMEM((B, H1), jnp.float32)],
        ),
        compiler_params=pltpu.CompilerParams(
            dimension_semantics=("parallel", "arbitrary"),
            vmem_limit_bytes=32 * 1024 * 1024),
    )(xf, w1t)

    out = pl.pallas_call(
        _head_kernel,
        out_shape=jax.ShapeDtypeStruct((B, NCLS), jnp.float32),
        grid_spec=pltpu.PrefetchScalarGridSpec(
            num_scalar_prefetch=0,
            grid=(1,),
            in_specs=[
                pl.BlockSpec((NCORES, B, H1), lambda i: (0, 0, 0)),
                pl.BlockSpec((1, H1), lambda i: (0, 0)),
                pl.BlockSpec((H1, NCLS), lambda i: (0, 0)),
                pl.BlockSpec((1, NCLS), lambda i: (0, 0)),
            ],
            out_specs=pl.BlockSpec((B, NCLS), lambda i: (0, 0)),
        ),
    )(partials, b1r, w2t, b2r)
    return out


def _init_params(key):
    """Deterministic init matching nn.Linear default: U(-1/sqrt(fan_in), 1/sqrt(fan_in))."""
    k1, k2, k3, k4 = jax.random.split(key, 4)
    bound1 = 1.0 / jnp.sqrt(float(K))
    bound2 = 1.0 / jnp.sqrt(float(H1))
    w1 = jax.random.uniform(k1, (H1, K), jnp.float32, -bound1, bound1)
    b1 = jax.random.uniform(k2, (H1,), jnp.float32, -bound1, bound1)
    w2 = jax.random.uniform(k3, (NCLS, H1), jnp.float32, -bound2, bound2)
    b2 = jax.random.uniform(k4, (NCLS,), jnp.float32, -bound2, bound2)
    return w1, b1, w2, b2


if __name__ == "__main__":
    key = jax.random.PRNGKey(0)
    kx, kp = jax.random.split(key)
    x = jax.random.normal(kx, (B, C, H, W), jnp.float32)
    w1, b1, w2, b2 = _init_params(kp)

    # One-time weight prepack (kept out of the per-call path).
    packed = prepack_params(w1, b1, w2, b2)
    packed = jax.block_until_ready(packed)

    out = cnn_model_forward(x, *packed)
    out = jax.block_until_ready(out)

    # Pure-JAX reference check.
    xf = x.reshape(B, K)
    ref = jnp.maximum(xf @ w1.T + b1, 0.0) @ w2.T + b2
    assert out.shape == (B, NCLS)
    assert jnp.allclose(out, ref, atol=1e-3, rtol=1e-3), "mismatch vs reference"

    print("KERNEL_OK")
</pallas_src>

<mosaic_0001>
module attributes {stable_mosaic.version = 11 : i64} {
  func.func @_fc1_partial_kernel(%arg0: i32, %arg1: i32, %arg2: memref<2x8192xf32, #tpu.memory_space<vmem>>, %arg3: memref<8192x128xf32, #tpu.memory_space<vmem>>, %arg4: memref<1x2x128xf32, #tpu.memory_space<vmem>>, %arg5: memref<2x128xf32, #tpu.memory_space<vmem>>) attributes {dimension_semantics = [#tpu.dimension_semantics<parallel>, #tpu.dimension_semantics<arbitrary>], iteration_bounds = array<i64: 2, 17>, scalar_prefetch = 0 : i64, scratch_operands = 1 : i64, tpu.core_type = #tpu.core_type<tc>, window_params = [{transform_indices = @transform_0, window_bounds = array<i64: 2, 8192>}, {transform_indices = @transform_1, window_bounds = array<i64: 8192, 128>}, {transform_indices = @transform_2, window_bounds = array<i64: 1, 2, 128>}]} {
    %c0_i32 = arith.constant 0 : i32
    %0 = arith.cmpi eq, %arg1, %c0_i32 : i32
    %1 = arith.extui %0 : i1 to i32
    %c0_i32_0 = arith.constant 0 : i32
    %2 = arith.cmpi ne, %1, %c0_i32_0 : i32
    scf.if %2 {
      %cst_9 = arith.constant 0.000000e+00 : f32
      %12 = vector.broadcast %cst_9 : f32 to vector<2x128xf32>
      %c0_10 = arith.constant 0 : index
      %c0_11 = arith.constant 0 : index
      %13 = vector.load %arg5[%c0_10, %c0_11] : memref<2x128xf32, #tpu.memory_space<vmem>>, vector<2x128xf32>
      tpu.vector_store %arg5[%c0_10, %c0_11], %12 {strides = array<i32>} : memref<2x128xf32, #tpu.memory_space<vmem>>, vector<2x128xf32>,
    } else {
    }
    %c0 = arith.constant 0 : index
    %c0_1 = arith.constant 0 : index
    %3 = vector.load %arg5[%c0, %c0_1] : memref<2x128xf32, #tpu.memory_space<vmem>>, vector<2x128xf32>
    %c0_2 = arith.constant 0 : index
    %c0_3 = arith.constant 0 : index
    %4 = vector.load %arg2[%c0_2, %c0_3] : memref<2x8192xf32, #tpu.memory_space<vmem>>, vector<2x8192xf32>
    %c0_4 = arith.constant 0 : index
    %c0_5 = arith.constant 0 : index
    %5 = vector.load %arg3[%c0_4, %c0_5] : memref<8192x128xf32, #tpu.memory_space<vmem>>, vector<8192x128xf32>
    %cst = arith.constant dense<0.000000e+00> : vector<2x128xf32>
    %6 = tpu.matmul %4, %5, %cst {dimension_numbers = #tpu.dot_dimension_numbers<[1], [0], [0], [1], [0, 0, 1, 1], [], []>} : vector<2x8192xf32>, vector<8192x128xf32>, vector<2x128xf32> -> vector<2x128xf32>
    %7 = arith.addf %3, %6 : vector<2x128xf32>
    %c0_6 = arith.constant 0 : index
    %c0_7 = arith.constant 0 : index
    %8 = vector.load %arg5[%c0_6, %c0_7] : memref<2x128xf32, #tpu.memory_space<vmem>>, vector<2x128xf32>
    tpu.vector_store %arg5[%c0_6, %c0_7], %7 {strides = array<i32>} : memref<2x128xf32, #tpu.memory_space<vmem>>, vector<2x128xf32>,
    %c16_i32 = arith.constant 16 : i32
    %9 = arith.cmpi eq, %arg1, %c16_i32 : i32
    %10 = arith.extui %9 : i1 to i32
    %c0_i32_8 = arith.constant 0 : i32
    %11 = arith.cmpi ne, %10, %c0_i32_8 : i32
    scf.if %11 {
      %c0_9 = arith.constant 0 : index
      %c0_10 = arith.constant 0 : index
      %12 = vector.load %arg5[%c0_9, %c0_10] : memref<2x128xf32, #tpu.memory_space<vmem>>, vector<2x128xf32>
      %c0_11 = arith.constant 0 : index
      %c0_12 = arith.constant 0 : index
      %c0_13 = arith.constant 0 : index
      %13 = vector.load %arg4[%c0_11, %c0_12, %c0_13] : memref<1x2x128xf32, #tpu.memory_space<vmem>>, vector<1x2x128xf32>
      %14 = vector.shape_cast %13 : vector<1x2x128xf32> to vector<2x128xf32>
      %15 = vector.shape_cast %12 : vector<2x128xf32> to vector<1x2x128xf32>
      tpu.vector_store %arg4[%c0_11, %c0_12, %c0_13], %15 {strides = array<i32>} : memref<1x2x128xf32, #tpu.memory_space<vmem>>, vector<1x2x128xf32>,
    } else {
    }
    return
  }
  func.func @transform_0(%arg0: i32, %arg1: i32) -> (i32, i32) {
    %c17_i32 = arith.constant 17 : i32
    %0 = arith.muli %arg0, %c17_i32 : i32
    %1 = arith.addi %0, %arg1 : i32
    %c0_i32 = arith.constant 0 : i32
    %c0_i32_0 = arith.constant 0 : i32
    return %c0_i32, %1 : i32, i32
  }
  func.func @transform_1(%arg0: i32, %arg1: i32) -> (i32, i32) {
    %c17_i32 = arith.constant 17 : i32
    %0 = arith.muli %arg0, %c17_i32 : i32
    %1 = arith.addi %0, %arg1 : i32
    %c0_i32 = arith.constant 0 : i32
    %c0_i32_0 = arith.constant 0 : i32
    return %1, %c0_i32 : i32, i32
  }
  func.func @transform_2(%arg0: i32, %arg1: i32) -> (i32, i32, i32) {
    %c0_i32 = arith.constant 0 : i32
    %c0_i32_0 = arith.constant 0 : i32
    %c0_i32_1 = arith.constant 0 : i32
    return %arg0, %c0_i32, %c0_i32_0 : i32, i32, i32
  }
}

module attributes {stable_mosaic.version = 11 : i64} {
  func.func @_head_kernel(%arg0: i32, %arg1: memref<2x2x128xf32, #tpu.memory_space<vmem>>, %arg2: memref<1x128xf32, #tpu.memory_space<vmem>>, %arg3: memref<128x3xf32, #tpu.memory_space<vmem>>, %arg4: memref<1x3xf32, #tpu.memory_space<vmem>>, %arg5: memref<2x3xf32, #tpu.memory_space<vmem>>) attributes {dimension_semantics = [#tpu.dimension_semantics<arbitrary>], iteration_bounds = array<i64: 1>, scalar_prefetch = 0 : i64, scratch_operands = 0 : i64, tpu.core_type = #tpu.core_type<tc>, window_params = [{pipeline_mode = #tpu.pipeline_mode<synchronous>, transform_indices = @transform_0, window_bounds = array<i64: 2, 2, 128>}, {pipeline_mode = #tpu.pipeline_mode<synchronous>, transform_indices = @transform_1, window_bounds = array<i64: 1, 128>}, {pipeline_mode = #tpu.pipeline_mode<synchronous>, transform_indices = @transform_2, window_bounds = array<i64: 128, 3>}, {pipeline_mode = #tpu.pipeline_mode<synchronous>, transform_indices = @transform_3, window_bounds = array<i64: 1, 3>}, {pipeline_mode = #tpu.pipeline_mode<synchronous>, transform_indices = @transform_4, window_bounds = array<i64: 2, 3>}]} {
    %c0 = arith.constant 0 : index
    %c0_0 = arith.constant 0 : index
    %c0_1 = arith.constant 0 : index
    %0 = vector.load %arg1[%c0, %c0_0, %c0_1] : memref<2x2x128xf32, #tpu.memory_space<vmem>>, vector<2x2x128xf32>
    %cst = arith.constant dense<0.000000e+00> : vector<2x128xf32>
    %1 = vector.multi_reduction <add>, %0, %cst [0] : vector<2x2x128xf32> to vector<2x128xf32>
    %c0_2 = arith.constant 0 : index
    %c0_3 = arith.constant 0 : index
    %2 = vector.load %arg2[%c0_2, %c0_3] : memref<1x128xf32, #tpu.memory_space<vmem>>, vector<1x128xf32>
    %3 = vector.broadcast %2 : vector<1x128xf32> to vector<2x128xf32>
    %4 = arith.addf %1, %3 : vector<2x128xf32>
    %cst_4 = arith.constant 0.000000e+00 : f32
    %5 = vector.broadcast %cst_4 : f32 to vector<2x128xf32>
    %6 = arith.maximumf %4, %5 : vector<2x128xf32>
    %c0_5 = arith.constant 0 : index
    %c0_6 = arith.constant 0 : index
    %7 = vector.load %arg3[%c0_5, %c0_6] : memref<128x3xf32, #tpu.memory_space<vmem>>, vector<128x3xf32>
    %cst_7 = arith.constant dense<0.000000e+00> : vector<2x3xf32>
    %8 = tpu.matmul %6, %7, %cst_7 {dimension_numbers = #tpu.dot_dimension_numbers<[1], [0], [0], [1], [0, 0, 1, 1], [], []>} : vector<2x128xf32>, vector<128x3xf32>, vector<2x3xf32> -> vector<2x3xf32>
    %c0_8 = arith.constant 0 : index
    %c0_9 = arith.constant 0 : index
    %9 = vector.load %arg4[%c0_8, %c0_9] : memref<1x3xf32, #tpu.memory_space<vmem>>, vector<1x3xf32>
    %10 = vector.broadcast %9 : vector<1x3xf32> to vector<2x3xf32>
    %11 = arith.addf %8, %10 : vector<2x3xf32>
    %c0_10 = arith.constant 0 : index
    %c0_11 = arith.constant 0 : index
    %12 = vector.load %arg5[%c0_10, %c0_11] : memref<2x3xf32, #tpu.memory_space<vmem>>, vector<2x3xf32>
    tpu.vector_store %arg5[%c0_10, %c0_11], %11 {strides = array<i32>} : memref<2x3xf32, #tpu.memory_space<vmem>>, vector<2x3xf32>,
    return
  }
  func.func @transform_0(%arg0: i32) -> (i32, i32, i32) {
    %c0_i32 = arith.constant 0 : i32
    %c0_i32_0 = arith.constant 0 : i32
    %c0_i32_1 = arith.constant 0 : i32
    %c0_i32_2 = arith.constant 0 : i32
    return %c0_i32, %c0_i32_0, %c0_i32_1 : i32, i32, i32
  }
  func.func @transform_1(%arg0: i32) -> (i32, i32) {
    %c0_i32 = arith.constant 0 : i32
    %c0_i32_0 = arith.constant 0 : i32
    %c0_i32_1 = arith.constant 0 : i32
    return %c0_i32, %c0_i32_0 : i32, i32
  }
  func.func @transform_2(%arg0: i32) -> (i32, i32) {
    %c0_i32 = arith.constant 0 : i32
    %c0_i32_0 = arith.constant 0 : i32
    %c0_i32_1 = arith.constant 0 : i32
    return %c0_i32, %c0_i32_0 : i32, i32
  }
  func.func @transform_3(%arg0: i32) -> (i32, i32) {
    %c0_i32 = arith.constant 0 : i32
    %c0_i32_0 = arith.constant 0 : i32
    %c0_i32_1 = arith.constant 0 : i32
    return %c0_i32, %c0_i32_0 : i32, i32
  }
  func.func @transform_4(%arg0: i32) -> (i32, i32) {
    %c0_i32 = arith.constant 0 : i32
    %c0_i32_0 = arith.constant 0 : i32
    %c0_i32_1 = arith.constant 0 : i32
    return %c0_i32, %c0_i32_0 : i32, i32
  }
}

</mosaic_0001>

<llo_original>
// kernel: cnn_model_forward.3
$region0: #{cnn_model_forward.3}
  #allocation0 [shape = 'u32[]', space=smem, size = 0x4, offset = 0x4, fixed_abs, tag = 'smem constant byte address 0x4 - core index']
  #allocation1 [shape = 'u32[144,128]{1,0:T(1,128)}', space=vmem, size = 0x12000, scoped, tag = 'internal scratch']
  %s0 = inlined_call_operand.vmem [shape: f32[2,2,128], index: 0, kind: input, shape index: {}]
  %s1 = inlined_call_operand.vmem [shape: f32[1,128], index: 1, kind: input, shape index: {}]
  %s2 = inlined_call_operand.vmem [shape: f32[128,3], index: 2, kind: input, shape index: {}]
  %s3 = inlined_call_operand.vmem [shape: f32[1,3], index: 3, kind: input, shape index: {}]
  %s4 = inlined_call_operand.hbm [shape: f32[2,3], index: 4, kind: output, shape index: {}]
  %s5 = sld [smem:[#allocation0]]
  $region26: #{cnn_model_forward.3} parent=0
    _
  %s7 = ssub.s32 1, %s5
  %s8 = scalar_select 0, %s7, %s5
  $region1: #{cnn_model_forward.3} parent=0
    #allocation2 [shape = 'u8[1024]{0}', space=vmem, size = 0x400, scoped, tag = 'output window, operand 0, single buffered']
    #allocation3 [shape = 's32[1]{0}', space=sflag, size = 0x4, scoped, tag = 'scoped memory for cnn_model_forward.3']
    %9 = vsyncpa [#allocation3], 0
    // Predicated region
    $region2: #{cnn_model_forward.3} parent=1 // pred_check
      _
    $region3: #{cnn_model_forward.3} parent=1 // pred_check_branch
      %11 = sbr.rel (0) target = $region5
    $region4: #{cnn_model_forward.3} parent=1 // pred_region
      _
    $region5: #{cnn_model_forward.3} parent=1 // pred_fallthru
      _
    // Predicated region
    $region6: #{cnn_model_forward.3} parent=1 // pred_check
      _
    $region7: #{cnn_model_forward.3} parent=1 // pred_check_branch
      %13 = sbr.rel (0) target = $region9
    $region8: #{cnn_model_forward.3} parent=1 // pred_region
      _
    $region9: #{cnn_model_forward.3} parent=1 // pred_fallthru
      _
    // Predicated region
    $region10: #{cnn_model_forward.3} parent=1 // pred_check
      _
    $region11: #{cnn_model_forward.3} parent=1 // pred_check_branch
      %15 = sbr.rel (0) target = $region13
    $region12: #{cnn_model_forward.3} parent=1 // pred_region
      _
    $region13: #{cnn_model_forward.3} parent=1 // pred_fallthru
      _
    // Predicated region
    $region14: #{cnn_model_forward.3} parent=1 // pred_check
      _
    $region15: #{cnn_model_forward.3} parent=1 // pred_check_branch
      %17 = sbr.rel (0) target = $region17
    $region16: #{cnn_model_forward.3} parent=1 // pred_region
      _
    $region17: #{cnn_model_forward.3} parent=1 // pred_fallthru
      _
    %v18 = vld [vmem:[%s0] sm:$0x3]
    %v19 = vld [vmem:[%s0 + $0x2] sm:$0x3]
    %vm20 = vcmask 1041408
    %v21 = vsel %vm20, %v18, 0.0
    %v22 = vsel %vm20, %v19, 0.0
    %v23 = vadd.f32 %v21, %v22
    %v24 = vld [vmem:[%s1] sm:$0x1]
    %v26 = vlaneseq
    %v27 = vshrl.u32 %v26, 7
    %v28 = vsub.s32 0, %v27
    %v29 = vrot.slane %v24, %v28
    %v31 = vadd.f32 %v23, %v29
    %v32 = vmax.f32 %v31, 0.0
    %v33 = vld [vmem:[%s2] sm:$0xff]
    %v34 = vld [vmem:[%s2 + $0x8] sm:$0xff]
    %v35 = vld [vmem:[%s2 + $0x10] sm:$0xff]
    %v36 = vld [vmem:[%s2 + $0x18] sm:$0xff]
    %v37 = vld [vmem:[%s2 + $0x20] sm:$0xff]
    %v38 = vld [vmem:[%s2 + $0x28] sm:$0xff]
    %v39 = vld [vmem:[%s2 + $0x30] sm:$0xff]
    %v40 = vld [vmem:[%s2 + $0x38] sm:$0xff]
    %v41 = vld [vmem:[%s2 + $0x40] sm:$0xff]
    %v42 = vld [vmem:[%s2 + $0x48] sm:$0xff]
    %v43 = vld [vmem:[%s2 + $0x50] sm:$0xff]
    %v44 = vld [vmem:[%s2 + $0x58] sm:$0xff]
    %v45 = vld [vmem:[%s2 + $0x60] sm:$0xff]
    %v46 = vld [vmem:[%s2 + $0x68] sm:$0xff]
    %v47 = vld [vmem:[%s2 + $0x70] sm:$0xff]
    %v48 = vld [vmem:[%s2 + $0x78] sm:$0xff]
    %v49 = vld [vmem:[%s3] sm:$0x1]
    %v51 = vlaneseq
    %v52 = vshrl.u32 %v51, 7
    %v53 = vsub.s32 0, %v52
    %v54 = vrot.slane %v49, %v53
    %56 = vmatprep.subr.mxu0 0.0
    %57 = vmatpush1.msra.mxu0 %v33
    %58 = vmatprep.subr.mxu0 0.0
    %59 = vmatpush1.msra.mxu0 %v34
    %60 = vmatprep.subr.mxu0 0.0
    %61 = vmatpush1.msra.mxu0 %v35
    %62 = vmatprep.subr.mxu0 0.0
    %63 = vmatpush1.msra.mxu0 %v36
    %64 = vmatprep.subr.mxu0 0.0
    %65 = vmatpush1.msra.mxu0 %v37
    %66 = vmatprep.subr.mxu0 0.0
    %67 = vmatpush1.msra.mxu0 %v38
    %68 = vmatprep.subr.mxu0 0.0
    %69 = vmatpush1.msra.mxu0 %v39
    %70 = vmatprep.subr.mxu0 0.0
    %71 = vmatpush1.msra.mxu0 %v40
    %72 = vmatprep.subr.mxu0 0.0
    %73 = vmatpush1.msra.mxu0 %v41
    %74 = vmatprep.subr.mxu0 0.0
    %75 = vmatpush1.msra.mxu0 %v42
    %76 = vmatprep.subr.mxu0 0.0
    %77 = vmatpush1.msra.mxu0 %v43
    %78 = vmatprep.subr.mxu0 0.0
    %79 = vmatpush1.msra.mxu0 %v44
    %80 = vmatprep.subr.mxu0 0.0
    %81 = vmatpush1.msra.mxu0 %v45
    %82 = vmatprep.subr.mxu0 0.0
    %83 = vmatpush1.msra.mxu0 %v46
    %84 = vmatprep.subr.mxu0 0.0
    %85 = vmatpush1.msra.mxu0 %v47
    %86 = vmatprep.subr.mxu0 0.0
    %87 = vmatpush1.msra.mxu0 %v48
    %88 = vmatprep.subr.mxu0 0.0
    %89 = vmatpush1.msra.mxu0 0.0
    %90 = vmatprep.subr.mxu0 0.0
    %91 = vmatpush1.msra.mxu0 0.0
    %92 = vmatprep.subr.mxu0 0.0
    %93 = vmatpush1.msra.mxu0 0.0
    %94 = vmatprep.subr.mxu0 0.0
    %95 = vmatpush1.msra.mxu0 0.0
    %96 = vmatprep.subr.mxu0 0.0
    %97 = vmatpush1.msra.mxu0 0.0
    %98 = vmatprep.subr.mxu0 0.0
    %99 = vmatpush1.msra.mxu0 0.0
    %100 = vmatprep.subr.mxu0 0.0
    %101 = vmatpush1.msra.mxu0 0.0
    %102 = vmatprep.subr.mxu0 0.0
    %103 = vmatpush1.msra.mxu0 0.0
    %104 = vmatprep.subr.mxu0 0.0
    %105 = vmatpush1.msra.mxu0 0.0
    %106 = vmatprep.subr.mxu0 0.0
    %107 = vmatpush1.msra.mxu0 0.0
    %108 = vmatprep.subr.mxu0 0.0
    %109 = vmatpush1.msra.mxu0 0.0
    %110 = vmatprep.subr.mxu0 0.0
    %111 = vmatpush1.msra.mxu0 0.0
    %112 = vmatprep.subr.mxu0 0.0
    %113 = vmatpush1.msra.mxu0 0.0
    %114 = vmatprep.subr.mxu0 0.0
    %115 = vmatpush1.msra.mxu0 0.0
    %116 = vmatprep.subr.mxu0 0.0
    %117 = vmatpush1.msra.mxu0 0.0
    %118 = vmatprep.subr.mxu0 0.0
    %119 = vmatpush1.msra.mxu0 0.0
    %120 = vmatprep.mubr.f32.mxu0 0.0
    %121 = vmatmul.mubr.f32.gmra.mrb[0].mxu0 %v32
    %v122 = vpop.f32.mrb[0].mxu0
    %v123 = vadd.f32 %v54, %v122
    %v124 = vpop.f32.mrb[0].mxu0
    %125 = vdwg.mxu0
    %vm126 = vcmask 17408
    %127 = vst.msk [vmem:[#allocation2] sm:$0x3] %vm126, %v123
    // Predicated region
    $region18: #{cnn_model_forward.3} parent=1 // pred_check
      _
    $region19: #{cnn_model_forward.3} parent=1 // pred_check_branch
      %129 = sbr.rel (0) target = $region21
    $region20: #{cnn_model_forward.3} parent=1 // pred_region
      %s131 = ssub.s32 32, 32
      %132 = vsyncadd [#allocation3], %s131
      %s134 = sshll.u32 [#allocation2], 4
      %s135 = int_to_ptr.vmem [resolvable:$true] %s134
      %137 = dma.vmem_to_hbm [thread:$0]  %s135, 32, %s4, [#allocation3]
    $region21: #{cnn_model_forward.3} parent=1 // pred_fallthru
      _
    // Predicated region
    $region22: #{cnn_model_forward.3} parent=1 // pred_check
      _
    $region23: #{cnn_model_forward.3} parent=1 // pred_check_branch
      %139 = sbr.rel (0) target = $region25
    $region24: #{cnn_model_forward.3} parent=1 // pred_region
      %140 = dma.done [#allocation3], 32
    $region25: #{cnn_model_forward.3} parent=1 // pred_fallthru
      _
    %141 = vsyncpa [#allocation3], 1

// kernel: cnn_model_forward.2
$region0: #{cnn_model_forward.2}
  #allocation0 [shape = 'u32[]', space=smem, size = 0x4, offset = 0x4, fixed_abs, tag = 'smem constant byte address 0x4 - core index']
  #allocation1 [shape = 'u32[144,128]{1,0:T(1,128)}', space=vmem, size = 0x12000, scoped, tag = 'internal scratch']
  #allocation2 [shape = 'f32[2,128]{1,0:T(2,128)}', space=vmem, size = 0x400, scoped, tag = 'scratch operand']
  %s0 = inlined_call_operand.vmem [shape: f32[2,278528], index: 0, kind: input, shape index: {}]
  %s1 = inlined_call_operand.hbm [shape: f32[278528,128], index: 1, kind: input, shape index: {}]
  %s2 = inlined_call_operand.vmem [shape: f32[2,2,128], index: 2, kind: output, shape index: {}]
  %s3 = sld [smem:[#allocation0]]
  $region53: #{cnn_model_forward.2} parent=0
    _
  %s5 = ssub.s32 1, %s3
  %s6 = scalar_select 0, %s5, %s3
  $region1: #{cnn_model_forward.2} parent=0
    #allocation3 [shape = 'u8[8388608]{0}', space=vmem, size = 0x800000, scoped, tag = 'input window, operand 1']
    #allocation4 [shape = 's32[2]{0}', space=sflag, size = 0x8, scoped, tag = 'scoped memory for cnn_model_forward.2']
    %7 = vsyncpa [#allocation4], 0
    %s8 = scalar_lea.sflag [#allocation4], 1
    %9 = vsyncpa %s8, 0
    loop: start=0, step=1, limit=36
    $region2: #{cnn_model_forward.2} parent=1 // loop_pre_header
      _
    $region3: #{cnn_model_forward.2} parent=1 // loop_header
      %s11 = sphi 0, %s15
      %p12 = scmp.ge.s32.totalorder %s11, 36
      %s18 = sphi 0, %s30
      %s19 = sphi 0, %s26
      %s20 = sphi 0, %s18
      %s21 = sphi 0, %s19
      %s22 = sphi 0, %s20
      %s23 = sphi 0, %s21
      %s37 = sphi 0, %s39
      %s40 = sphi 0, %s37
      %s41 = sphi 0, %s40
      %s57 = sphi 0, %s41
      %s67 = sphi 0, %s69
      %s70 = sphi 0, %s67
      %s71 = sphi 0, %s70
      %s87 = sphi 0, %s71
      %s93 = sphi 0, %s95
      %s96 = sphi 0, %s93
      %s97 = sphi 0, %s96
      %s113 = sphi 0, %s97
    $region4: #{cnn_model_forward.2} parent=1 // loop_header_branch
      %14 = sbr.rel (%p12) target = $region8
    $region5: #{cnn_model_forward.2} parent=1 // loop_body
      %s16 = ssub.s32 %s11, 1
      %s17 = ssub.s32 %s11, 2
      %s24 = sadd.s32 1, %s19
      %p25 = scmp.ge.s32.totalorder %s24, 17
      %s26 = scalar_select %p25, 0, %s24
      %s27 = sadd.s32 1, %s18
      %s28 = scalar_select %p25, %s27, %s18
      %p29 = scmp.ge.s32.totalorder %s28, 2
      %s30 = scalar_select %p29, 0, %s28
      %s31 = smul.u32 %s18, 17
      %s32 = sadd.s32 %s31, %s19
      %s33 = smul.u32 %s30, 17
      %s34 = sadd.s32 %s33, %s26
      %s35 = ssub.s32 %s32, %s34
      %p36 = scmp.eq.s32.totalorder %s35, 0
      %s38 = sadd.s32 %s37, 1
      %s39 = scalar_select %p36, %s37, %s38
      %p42 = pneg %p36
      %p43 = scmp.eq.s32.totalorder %s11, 33
      %p44 = por %p42, %p43
      %p45 = scmp.ne.s32.totalorder %s37, %s40
      %p46 = scmp.eq.s32.totalorder %s11, 0
      %p47 = por %p45, %p46
      %p48 = scmp.ne.s32.totalorder %s37, %s40
      %p49 = scmp.eq.s32.totalorder %s16, 33
      %p50 = por %p48, %p49
      %p51 = scmp.ne.s32.totalorder %s40, %s41
      %p52 = scmp.eq.s32.totalorder %s16, 0
      %p53 = por %p51, %p52
      %p54 = scmp.ne.s32.totalorder %s40, %s41
      %p55 = scmp.eq.s32.totalorder %s17, 33
      %p56 = por %p54, %p55
      %p58 = scmp.ne.s32.totalorder %s41, %s57
      %p59 = scmp.eq.s32.totalorder %s17, 0
      %p60 = por %p58, %p59
      %s61 = smul.u32 %s18, 17
      %s62 = sadd.s32 %s61, %s19
      %s63 = smul.u32 %s30, 17
      %s64 = sadd.s32 %s63, %s26
      %s65 = ssub.s32 %s62, %s64
      %p66 = scmp.eq.s32.totalorder %s65, 0
      %s68 = sadd.s32 %s67, 1
      %s69 = scalar_select %p66, %s67, %s68
      %p72 = pneg %p66
      %p73 = scmp.eq.s32.totalorder %s11, 33
      %p74 = por %p72, %p73
      %p75 = scmp.ne.s32.totalorder %s67, %s70
      %p76 = scmp.eq.s32.totalorder %s11, 0
      %p77 = por %p75, %p76
      %p78 = scmp.ne.s32.totalorder %s67, %s70
      %p79 = scmp.eq.s32.totalorder %s16, 33
      %p80 = por %p78, %p79
      %p81 = scmp.ne.s32.totalorder %s70, %s71
      %p82 = scmp.eq.s32.totalorder %s16, 0
      %p83 = por %p81, %p82
      %p84 = scmp.ne.s32.totalorder %s70, %s71
      %p85 = scmp.eq.s32.totalorder %s17, 33
      %p86 = por %p84, %p85
      %p88 = scmp.ne.s32.totalorder %s71, %s87
      %p89 = scmp.eq.s32.totalorder %s17, 0
      %p90 = por %p88, %p89
      %s91 = ssub.s32 %s18, %s30
      %p92 = scmp.eq.s32.totalorder %s91, 0
      %s94 = sadd.s32 %s93, 1
      %s95 = scalar_select %p92, %s93, %s94
      %p98 = pneg %p92
      %p99 = scmp.eq.s32.totalorder %s11, 33
      %p100 = por %p98, %p99
      %p101 = scmp.ne.s32.totalorder %s93, %s96
      %p102 = scmp.eq.s32.totalorder %s11, 0
      %p103 = por %p101, %p102
      %p104 = scmp.ne.s32.totalorder %s93, %s96
      %p105 = scmp.eq.s32.totalorder %s16, 33
      %p106 = por %p104, %p105
      %p107 = scmp.ne.s32.totalorder %s96, %s97
      %p108 = scmp.eq.s32.totalorder %s16, 0
      %p109 = por %p107, %p108
      %p110 = scmp.ne.s32.totalorder %s96, %s97
      %p111 = scmp.eq.s32.totalorder %s17, 33
      %p112 = por %p110, %p111
      %p114 = scmp.ne.s32.totalorder %s97, %s113
      %p115 = scmp.eq.s32.totalorder %s17, 0
      %p116 = por %p114, %p115
      %p117 = scmp.le.s32.totalorder 1, %s11
      %p118 = scmp.lt.s32.totalorder %s11, 35
      %p119 = pnand %p117, %p118
      %p120 = pneg %p119
      // Predicated region
      $region9: #{cnn_model_forward.2} parent=5 // pred_check
        _
      $region10: #{cnn_model_forward.2} parent=5 // pred_check_branch
        %122 = sbr.rel (%p119) target = $region12
      $region11: #{cnn_model_forward.2} parent=5 // pred_region
        %s123 = ssub.s32 %s11, 1
      $region12: #{cnn_model_forward.2} parent=5 // pred_fallthru
        _
      %p124 = scmp.lt.s32.totalorder %s11, 34
      // Predicated region
      $region13: #{cnn_model_forward.2} parent=5 // pred_check
        %p125 = pneg %p124
      $region14: #{cnn_model_forward.2} parent=5 // pred_check_branch
        %127 = sbr.rel (%p125) target = $region16
      $region15: #{cnn_model_forward.2} parent=5 // pred_region
        // Predicated region
        $region17: #{cnn_model_forward.2} parent=15 // pred_check
          %p128 = pneg %p47
        $region18: #{cnn_model_forward.2} parent=15 // pred_check_branch
          %130 = sbr.rel (%p128) target = $region20
        $region19: #{cnn_model_forward.2} parent=15 // pred_region
          %s131 = smul.u32 %s18, 17
          %s132 = sadd.s32 %s131, %s19
          %s133 = smul.u32 64, %s132
          %p134 = scmp.lt.s32.totalorder %s133, 2175
          %s135 = scalar_select %p134, %s133, 2175
          %s136 = smul.addr %s135, 2
          %s137 = scalar_lea.vmem %s0, %s136
          %s138 = smul.u32 %s18, 17
          %s139 = sadd.s32 %s138, %s19
          %s140 = smul.u32 64, %s139
        $region20: #{cnn_model_forward.2} parent=15 // pred_fallthru
          _
        // Predicated region
        $region21: #{cnn_model_forward.2} parent=15 // pred_check
          %p141 = pneg %p77
        $region22: #{cnn_model_forward.2} parent=15 // pred_check_branch
          %143 = sbr.rel (%p141) target = $region24
        $region23: #{cnn_model_forward.2} parent=15 // pred_region
          %s144 = sand.u32 %s67, 1
          %s145 = scalar_lea.sflag [#allocation4], %s144
          %s146 = sand.u32 %s67, 1
          %s147 = smul.addr %s146, 8192
          %s148 = scalar_lea.vmem [#allocation3], %s147
          %s149 = smul.u32 %s18, 17
          %s150 = sadd.s32 %s149, %s19
          %s151 = smul.u32 1024, %s150
          %s153 = ssub.s32 131072, 131072
          %154 = vsyncadd %s145, %s153
          %s155 = smul.addr %s151, 128
          %s156 = scalar_lea.hbm %s1, %s155
          %s157 = sshll.u32 %s148, 4
          %s158 = int_to_ptr.vmem [resolvable:$true] %s157
          %163 = dma.hbm_to_vmem [thread:$0]  %s156, 131072, %s158, %s145, 128, 128, 8
        $region24: #{cnn_model_forward.2} parent=15 // pred_fallthru
          _
      $region16: #{cnn_model_forward.2} parent=5 // pred_fallthru
        _
      %p164 = scmp.le.s32.totalorder 1, %s11
      %p165 = scmp.lt.s32.totalorder %s11, 35
      %p166 = pnand %p164, %p165
      %p167 = pneg %p166
      // Predicated region
      $region25: #{cnn_model_forward.2} parent=5 // pred_check
        _
      $region26: #{cnn_model_forward.2} parent=5 // pred_check_branch
        %169 = sbr.rel (%p166) target = $region28
      $region27: #{cnn_model_forward.2} parent=5 // pred_region
        %s170 = ssub.s32 %s11, 1
        %s171 = sand.u32 %s70, 1
        %s172 = scalar_lea.sflag [#allocation4], %s171
        %s173 = sand.u32 %s70, 1
        %s174 = smul.addr %s173, 8192
        %s175 = scalar_lea.vmem [#allocation3], %s174
        // Predicated region
        $region29: #{cnn_model_forward.2} parent=27 // pred_check
          %p176 = pneg %p83
        $region30: #{cnn_model_forward.2} parent=27 // pred_check_branch
          %178 = sbr.rel (%p176) target = $region32
        $region31: #{cnn_model_forward.2} parent=27 // pred_region
          %179 = dma.done %s172, 131072
        $region32: #{cnn_model_forward.2} parent=27 // pred_fallthru
          _
        %s180 = smul.u32 %s20, 17
        %s181 = sadd.s32 %s180, %s21
        %s182 = smul.u32 64, %s181
        %p183 = scmp.lt.s32.totalorder %s182, 2175
        %s184 = scalar_select %p183, %s182, 2175
        %s185 = smul.addr %s184, 2
        %s186 = scalar_lea.vmem %s0, %s185
        %p187 = pneg %p53
        %p188 = pneg %p50
        %s189 = sand.u32 %s70, 1
        %s190 = scalar_lea.sflag [#allocation4], %s189
        %s191 = sand.u32 %s70, 1
        %s192 = smul.addr %s191, 8192
        %s193 = scalar_lea.vmem [#allocation3], %s192
        %p194 = pneg %p83
        %p195 = pneg %p80
        %p196 = pneg %p109
        %p197 = pneg %p106
        %p198 = scmp.lt.s32.totalorder %s20, 1
        %s199 = scalar_select %p198, %s20, 1
        %s200 = smul.addr %s199, 2
        %s201 = scalar_lea.vmem %s2, %s200
        %s202 = smul.u32 %s20, 17
        %s203 = sadd.s32 %s202, %s21
        %s204 = smul.u32 64, %s203
        %p205 = scmp.lt.s32.totalorder %s204, 2175
        %s206 = scalar_select %p205, %s204, 2175
        %s207 = smul.addr %s206, 2
        %s208 = scalar_lea.vmem %s0, %s207
        %s209 = smul.u32 %s20, 17
        %s210 = sadd.s32 %s209, %s21
        %s211 = smul.u32 64, %s210
        %s212 = smul.u32 %s20, 17
        %s213 = sadd.s32 %s212, %s21
        %s214 = smul.u32 1024, %s213
        %p215 = scmp.lt.s32.totalorder %s20, 1
        %s216 = scalar_select %p215, %s20, 1
        %s217 = smul.addr %s216, 2
        %s218 = scalar_lea.vmem %s2, %s217
        %p219 = scmp.eq.s32.totalorder %s21, 0
        // Predicated region
        $region33: #{cnn_model_forward.2} parent=27 // pred_check
          %p220 = pneg %p219
        $region34: #{cnn_model_forward.2} parent=27 // pred_check_branch
          %222 = sbr.rel (%p220) target = $region36
        $region35: #{cnn_model_forward.2} parent=27 // pred_region
          %223 = vst [vmem:[#allocation2] sm:$0x3] 0.0
        $region36: #{cnn_model_forward.2} parent=27 // pred_fallthru
          _
        %v224 = vld [vmem:[#allocation2] sm:$0x3]
        %v225 = vld [vmem:[%s208] sm:$0xff]
        %v226 = vld [vmem:[%s208 + $0x8] sm:$0xff]
        %v227 = vld [vmem:[%s208 + $0x10] sm:$0xff]
        %v228 = vld [vmem:[%s208 + $0x18] sm:$0xff]
        %v229 = vld [vmem:[%s208 + $0x20] sm:$0xff]
        %v230 = vld [vmem:[%s208 + $0x28] sm:$0xff]
        %v231 = vld [vmem:[%s208 + $0x30] sm:$0xff]
        %v232 = vld [vmem:[%s208 + $0x38] sm:$0xff]
        %v233 = vld [vmem:[%s208 + $0x40] sm:$0xff]
        %v234 = vld [vmem:[%s208 + $0x48] sm:$0xff]
        %v235 = vld [vmem:[%s208 + $0x50] sm:$0xff]
        %v236 = vld [vmem:[%s208 + $0x58] sm:$0xff]
        %v237 = vld [vmem:[%s208 + $0x60] sm:$0xff]
        %v238 = vld [vmem:[%s208 + $0x68] sm:$0xff]
        %v239 = vld [vmem:[%s208 + $0x70] sm:$0xff]
        %v240 = vld [vmem:[%s208 + $0x78] sm:$0xff]
        %v241 = vld [vmem:[%s175] sm:$0xff]
        %v242 = vld [vmem:[%s175 + $0x8] sm:$0xff]
        %v243 = vld [vmem:[%s175 + $0x10] sm:$0xff]
        %v244 = vld [vmem:[%s175 + $0x18] sm:$0xff]
        %v245 = vld [vmem:[%s175 + $0x20] sm:$0xff]
        %v246 = vld [vmem:[%s175 + $0x28] sm:$0xff]
        %v247 = vld [vmem:[%s175 + $0x30] sm:$0xff]
        %v248 = vld [vmem:[%s175 + $0x38] sm:$0xff]
        %v249 = vld [vmem:[%s175 + $0x40] sm:$0xff]
        %v250 = vld [vmem:[%s175 + $0x48] sm:$0xff]
        %v251 = vld [vmem:[%s175 + $0x50] sm:$0xff]
        %v252 = vld [vmem:[%s175 + $0x58] sm:$0xff]
        %v253 = vld [vmem:[%s175 + $0x60] sm:$0xff]
        %v254 = vld [vmem:[%s175 + $0x68] sm:$0xff]
        %v255 = vld [vmem:[%s175 + $0x70] sm:$0xff]
        %v256 = vld [vmem:[%s175 + $0x78] sm:$0xff]
        %v257 = vld [vmem:[%s175 + $0x80] sm:$0xff]
        %v258 = vld [vmem:[%s175 + $0x88] sm:$0xff]
        %v259 = vld [vmem:[%s175 + $0x90] sm:$0xff]
        %v260 = vld [vmem:[%s175 + $0x98] sm:$0xff]
        %v261 = vld [vmem:[%s175 + $0xa0] sm:$0xff]
        %v262 = vld [vmem:[%s175 + $0xa8] sm:$0xff]
        %v263 = vld [vmem:[%s175 + $0xb0] sm:$0xff]
        %v264 = vld [vmem:[%s175 + $0xb8] sm:$0xff]
        %v265 = vld [vmem:[%s175 + $0xc0] sm:$0xff]
        %v266 = vld [vmem:[%s175 + $0xc8] sm:$0xff]
        %v267 = vld [vmem:[%s175 + $0xd0] sm:$0xff]
        %v268 = vld [vmem:[%s175 + $0xd8] sm:$0xff]
        %v269 = vld [vmem:[%s175 + $0xe0] sm:$0xff]
        %v270 = vld [vmem:[%s175 + $0xe8] sm:$0xff]
        %v271 = vld [vmem:[%s175 + $0xf0] sm:$0xff]
        %v272 = vld [vmem:[%s175 + $0xf8] sm:$0xff]
        %v273 = vld [vmem:[%s175 + $0x100] sm:$0xff]
        %v274 = vld [vmem:[%s175 + $0x108] sm:$0xff]
        %v275 = vld [vmem:[%s175 + $0x110] sm:$0xff]
        %v276 = vld [vmem:[%s175 + $0x118] sm:$0xff]
        %v277 = vld [vmem:[%s175 + $0x120] sm:$0xff]
        %v278 = vld [vmem:[%s175 + $0x128] sm:$0xff]
        %v279 = vld [vmem:[%s175 + $0x130] sm:$0xff]
        %v280 = vld [vmem:[%s175 + $0x138] sm:$0xff]
        %v281 = vld [vmem:[%s175 + $0x140] sm:$0xff]
        %v282 = vld [vmem:[%s175 + $0x148] sm:$0xff]
        %v283 = vld [vmem:[%s175 + $0x150] sm:$0xff]
        %v284 = vld [vmem:[%s175 + $0x158] sm:$0xff]
        %v285 = vld [vmem:[%s175 + $0x160] sm:$0xff]
        %v286 = vld [vmem:[%s175 + $0x168] sm:$0xff]
        %v287 = vld [vmem:[%s175 + $0x170] sm:$0xff]
        %v288 = vld [vmem:[%s175 + $0x178] sm:$0xff]
        %v289 = vld [vmem:[%s175 + $0x180] sm:$0xff]
        %v290 = vld [vmem:[%s175 + $0x188] sm:$0xff]
        %v291 = vld [vmem:[%s175 + $0x190] sm:$0xff]
        %v292 = vld [vmem:[%s175 + $0x198] sm:$0xff]
        %v293 = vld [vmem:[%s175 + $0x1a0] sm:$0xff]
        %v294 = vld [vmem:[%s175 + $0x1a8] sm:$0xff]
        %v295 = vld [vmem:[%s175 + $0x1b0] sm:$0xff]
        %v296 = vld [vmem:[%s175 + $0x1b8] sm:$0xff]
        %v297 = vld [vmem:[%s175 + $0x1c0] sm:$0xff]
        %v298 = vld [vmem:[%s175 + $0x1c8] sm:$0xff]
        %v299 = vld [vmem:[%s175 + $0x1d0] sm:$0xff]
        %v300 = vld [vmem:[%s175 + $0x1d8] sm:$0xff]
        %v301 = vld [vmem:[%s175 + $0x1e0] sm:$0xff]
        %v302 = vld [vmem:[%s175 + $0x1e8] sm:$0xff]
        %v303 = vld [vmem:[%s175 + $0x1f0] sm:$0xff]
        %v304 = vld [vmem:[%s175 + $0x1f8] sm:$0xff]
        %v305 = vld [vmem:[%s175 + $0x200] sm:$0xff]
        %v306 = vld [vmem:[%s175 + $0x208] sm:$0xff]
        %v307 = vld [vmem:[%s175 + $0x210] sm:$0xff]
        %v308 = vld [vmem:[%s175 + $0x218] sm:$0xff]
        %v309 = vld [vmem:[%s175 + $0x220] sm:$0xff]
        %v310 = vld [vmem:[%s175 + $0x228] sm:$0xff]
        %v311 = vld [vmem:[%s175 + $0x230] sm:$0xff]
        %v312 = vld [vmem:[%s175 + $0x238] sm:$0xff]
        %v313 = vld [vmem:[%s175 + $0x240] sm:$0xff]
        %v314 = vld [vmem:[%s175 + $0x248] sm:$0xff]
        %v315 = vld [vmem:[%s175 + $0x250] sm:$0xff]
        %v316 = vld [vmem:[%s175 + $0x258] sm:$0xff]
        %v317 = vld [vmem:[%s175 + $0x260] sm:$0xff]
        %v318 = vld [vmem:[%s175 + $0x268] sm:$0xff]
        %v319 = vld [vmem:[%s175 + $0x270] sm:$0xff]
        %v320 = vld [vmem:[%s175 + $0x278] sm:$0xff]
        %v321 = vld [vmem:[%s175 + $0x280] sm:$0xff]
        %v322 = vld [vmem:[%s175 + $0x288] sm:$0xff]
        %v323 = vld [vmem:[%s175 + $0x290] sm:$0xff]
        %v324 = vld [vmem:[%s175 + $0x298] sm:$0xff]
        %v325 = vld [vmem:[%s175 + $0x2a0] sm:$0xff]
        %v326 = vld [vmem:[%s175 + $0x2a8] sm:$0xff]
        %v327 = vld [vmem:[%s175 + $0x2b0] sm:$0xff]
        %v328 = vld [vmem:[%s175 + $0x2b8] sm:$0xff]
        %v329 = vld [vmem:[%s175 + $0x2c0] sm:$0xff]
        %v330 = vld [vmem:[%s175 + $0x2c8] sm:$0xff]
        %v331 = vld [vmem:[%s175 + $0x2d0] sm:$0xff]
        %v332 = vld [vmem:[%s175 + $0x2d8] sm:$0xff]
        %v333 = vld [vmem:[%s175 + $0x2e0] sm:$0xff]
        %v334 = vld [vmem:[%s175 + $0x2e8] sm:$0xff]
        %v335 = vld [vmem:[%s175 + $0x2f0] sm:$0xff]
        %v336 = vld [vmem:[%s175 + $0x2f8] sm:$0xff]
        %v337 = vld [vmem:[%s175 + $0x300] sm:$0xff]
        %v338 = vld [vmem:[%s175 + $0x308] sm:$0xff]
        %v339 = vld [vmem:[%s175 + $0x310] sm:$0xff]
        %v340 = vld [vmem:[%s175 + $0x318] sm:$0xff]
        %v341 = vld [vmem:[%s175 + $0x320] sm:$0xff]
        %v342 = vld [vmem:[%s175 + $0x328] sm:$0xff]
        %v343 = vld [vmem:[%s175 + $0x330] sm:$0xff]
        %v344 = vld [vmem:[%s175 + $0x338] sm:$0xff]
        %v345 = vld [vmem:[%s175 + $0x340] sm:$0xff]
        %v346 = vld [vmem:[%s175 + $0x348] sm:$0xff]
        %v347 = vld [vmem:[%s175 + $0x350] sm:$0xff]
        %v348 = vld [vmem:[%s175 + $0x358] sm:$0xff]
        %v349 = vld [vmem:[%s175 + $0x360] sm:$0xff]
        %v350 = vld [vmem:[%s175 + $0x368] sm:$0xff]
        %v351 = vld [vmem:[%s175 + $0x370] sm:$0xff]
        %v352 = vld [vmem:[%s175 + $0x378] sm:$0xff]
        %v353 = vld [vmem:[%s175 + $0x380] sm:$0xff]
        %v354 = vld [vmem:[%s175 + $0x388] sm:$0xff]
        %v355 = vld [vmem:[%s175 + $0x390] sm:$0xff]
        %v356 = vld [vmem:[%s175 + $0x398] sm:$0xff]
        %v357 = vld [vmem:[%s175 + $0x3a0] sm:$0xff]
        %v358 = vld [vmem:[%s175 + $0x3a8] sm:$0xff]
        %v359 = vld [vmem:[%s175 + $0x3b0] sm:$0xff]
        %v360 = vld [vmem:[%s175 + $0x3b8] sm:$0xff]
        %v361 = vld [vmem:[%s175 + $0x3c0] sm:$0xff]
        %v362 = vld [vmem:[%s175 + $0x3c8] sm:$0xff]
        %v363 = vld [vmem:[%s175 + $0x3d0] sm:$0xff]
        %v364 = vld [vmem:[%s175 + $0x3d8] sm:$0xff]
        %v365 = vld [vmem:[%s175 + $0x3e0] sm:$0xff]
        %v366 = vld [vmem:[%s175 + $0x3e8] sm:$0xff]
        %v367 = vld [vmem:[%s175 + $0x3f0] sm:$0xff]
        %v368 = vld [vmem:[%s175 + $0x3f8] sm:$0xff]
        %v369 = vld [vmem:[%s175 + $0x400] sm:$0xff]
        %v370 = vld [vmem:[%s175 + $0x408] sm:$0xff]
        %v371 = vld [vmem:[%s175 + $0x410] sm:$0xff]
        %v372 = vld [vmem:[%s175 + $0x418] sm:$0xff]
        %v373 = vld [vmem:[%s175 + $0x420] sm:$0xff]
        %v374 = vld [vmem:[%s175 + $0x428] sm:$0xff]
        %v375 = vld [vmem:[%s175 + $0x430] sm:$0xff]
        %v376 = vld [vmem:[%s175 + $0x438] sm:$0xff]
        %v377 = vld [vmem:[%s175 + $0x440] sm:$0xff]
        %v378 = vld [vmem:[%s175 + $0x448] sm:$0xff]
        %v379 = vld [vmem:[%s175 + $0x450] sm:$0xff]
        %v380 = vld [vmem:[%s175 + $0x458] sm:$0xff]
        %v381 = vld [vmem:[%s175 + $0x460] sm:$0xff]
        %v382 = vld [vmem:[%s175 + $0x468] sm:$0xff]
        %v383 = vld [vmem:[%s175 + $0x470] sm:$0xff]
        %v384 = vld [vmem:[%s175 + $0x478] sm:$0xff]
        %v385 = vld [vmem:[%s175 + $0x480] sm:$0xff]
        %v386 = vld [vmem:[%s175 + $0x488] sm:$0xff]
        %v387 = vld [vmem:[%s175 + $0x490] sm:$0xff]
        %v388 = vld [vmem:[%s175 + $0x498] sm:$0xff]
        %v389 = vld [vmem:[%s175 + $0x4a0] sm:$0xff]
        %v390 = vld [vmem:[%s175 + $0x4a8] sm:$0xff]
        %v391 = vld [vmem:[%s175 + $0x4b0] sm:$0xff]
        %v392 = vld [vmem:[%s175 + $0x4b8] sm:$0xff]
        %v393 = vld [vmem:[%s175 + $0x4c0] sm:$0xff]
        %v394 = vld [vmem:[%s175 + $0x4c8] sm:$0xff]
        %v395 = vld [vmem:[%s175 + $0x4d0] sm:$0xff]
        %v396 = vld [vmem:[%s175 + $0x4d8] sm:$0xff]
        %v397 = vld [vmem:[%s175 + $0x4e0] sm:$0xff]
        %v398 = vld [vmem:[%s175 + $0x4e8] sm:$0xff]
        %v399 = vld [vmem:[%s175 + $0x4f0] sm:$0xff]
        %v400 = vld [vmem:[%s175 + $0x4f8] sm:$0xff]
        %v401 = vld [vmem:[%s175 + $0x500] sm:$0xff]
        %v402 = vld [vmem:[%s175 + $0x508] sm:$0xff]
        %v403 = vld [vmem:[%s175 + $0x510] sm:$0xff]
        %v404 = vld [vmem:[%s175 + $0x518] sm:$0xff]
        %v405 = vld [vmem:[%s175 + $0x520] sm:$0xff]
        %v406 = vld [vmem:[%s175 + $0x528] sm:$0xff]
        %v407 = vld [vmem:[%s175 + $0x530] sm:$0xff]
        %v408 = vld [vmem:[%s175 + $0x538] sm:$0xff]
        %v409 = vld [vmem:[%s175 + $0x540] sm:$0xff]
        %v410 = vld [vmem:[%s175 + $0x548] sm:$0xff]
        %v411 = vld [vmem:[%s175 + $0x550] sm:$0xff]
        %v412 = vld [vmem:[%s175 + $0x558] sm:$0xff]
        %v413 = vld [vmem:[%s175 + $0x560] sm:$0xff]
        %v414 = vld [vmem:[%s175 + $0x568] sm:$0xff]
        %v415 = vld [vmem:[%s175 + $0x570] sm:$0xff]
        %v416 = vld [vmem:[%s175 + $0x578] sm:$0xff]
        %v417 = vld [vmem:[%s175 + $0x580] sm:$0xff]
        %v418 = vld [vmem:[%s175 + $0x588] sm:$0xff]
        %v419 = vld [vmem:[%s175 + $0x590] sm:$0xff]
        %v420 = vld [vmem:[%s175 + $0x598] sm:$0xff]
        %v421 = vld [vmem:[%s175 + $0x5a0] sm:$0xff]
        %v422 = vld [vmem:[%s175 + $0x5a8] sm:$0xff]
        %v423 = vld [vmem:[%s175 + $0x5b0] sm:$0xff]
        %v424 = vld [vmem:[%s175 + $0x5b8] sm:$0xff]
        %v425 = vld [vmem:[%s175 + $0x5c0] sm:$0xff]
        %v426 = vld [vmem:[%s175 + $0x5c8] sm:$0xff]
        %v427 = vld [vmem:[%s175 + $0x5d0] sm:$0xff]
        %v428 = vld [vmem:[%s175 + $0x5d8] sm:$0xff]
        %v429 = vld [vmem:[%s175 + $0x5e0] sm:$0xff]
        %v430 = vld [vmem:[%s175 + $0x5e8] sm:$0xff]
        %v431 = vld [vmem:[%s175 + $0x5f0] sm:$0xff]
        %v432 = vld [vmem:[%s175 + $0x5f8] sm:$0xff]
        %v433 = vld [vmem:[%s175 + $0x600] sm:$0xff]
        %v434 = vld [vmem:[%s175 + $0x608] sm:$0xff]
        %v435 = vld [vmem:[%s175 + $0x610] sm:$0xff]
        %v436 = vld [vmem:[%s175 + $0x618] sm:$0xff]
        %v437 = vld [vmem:[%s175 + $0x620] sm:$0xff]
        %v438 = vld [vmem:[%s175 + $0x628] sm:$0xff]
        %v439 = vld [vmem:[%s175 + $0x630] sm:$0xff]
        %v440 = vld [vmem:[%s175 + $0x638] sm:$0xff]
        %v441 = vld [vmem:[%s175 + $0x640] sm:$0xff]
        %v442 = vld [vmem:[%s175 + $0x648] sm:$0xff]
        %v443 = vld [vmem:[%s175 + $0x650] sm:$0xff]
        %v444 = vld [vmem:[%s175 + $0x658] sm:$0xff]
        %v445 = vld [vmem:[%s175 + $0x660] sm:$0xff]
        %v446 = vld [vmem:[%s175 + $0x668] sm:$0xff]
        %v447 = vld [vmem:[%s175 + $0x670] sm:$0xff]
        %v448 = vld [vmem:[%s175 + $0x678] sm:$0xff]
        %v449 = vld [vmem:[%s175 + $0x680] sm:$0xff]
        %v450 = vld [vmem:[%s175 + $0x688] sm:$0xff]
        %v451 = vld [vmem:[%s175 + $0x690] sm:$0xff]
        %v452 = vld [vmem:[%s175 + $0x698] sm:$0xff]
        %v453 = vld [vmem:[%s175 + $0x6a0] sm:$0xff]
        %v454 = vld [vmem:[%s175 + $0x6a8] sm:$0xff]
        %v455 = vld [vmem:[%s175 + $0x6b0] sm:$0xff]
        %v456 = vld [vmem:[%s175 + $0x6b8] sm:$0xff]
        %v457 = vld [vmem:[%s175 + $0x6c0] sm:$0xff]
        %v458 = vld [vmem:[%s175 + $0x6c8] sm:$0xff]
        %v459 = vld [vmem:[%s175 + $0x6d0] sm:$0xff]
        %v460 = vld [vmem:[%s175 + $0x6d8] sm:$0xff]
        %v461 = vld [vmem:[%s175 + $0x6e0] sm:$0xff]
        %v462 = vld [vmem:[%s175 + $0x6e8] sm:$0xff]
        %v463 = vld [vmem:[%s175 + $0x6f0] sm:$0xff]
        %v464 = vld [vmem:[%s175 + $0x6f8] sm:$0xff]
        %v465 = vld [vmem:[%s175 + $0x700] sm:$0xff]
        %v466 = vld [vmem:[%s175 + $0x708] sm:$0xff]
        %v467 = vld [vmem:[%s175 + $0x710] sm:$0xff]
        %v468 = vld [vmem:[%s175 + $0x718] sm:$0xff]
        %v469 = vld [vmem:[%s175 + $0x720] sm:$0xff]
        %v470 = vld [vmem:[%s175 + $0x728] sm:$0xff]
        %v471 = vld [vmem:[%s175 + $0x730] sm:$0xff]
        %v472 = vld [vmem:[%s175 + $0x738] sm:$0xff]
        %v473 = vld [vmem:[%s175 + $0x740] sm:$0xff]
        %v474 = vld [vmem:[%s175 + $0x748] sm:$0xff]
        %v475 = vld [vmem:[%s175 + $0x750] sm:$0xff]
        %v476 = vld [vmem:[%s175 + $0x758] sm:$0xff]
        %v477 = vld [vmem:[%s175 + $0x760] sm:$0xff]
        %v478 = vld [vmem:[%s175 + $0x768] sm:$0xff]
        %v479 = vld [vmem:[%s175 + $0x770] sm:$0xff]
        %v480 = vld [vmem:[%s175 + $0x778] sm:$0xff]
        %v481 = vld [vmem:[%s175 + $0x780] sm:$0xff]
        %v482 = vld [vmem:[%s175 + $0x788] sm:$0xff]
        %v483 = vld [vmem:[%s175 + $0x790] sm:$0xff]
        %v484 = vld [vmem:[%s175 + $0x798] sm:$0xff]
        %v485 = vld [vmem:[%s175 + $0x7a0] sm:$0xff]
        %v486 = vld [vmem:[%s175 + $0x7a8] sm:$0xff]
        %v487 = vld [vmem:[%s175 + $0x7b0] sm:$0xff]
        %v488 = vld [vmem:[%s175 + $0x7b8] sm:$0xff]
        %v489 = vld [vmem:[%s175 + $0x7c0] sm:$0xff]
        %v490 = vld [vmem:[%s175 + $0x7c8] sm:$0xff]
        %v491 = vld [vmem:[%s175 + $0x7d0] sm:$0xff]
        %v492 = vld [vmem:[%s175 + $0x7d8] sm:$0xff]
        %v493 = vld [vmem:[%s175 + $0x7e0] sm:$0xff]
        %v494 = vld [vmem:[%s175 + $0x7e8] sm:$0xff]
        %v495 = vld [vmem:[%s175 + $0x7f0] sm:$0xff]
        %v496 = vld [vmem:[%s175 + $0x7f8] sm:$0xff]
        %v497 = vld [vmem:[%s175 + $0x800] sm:$0xff]
        %v498 = vld [vmem:[%s175 + $0x808] sm:$0xff]
        %v499 = vld [vmem:[%s175 + $0x810] sm:$0xff]
        %v500 = vld [vmem:[%s175 + $0x818] sm:$0xff]
        %v501 = vld [vmem:[%s175 + $0x820] sm:$0xff]
        %v502 = vld [vmem:[%s175 + $0x828] sm:$0xff]
        %v503 = vld [vmem:[%s175 + $0x830] sm:$0xff]
        %v504 = vld [vmem:[%s175 + $0x838] sm:$0xff]
        %v505 = vld [vmem:[%s175 + $0x840] sm:$0xff]
        %v506 = vld [vmem:[%s175 + $0x848] sm:$0xff]
        %v507 = vld [vmem:[%s175 + $0x850] sm:$0xff]
        %v508 = vld [vmem:[%s175 + $0x858] sm:$0xff]
        %v509 = vld [vmem:[%s175 + $0x860] sm:$0xff]
        %v510 = vld [vmem:[%s175 + $0x868] sm:$0xff]
        %v511 = vld [vmem:[%s175 + $0x870] sm:$0xff]
        %v512 = vld [vmem:[%s175 + $0x878] sm:$0xff]
        %v513 = vld [vmem:[%s175 + $0x880] sm:$0xff]
        %v514 = vld [vmem:[%s175 + $0x888] sm:$0xff]
        %v515 = vld [vmem:[%s175 + $0x890] sm:$0xff]
        %v516 = vld [vmem:[%s175 + $0x898] sm:$0xff]
        %v517 = vld [vmem:[%s175 + $0x8a0] sm:$0xff]
        %v518 = vld [vmem:[%s175 + $0x8a8] sm:$0xff]
        %v519 = vld [vmem:[%s175 + $0x8b0] sm:$0xff]
        %v520 = vld [vmem:[%s175 + $0x8b8] sm:$0xff]
        %v521 = vld [vmem:[%s175 + $0x8c0] sm:$0xff]
        %v522 = vld [vmem:[%s175 + $0x8c8] sm:$0xff]
        %v523 = vld [vmem:[%s175 + $0x8d0] sm:$0xff]
        %v524 = vld [vmem:[%s175 + $0x8d8] sm:$0xff]
        %v525 = vld [vmem:[%s175 + $0x8e0] sm:$0xff]
        %v526 = vld [vmem:[%s175 + $0x8e8] sm:$0xff]
        %v527 = vld [vmem:[%s175 + $0x8f0] sm:$0xff]
        %v528 = vld [vmem:[%s175 + $0x8f8] sm:$0xff]
        %v529 = vld [vmem:[%s175 + $0x900] sm:$0xff]
        %v530 = vld [vmem:[%s175 + $0x908] sm:$0xff]
        %v531 = vld [vmem:[%s175 + $0x910] sm:$0xff]
        %v532 = vld [vmem:[%s175 + $0x918] sm:$0xff]
        %v533 = vld [vmem:[%s175 + $0x920] sm:$0xff]
        %v534 = vld [vmem:[%s175 + $0x928] sm:$0xff]
        %v535 = vld [vmem:[%s175 + $0x930] sm:$0xff]
        %v536 = vld [vmem:[%s175 + $0x938] sm:$0xff]
        %v537 = vld [vmem:[%s175 + $0x940] sm:$0xff]
        %v538 = vld [vmem:[%s175 + $0x948] sm:$0xff]
        %v539 = vld [vmem:[%s175 + $0x950] sm:$0xff]
        %v540 = vld [vmem:[%s175 + $0x958] sm:$0xff]
        %v541 = vld [vmem:[%s175 + $0x960] sm:$0xff]
        %v542 = vld [vmem:[%s175 + $0x968] sm:$0xff]
        %v543 = vld [vmem:[%s175 + $0x970] sm:$0xff]
        %v544 = vld [vmem:[%s175 + $0x978] sm:$0xff]
        %v545 = vld [vmem:[%s175 + $0x980] sm:$0xff]
        %v546 = vld [vmem:[%s175 + $0x988] sm:$0xff]
        %v547 = vld [vmem:[%s175 + $0x990] sm:$0xff]
        %v548 = vld [vmem:[%s175 + $0x998] sm:$0xff]
        %v549 = vld [vmem:[%s175 + $0x9a0] sm:$0xff]
        %v550 = vld [vmem:[%s175 + $0x9a8] sm:$0xff]
        %v551 = vld [vmem:[%s175 + $0x9b0] sm:$0xff]
        %v552 = vld [vmem:[%s175 + $0x9b8] sm:$0xff]
        %v553 = vld [vmem:[%s175 + $0x9c0] sm:$0xff]
        %v554 = vld [vmem:[%s175 + $0x9c8] sm:$0xff]
        %v555 = vld [vmem:[%s175 + $0x9d0] sm:$0xff]
        %v556 = vld [vmem:[%s175 + $0x9d8] sm:$0xff]
        %v557 = vld [vmem:[%s175 + $0x9e0] sm:$0xff]
        %v558 = vld [vmem:[%s175 + $0x9e8] sm:$0xff]
        %v559 = vld [vmem:[%s175 + $0x9f0] sm:$0xff]
        %v560 = vld [vmem:[%s175 + $0x9f8] sm:$0xff]
        %v561 = vld [vmem:[%s175 + $0xa00] sm:$0xff]
        %v562 = vld [vmem:[%s175 + $0xa08] sm:$0xff]
        %v563 = vld [vmem:[%s175 + $0xa10] sm:$0xff]
        %v564 = vld [vmem:[%s175 + $0xa18] sm:$0xff]
        %v565 = vld [vmem:[%s175 + $0xa20] sm:$0xff]
        %v566 = vld [vmem:[%s175 + $0xa28] sm:$0xff]
        %v567 = vld [vmem:[%s175 + $0xa30] sm:$0xff]
        %v568 = vld [vmem:[%s175 + $0xa38] sm:$0xff]
        %v569 = vld [vmem:[%s175 + $0xa40] sm:$0xff]
        %v570 = vld [vmem:[%s175 + $0xa48] sm:$0xff]
        %v571 = vld [vmem:[%s175 + $0xa50] sm:$0xff]
        %v572 = vld [vmem:[%s175 + $0xa58] sm:$0xff]
        %v573 = vld [vmem:[%s175 + $0xa60] sm:$0xff]
        %v574 = vld [vmem:[%s175 + $0xa68] sm:$0xff]
        %v575 = vld [vmem:[%s175 + $0xa70] sm:$0xff]
        %v576 = vld [vmem:[%s175 + $0xa78] sm:$0xff]
        %v577 = vld [vmem:[%s175 + $0xa80] sm:$0xff]
        %v578 = vld [vmem:[%s175 + $0xa88] sm:$0xff]
        %v579 = vld [vmem:[%s175 + $0xa90] sm:$0xff]
        %v580 = vld [vmem:[%s175 + $0xa98] sm:$0xff]
        %v581 = vld [vmem:[%s175 + $0xaa0] sm:$0xff]
        %v582 = vld [vmem:[%s175 + $0xaa8] sm:$0xff]
        %v583 = vld [vmem:[%s175 + $0xab0] sm:$0xff]
        %v584 = vld [vmem:[%s175 + $0xab8] sm:$0xff]
        %v585 = vld [vmem:[%s175 + $0xac0] sm:$0xff]
        %v586 = vld [vmem:[%s175 + $0xac8] sm:$0xff]
        %v587 = vld [vmem:[%s175 + $0xad0] sm:$0xff]
        %v588 = vld [vmem:[%s175 + $0xad8] sm:$0xff]
        %v589 = vld [vmem:[%s175 + $0xae0] sm:$0xff]
        %v590 = vld [vmem:[%s175 + $0xae8] sm:$0xff]
        %v591 = vld [vmem:[%s175 + $0xaf0] sm:$0xff]
        %v592 = vld [vmem:[%s175 + $0xaf8] sm:$0xff]
        %v593 = vld [vmem:[%s175 + $0xb00] sm:$0xff]
        %v594 = vld [vmem:[%s175 + $0xb08] sm:$0xff]
        %v595 = vld [vmem:[%s175 + $0xb10] sm:$0xff]
        %v596 = vld [vmem:[%s175 + $0xb18] sm:$0xff]
        %v597 = vld [vmem:[%s175 + $0xb20] sm:$0xff]
        %v598 = vld [vmem:[%s175 + $0xb28] sm:$0xff]
        %v599 = vld [vmem:[%s175 + $0xb30] sm:$0xff]
        %v600 = vld [vmem:[%s175 + $0xb38] sm:$0xff]
        %v601 = vld [vmem:[%s175 + $0xb40] sm:$0xff]
        %v602 = vld [vmem:[%s175 + $0xb48] sm:$0xff]
        %v603 = vld [vmem:[%s175 + $0xb50] sm:$0xff]
        %v604 = vld [vmem:[%s175 + $0xb58] sm:$0xff]
        %v605 = vld [vmem:[%s175 + $0xb60] sm:$0xff]
        %v606 = vld [vmem:[%s175 + $0xb68] sm:$0xff]
        %v607 = vld [vmem:[%s175 + $0xb70] sm:$0xff]
        %v608 = vld [vmem:[%s175 + $0xb78] sm:$0xff]
        %v609 = vld [vmem:[%s175 + $0xb80] sm:$0xff]
        %v610 = vld [vmem:[%s175 + $0xb88] sm:$0xff]
        %v611 = vld [vmem:[%s175 + $0xb90] sm:$0xff]
        %v612 = vld [vmem:[%s175 + $0xb98] sm:$0xff]
        %v613 = vld [vmem:[%s175 + $0xba0] sm:$0xff]
        %v614 = vld [vmem:[%s175 + $0xba8] sm:$0xff]
        %v615 = vld [vmem:[%s175 + $0xbb0] sm:$0xff]
        %v616 = vld [vmem:[%s175 + $0xbb8] sm:$0xff]
        %v617 = vld [vmem:[%s175 + $0xbc0] sm:$0xff]
        %v618 = vld [vmem:[%s175 + $0xbc8] sm:$0xff]
        %v619 = vld [vmem:[%s175 + $0xbd0] sm:$0xff]
        %v620 = vld [vmem:[%s175 + $0xbd8] sm:$0xff]
        %v621 = vld [vmem:[%s175 + $0xbe0] sm:$0xff]
        %v622 = vld [vmem:[%s175 + $0xbe8] sm:$0xff]
        %v623 = vld [vmem:[%s175 + $0xbf0] sm:$0xff]
        %v624 = vld [vmem:[%s175 + $0xbf8] sm:$0xff]
        %v625 = vld [vmem:[%s175 + $0xc00] sm:$0xff]
        %v626 = vld [vmem:[%s175 + $0xc08] sm:$0xff]
        %v627 = vld [vmem:[%s175 + $0xc10] sm:$0xff]
        %v628 = vld [vmem:[%s175 + $0xc18] sm:$0xff]
        %v629 = vld [vmem:[%s175 + $0xc20] sm:$0xff]
        %v630 = vld [vmem:[%s175 + $0xc28] sm:$0xff]
        %v631 = vld [vmem:[%s175 + $0xc30] sm:$0xff]
        %v632 = vld [vmem:[%s175 + $0xc38] sm:$0xff]
        %v633 = vld [vmem:[%s175 + $0xc40] sm:$0xff]
        %v634 = vld [vmem:[%s175 + $0xc48] sm:$0xff]
        %v635 = vld [vmem:[%s175 + $0xc50] sm:$0xff]
        %v636 = vld [vmem:[%s175 + $0xc58] sm:$0xff]
        %v637 = vld [vmem:[%s175 + $0xc60] sm:$0xff]
        %v638 = vld [vmem:[%s175 + $0xc68] sm:$0xff]
        %v639 = vld [vmem:[%s175 + $0xc70] sm:$0xff]
        %v640 = vld [vmem:[%s175 + $0xc78] sm:$0xff]
        %v641 = vld [vmem:[%s175 + $0xc80] sm:$0xff]
        %v642 = vld [vmem:[%s175 + $0xc88] sm:$0xff]
        %v643 = vld [vmem:[%s175 + $0xc90] sm:$0xff]
        %v644 = vld [vmem:[%s175 + $0xc98] sm:$0xff]
        %v645 = vld [vmem:[%s175 + $0xca0] sm:$0xff]
        %v646 = vld [vmem:[%s175 + $0xca8] sm:$0xff]
        %v647 = vld [vmem:[%s175 + $0xcb0] sm:$0xff]
        %v648 = vld [vmem:[%s175 + $0xcb8] sm:$0xff]
        %v649 = vld [vmem:[%s175 + $0xcc0] sm:$0xff]
        %v650 = vld [vmem:[%s175 + $0xcc8] sm:$0xff]
        %v651 = vld [vmem:[%s175 + $0xcd0] sm:$0xff]
        %v652 = vld [vmem:[%s175 + $0xcd8] sm:$0xff]
        %v653 = vld [vmem:[%s175 + $0xce0] sm:$0xff]
        %v654 = vld [vmem:[%s175 + $0xce8] sm:$0xff]
        %v655 = vld [vmem:[%s175 + $0xcf0] sm:$0xff]
        %v656 = vld [vmem:[%s175 + $0xcf8] sm:$0xff]
        %v657 = vld [vmem:[%s175 + $0xd00] sm:$0xff]
        %v658 = vld [vmem:[%s175 + $0xd08] sm:$0xff]
        %v659 = vld [vmem:[%s175 + $0xd10] sm:$0xff]
        %v660 = vld [vmem:[%s175 + $0xd18] sm:$0xff]
        %v661 = vld [vmem:[%s175 + $0xd20] sm:$0xff]
        %v662 = vld [vmem:[%s175 + $0xd28] sm:$0xff]
        %v663 = vld [vmem:[%s175 + $0xd30] sm:$0xff]
        %v664 = vld [vmem:[%s175 + $0xd38] sm:$0xff]
        %v665 = vld [vmem:[%s175 + $0xd40] sm:$0xff]
        %v666 = vld [vmem:[%s175 + $0xd48] sm:$0xff]
        %v667 = vld [vmem:[%s175 + $0xd50] sm:$0xff]
        %v668 = vld [vmem:[%s175 + $0xd58] sm:$0xff]
        %v669 = vld [vmem:[%s175 + $0xd60] sm:$0xff]
        %v670 = vld [vmem:[%s175 + $0xd68] sm:$0xff]
        %v671 = vld [vmem:[%s175 + $0xd70] sm:$0xff]
        %v672 = vld [vmem:[%s175 + $0xd78] sm:$0xff]
        %v673 = vld [vmem:[%s175 + $0xd80] sm:$0xff]
        %v674 = vld [vmem:[%s175 + $0xd88] sm:$0xff]
        %v675 = vld [vmem:[%s175 + $0xd90] sm:$0xff]
        %v676 = vld [vmem:[%s175 + $0xd98] sm:$0xff]
        %v677 = vld [vmem:[%s175 + $0xda0] sm:$0xff]
        %v678 = vld [vmem:[%s175 + $0xda8] sm:$0xff]
        %v679 = vld [vmem:[%s175 + $0xdb0] sm:$0xff]
        %v680 = vld [vmem:[%s175 + $0xdb8] sm:$0xff]
        %v681 = vld [vmem:[%s175 + $0xdc0] sm:$0xff]
        %v682 = vld [vmem:[%s175 + $0xdc8] sm:$0xff]
        %v683 = vld [vmem:[%s175 + $0xdd0] sm:$0xff]
        %v684 = vld [vmem:[%s175 + $0xdd8] sm:$0xff]
        %v685 = vld [vmem:[%s175 + $0xde0] sm:$0xff]
        %v686 = vld [vmem:[%s175 + $0xde8] sm:$0xff]
        %v687 = vld [vmem:[%s175 + $0xdf0] sm:$0xff]
        %v688 = vld [vmem:[%s175 + $0xdf8] sm:$0xff]
        %v689 = vld [vmem:[%s175 + $0xe00] sm:$0xff]
        %v690 = vld [vmem:[%s175 + $0xe08] sm:$0xff]
        %v691 = vld [vmem:[%s175 + $0xe10] sm:$0xff]
        %v692 = vld [vmem:[%s175 + $0xe18] sm:$0xff]
        %v693 = vld [vmem:[%s175 + $0xe20] sm:$0xff]
        %v694 = vld [vmem:[%s175 + $0xe28] sm:$0xff]
        %v695 = vld [vmem:[%s175 + $0xe30] sm:$0xff]
        %v696 = vld [vmem:[%s175 + $0xe38] sm:$0xff]
        %v697 = vld [vmem:[%s175 + $0xe40] sm:$0xff]
        %v698 = vld [vmem:[%s175 + $0xe48] sm:$0xff]
        %v699 = vld [vmem:[%s175 + $0xe50] sm:$0xff]
        %v700 = vld [vmem:[%s175 + $0xe58] sm:$0xff]
        %v701 = vld [vmem:[%s175 + $0xe60] sm:$0xff]
        %v702 = vld [vmem:[%s175 + $0xe68] sm:$0xff]
        %v703 = vld [vmem:[%s175 + $0xe70] sm:$0xff]
        %v704 = vld [vmem:[%s175 + $0xe78] sm:$0xff]
        %v705 = vld [vmem:[%s175 + $0xe80] sm:$0xff]
        %v706 = vld [vmem:[%s175 + $0xe88] sm:$0xff]
        %v707 = vld [vmem:[%s175 + $0xe90] sm:$0xff]
        %v708 = vld [vmem:[%s175 + $0xe98] sm:$0xff]
        %v709 = vld [vmem:[%s175 + $0xea0] sm:$0xff]
        %v710 = vld [vmem:[%s175 + $0xea8] sm:$0xff]
        %v711 = vld [vmem:[%s175 + $0xeb0] sm:$0xff]
        %v712 = vld [vmem:[%s175 + $0xeb8] sm:$0xff]
        %v713 = vld [vmem:[%s175 + $0xec0] sm:$0xff]
        %v714 = vld [vmem:[%s175 + $0xec8] sm:$0xff]
        %v715 = vld [vmem:[%s175 + $0xed0] sm:$0xff]
        %v716 = vld [vmem:[%s175 + $0xed8] sm:$0xff]
        %v717 = vld [vmem:[%s175 + $0xee0] sm:$0xff]
        %v718 = vld [vmem:[%s175 + $0xee8] sm:$0xff]
        %v719 = vld [vmem:[%s175 + $0xef0] sm:$0xff]
        %v720 = vld [vmem:[%s175 + $0xef8] sm:$0xff]
        %v721 = vld [vmem:[%s175 + $0xf00] sm:$0xff]
        %v722 = vld [vmem:[%s175 + $0xf08] sm:$0xff]
        %v723 = vld [vmem:[%s175 + $0xf10] sm:$0xff]
        %v724 = vld [vmem:[%s175 + $0xf18] sm:$0xff]
        %v725 = vld [vmem:[%s175 + $0xf20] sm:$0xff]
        %v726 = vld [vmem:[%s175 + $0xf28] sm:$0xff]
        %v727 = vld [vmem:[%s175 + $0xf30] sm:$0xff]
        %v728 = vld [vmem:[%s175 + $0xf38] sm:$0xff]
        %v729 = vld [vmem:[%s175 + $0xf40] sm:$0xff]
        %v730 = vld [vmem:[%s175 + $0xf48] sm:$0xff]
        %v731 = vld [vmem:[%s175 + $0xf50] sm:$0xff]
        %v732 = vld [vmem:[%s175 + $0xf58] sm:$0xff]
        %v733 = vld [vmem:[%s175 + $0xf60] sm:$0xff]
        %v734 = vld [vmem:[%s175 + $0xf68] sm:$0xff]
        %v735 = vld [vmem:[%s175 + $0xf70] sm:$0xff]
        %v736 = vld [vmem:[%s175 + $0xf78] sm:$0xff]
        %v737 = vld [vmem:[%s175 + $0xf80] sm:$0xff]
        %v738 = vld [vmem:[%s175 + $0xf88] sm:$0xff]
        %v739 = vld [vmem:[%s175 + $0xf90] sm:$0xff]
        %v740 = vld [vmem:[%s175 + $0xf98] sm:$0xff]
        %v741 = vld [vmem:[%s175 + $0xfa0] sm:$0xff]
        %v742 = vld [vmem:[%s175 + $0xfa8] sm:$0xff]
        %v743 = vld [vmem:[%s175 + $0xfb0] sm:$0xff]
        %v744 = vld [vmem:[%s175 + $0xfb8] sm:$0xff]
        %v745 = vld [vmem:[%s175 + $0xfc0] sm:$0xff]
        %v746 = vld [vmem:[%s175 + $0xfc8] sm:$0xff]
        %v747 = vld [vmem:[%s175 + $0xfd0] sm:$0xff]
        %v748 = vld [vmem:[%s175 + $0xfd8] sm:$0xff]
        %v749 = vld [vmem:[%s175 + $0xfe0] sm:$0xff]
        %v750 = vld [vmem:[%s175 + $0xfe8] sm:$0xff]
        %v751 = vld [vmem:[%s175 + $0xff0] sm:$0xff]
        %v752 = vld [vmem:[%s175 + $0xff8] sm:$0xff]
        %v753 = vld [vmem:[%s175 + $0x1000] sm:$0xff]
        %v754 = vld [vmem:[%s175 + $0x1008] sm:$0xff]
        %v755 = vld [vmem:[%s175 + $0x1010] sm:$0xff]
        %v756 = vld [vmem:[%s175 + $0x1018] sm:$0xff]
        %v757 = vld [vmem:[%s175 + $0x1020] sm:$0xff]
        %v758 = vld [vmem:[%s175 + $0x1028] sm:$0xff]
        %v759 = vld [vmem:[%s175 + $0x1030] sm:$0xff]
        %v760 = vld [vmem:[%s175 + $0x1038] sm:$0xff]
        %v761 = vld [vmem:[%s175 + $0x1040] sm:$0xff]
        %v762 = vld [vmem:[%s175 + $0x1048] sm:$0xff]
        %v763 = vld [vmem:[%s175 + $0x1050] sm:$0xff]
        %v764 = vld [vmem:[%s175 + $0x1058] sm:$0xff]
        %v765 = vld [vmem:[%s175 + $0x1060] sm:$0xff]
        %v766 = vld [vmem:[%s175 + $0x1068] sm:$0xff]
        %v767 = vld [vmem:[%s175 + $0x1070] sm:$0xff]
        %v768 = vld [vmem:[%s175 + $0x1078] sm:$0xff]
        %v769 = vld [vmem:[%s175 + $0x1080] sm:$0xff]
        %v770 = vld [vmem:[%s175 + $0x1088] sm:$0xff]
        %v771 = vld [vmem:[%s175 + $0x1090] sm:$0xff]
        %v772 = vld [vmem:[%s175 + $0x1098] sm:$0xff]
        %v773 = vld [vmem:[%s175 + $0x10a0] sm:$0xff]
        %v774 = vld [vmem:[%s175 + $0x10a8] sm:$0xff]
        %v775 = vld [vmem:[%s175 + $0x10b0] sm:$0xff]
        %v776 = vld [vmem:[%s175 + $0x10b8] sm:$0xff]
        %v777 = vld [vmem:[%s175 + $0x10c0] sm:$0xff]
        %v778 = vld [vmem:[%s175 + $0x10c8] sm:$0xff]
        %v779 = vld [vmem:[%s175 + $0x10d0] sm:$0xff]
        %v780 = vld [vmem:[%s175 + $0x10d8] sm:$0xff]
        %v781 = vld [vmem:[%s175 + $0x10e0] sm:$0xff]
        %v782 = vld [vmem:[%s175 + $0x10e8] sm:$0xff]
        %v783 = vld [vmem:[%s175 + $0x10f0] sm:$0xff]
        %v784 = vld [vmem:[%s175 + $0x10f8] sm:$0xff]
        %v785 = vld [vmem:[%s175 + $0x1100] sm:$0xff]
        %v786 = vld [vmem:[%s175 + $0x1108] sm:$0xff]
        %v787 = vld [vmem:[%s175 + $0x1110] sm:$0xff]
        %v788 = vld [vmem:[%s175 + $0x1118] sm:$0xff]
        %v789 = vld [vmem:[%s175 + $0x1120] sm:$0xff]
        %v790 = vld [vmem:[%s175 + $0x1128] sm:$0xff]
        %v791 = vld [vmem:[%s175 + $0x1130] sm:$0xff]
        %v792 = vld [vmem:[%s175 + $0x1138] sm:$0xff]
        %v793 = vld [vmem:[%s175 + $0x1140] sm:$0xff]
        %v794 = vld [vmem:[%s175 + $0x1148] sm:$0xff]
        %v795 = vld [vmem:[%s175 + $0x1150] sm:$0xff]
        %v796 = vld [vmem:[%s175 + $0x1158] sm:$0xff]
        %v797 = vld [vmem:[%s175 + $0x1160] sm:$0xff]
        %v798 = vld [vmem:[%s175 + $0x1168] sm:$0xff]
        %v799 = vld [vmem:[%s175 + $0x1170] sm:$0xff]
        %v800 = vld [vmem:[%s175 + $0x1178] sm:$0xff]
        %v801 = vld [vmem:[%s175 + $0x1180] sm:$0xff]
        %v802 = vld [vmem:[%s175 + $0x1188] sm:$0xff]
        %v803 = vld [vmem:[%s175 + $0x1190] sm:$0xff]
        %v804 = vld [vmem:[%s175 + $0x1198] sm:$0xff]
        %v805 = vld [vmem:[%s175 + $0x11a0] sm:$0xff]
        %v806 = vld [vmem:[%s175 + $0x11a8] sm:$0xff]
        %v807 = vld [vmem:[%s175 + $0x11b0] sm:$0xff]
        %v808 = vld [vmem:[%s175 + $0x11b8] sm:$0xff]
        %v809 = vld [vmem:[%s175 + $0x11c0] sm:$0xff]
        %v810 = vld [vmem:[%s175 + $0x11c8] sm:$0xff]
        %v811 = vld [vmem:[%s175 + $0x11d0] sm:$0xff]
        %v812 = vld [vmem:[%s175 + $0x11d8] sm:$0xff]
        %v813 = vld [vmem:[%s175 + $0x11e0] sm:$0xff]
        %v814 = vld [vmem:[%s175 + $0x11e8] sm:$0xff]
        %v815 = vld [vmem:[%s175 + $0x11f0] sm:$0xff]
        %v816 = vld [vmem:[%s175 + $0x11f8] sm:$0xff]
        %v817 = vld [vmem:[%s175 + $0x1200] sm:$0xff]
        %v818 = vld [vmem:[%s175 + $0x1208] sm:$0xff]
        %v819 = vld [vmem:[%s175 + $0x1210] sm:$0xff]
        %v820 = vld [vmem:[%s175 + $0x1218] sm:$0xff]
        %v821 = vld [vmem:[%s175 + $0x1220] sm:$0xff]
        %v822 = vld [vmem:[%s175 + $0x1228] sm:$0xff]
        %v823 = vld [vmem:[%s175 + $0x1230] sm:$0xff]
        %v824 = vld [vmem:[%s175 + $0x1238] sm:$0xff]
        %v825 = vld [vmem:[%s175 + $0x1240] sm:$0xff]
        %v826 = vld [vmem:[%s175 + $0x1248] sm:$0xff]
        %v827 = vld [vmem:[%s175 + $0x1250] sm:$0xff]
        %v828 = vld [vmem:[%s175 + $0x1258] sm:$0xff]
        %v829 = vld [vmem:[%s175 + $0x1260] sm:$0xff]
        %v830 = vld [vmem:[%s175 + $0x1268] sm:$0xff]
        %v831 = vld [vmem:[%s175 + $0x1270] sm:$0xff]
        %v832 = vld [vmem:[%s175 + $0x1278] sm:$0xff]
        %v833 = vld [vmem:[%s175 + $0x1280] sm:$0xff]
        %v834 = vld [vmem:[%s175 + $0x1288] sm:$0xff]
        %v835 = vld [vmem:[%s175 + $0x1290] sm:$0xff]
        %v836 = vld [vmem:[%s175 + $0x1298] sm:$0xff]
        %v837 = vld [vmem:[%s175 + $0x12a0] sm:$0xff]
        %v838 = vld [vmem:[%s175 + $0x12a8] sm:$0xff]
        %v839 = vld [vmem:[%s175 + $0x12b0] sm:$0xff]
        %v840 = vld [vmem:[%s175 + $0x12b8] sm:$0xff]
        %v841 = vld [vmem:[%s175 + $0x12c0] sm:$0xff]
        %v842 = vld [vmem:[%s175 + $0x12c8] sm:$0xff]
        %v843 = vld [vmem:[%s175 + $0x12d0] sm:$0xff]
        %v844 = vld [vmem:[%s175 + $0x12d8] sm:$0xff]
        %v845 = vld [vmem:[%s175 + $0x12e0] sm:$0xff]
        %v846 = vld [vmem:[%s175 + $0x12e8] sm:$0xff]
        %v847 = vld [vmem:[%s175 + $0x12f0] sm:$0xff]
        %v848 = vld [vmem:[%s175 + $0x12f8] sm:$0xff]
        %v849 = vld [vmem:[%s175 + $0x1300] sm:$0xff]
        %v850 = vld [vmem:[%s175 + $0x1308] sm:$0xff]
        %v851 = vld [vmem:[%s175 + $0x1310] sm:$0xff]
        %v852 = vld [vmem:[%s175 + $0x1318] sm:$0xff]
        %v853 = vld [vmem:[%s175 + $0x1320] sm:$0xff]
        %v854 = vld [vmem:[%s175 + $0x1328] sm:$0xff]
        %v855 = vld [vmem:[%s175 + $0x1330] sm:$0xff]
        %v856 = vld [vmem:[%s175 + $0x1338] sm:$0xff]
        %v857 = vld [vmem:[%s175 + $0x1340] sm:$0xff]
        %v858 = vld [vmem:[%s175 + $0x1348] sm:$0xff]
        %v859 = vld [vmem:[%s175 + $0x1350] sm:$0xff]
        %v860 = vld [vmem:[%s175 + $0x1358] sm:$0xff]
        %v861 = vld [vmem:[%s175 + $0x1360] sm:$0xff]
        %v862 = vld [vmem:[%s175 + $0x1368] sm:$0xff]
        %v863 = vld [vmem:[%s175 + $0x1370] sm:$0xff]
        %v864 = vld [vmem:[%s175 + $0x1378] sm:$0xff]
        %v865 = vld [vmem:[%s175 + $0x1380] sm:$0xff]
        %v866 = vld [vmem:[%s175 + $0x1388] sm:$0xff]
        %v867 = vld [vmem:[%s175 + $0x1390] sm:$0xff]
        %v868 = vld [vmem:[%s175 + $0x1398] sm:$0xff]
        %v869 = vld [vmem:[%s175 + $0x13a0] sm:$0xff]
        %v870 = vld [vmem:[%s175 + $0x13a8] sm:$0xff]
        %v871 = vld [vmem:[%s175 + $0x13b0] sm:$0xff]
        %v872 = vld [vmem:[%s175 + $0x13b8] sm:$0xff]
        %v873 = vld [vmem:[%s175 + $0x13c0] sm:$0xff]
        %v874 = vld [vmem:[%s175 + $0x13c8] sm:$0xff]
        %v875 = vld [vmem:[%s175 + $0x13d0] sm:$0xff]
        %v876 = vld [vmem:[%s175 + $0x13d8] sm:$0xff]
        %v877 = vld [vmem:[%s175 + $0x13e0] sm:$0xff]
        %v878 = vld [vmem:[%s175 + $0x13e8] sm:$0xff]
        %v879 = vld [vmem:[%s175 + $0x13f0] sm:$0xff]
        %v880 = vld [vmem:[%s175 + $0x13f8] sm:$0xff]
        %v881 = vld [vmem:[%s175 + $0x1400] sm:$0xff]
        %v882 = vld [vmem:[%s175 + $0x1408] sm:$0xff]
        %v883 = vld [vmem:[%s175 + $0x1410] sm:$0xff]
        %v884 = vld [vmem:[%s175 + $0x1418] sm:$0xff]
        %v885 = vld [vmem:[%s175 + $0x1420] sm:$0xff]
        %v886 = vld [vmem:[%s175 + $0x1428] sm:$0xff]
        %v887 = vld [vmem:[%s175 + $0x1430] sm:$0xff]
        %v888 = vld [vmem:[%s175 + $0x1438] sm:$0xff]
        %v889 = vld [vmem:[%s175 + $0x1440] sm:$0xff]
        %v890 = vld [vmem:[%s175 + $0x1448] sm:$0xff]
        %v891 = vld [vmem:[%s175 + $0x1450] sm:$0xff]
        %v892 = vld [vmem:[%s175 + $0x1458] sm:$0xff]
        %v893 = vld [vmem:[%s175 + $0x1460] sm:$0xff]
        %v894 = vld [vmem:[%s175 + $0x1468] sm:$0xff]
        %v895 = vld [vmem:[%s175 + $0x1470] sm:$0xff]
        %v896 = vld [vmem:[%s175 + $0x1478] sm:$0xff]
        %v897 = vld [vmem:[%s175 + $0x1480] sm:$0xff]
        %v898 = vld [vmem:[%s175 + $0x1488] sm:$0xff]
        %v899 = vld [vmem:[%s175 + $0x1490] sm:$0xff]
        %v900 = vld [vmem:[%s175 + $0x1498] sm:$0xff]
        %v901 = vld [vmem:[%s175 + $0x14a0] sm:$0xff]
        %v902 = vld [vmem:[%s175 + $0x14a8] sm:$0xff]
        %v903 = vld [vmem:[%s175 + $0x14b0] sm:$0xff]
        %v904 = vld [vmem:[%s175 + $0x14b8] sm:$0xff]
        %v905 = vld [vmem:[%s175 + $0x14c0] sm:$0xff]
        %v906 = vld [vmem:[%s175 + $0x14c8] sm:$0xff]
        %v907 = vld [vmem:[%s175 + $0x14d0] sm:$0xff]
        %v908 = vld [vmem:[%s175 + $0x14d8] sm:$0xff]
        %v909 = vld [vmem:[%s175 + $0x14e0] sm:$0xff]
        %v910 = vld [vmem:[%s175 + $0x14e8] sm:$0xff]
        %v911 = vld [vmem:[%s175 + $0x14f0] sm:$0xff]
        %v912 = vld [vmem:[%s175 + $0x14f8] sm:$0xff]
        %v913 = vld [vmem:[%s175 + $0x1500] sm:$0xff]
        %v914 = vld [vmem:[%s175 + $0x1508] sm:$0xff]
        %v915 = vld [vmem:[%s175 + $0x1510] sm:$0xff]
        %v916 = vld [vmem:[%s175 + $0x1518] sm:$0xff]
        %v917 = vld [vmem:[%s175 + $0x1520] sm:$0xff]
        %v918 = vld [vmem:[%s175 + $0x1528] sm:$0xff]
        %v919 = vld [vmem:[%s175 + $0x1530] sm:$0xff]
        %v920 = vld [vmem:[%s175 + $0x1538] sm:$0xff]
        %v921 = vld [vmem:[%s175 + $0x1540] sm:$0xff]
        %v922 = vld [vmem:[%s175 + $0x1548] sm:$0xff]
        %v923 = vld [vmem:[%s175 + $0x1550] sm:$0xff]
        %v924 = vld [vmem:[%s175 + $0x1558] sm:$0xff]
        %v925 = vld [vmem:[%s175 + $0x1560] sm:$0xff]
        %v926 = vld [vmem:[%s175 + $0x1568] sm:$0xff]
        %v927 = vld [vmem:[%s175 + $0x1570] sm:$0xff]
        %v928 = vld [vmem:[%s175 + $0x1578] sm:$0xff]
        %v929 = vld [vmem:[%s175 + $0x1580] sm:$0xff]
        %v930 = vld [vmem:[%s175 + $0x1588] sm:$0xff]
        %v931 = vld [vmem:[%s175 + $0x1590] sm:$0xff]
        %v932 = vld [vmem:[%s175 + $0x1598] sm:$0xff]
        %v933 = vld [vmem:[%s175 + $0x15a0] sm:$0xff]
        %v934 = vld [vmem:[%s175 + $0x15a8] sm:$0xff]
        %v935 = vld [vmem:[%s175 + $0x15b0] sm:$0xff]
        %v936 = vld [vmem:[%s175 + $0x15b8] sm:$0xff]
        %v937 = vld [vmem:[%s175 + $0x15c0] sm:$0xff]
        %v938 = vld [vmem:[%s175 + $0x15c8] sm:$0xff]
        %v939 = vld [vmem:[%s175 + $0x15d0] sm:$0xff]
        %v940 = vld [vmem:[%s175 + $0x15d8] sm:$0xff]
        %v941 = vld [vmem:[%s175 + $0x15e0] sm:$0xff]
        %v942 = vld [vmem:[%s175 + $0x15e8] sm:$0xff]
        %v943 = vld [vmem:[%s175 + $0x15f0] sm:$0xff]
        %v944 = vld [vmem:[%s175 + $0x15f8] sm:$0xff]
        %v945 = vld [vmem:[%s175 + $0x1600] sm:$0xff]
        %v946 = vld [vmem:[%s175 + $0x1608] sm:$0xff]
        %v947 = vld [vmem:[%s175 + $0x1610] sm:$0xff]
        %v948 = vld [vmem:[%s175 + $0x1618] sm:$0xff]
        %v949 = vld [vmem:[%s175 + $0x1620] sm:$0xff]
        %v950 = vld [vmem:[%s175 + $0x1628] sm:$0xff]
        %v951 = vld [vmem:[%s175 + $0x1630] sm:$0xff]
        %v952 = vld [vmem:[%s175 + $0x1638] sm:$0xff]
        %v953 = vld [vmem:[%s175 + $0x1640] sm:$0xff]
        %v954 = vld [vmem:[%s175 + $0x1648] sm:$0xff]
        %v955 = vld [vmem:[%s175 + $0x1650] sm:$0xff]
        %v956 = vld [vmem:[%s175 + $0x1658] sm:$0xff]
        %v957 = vld [vmem:[%s175 + $0x1660] sm:$0xff]
        %v958 = vld [vmem:[%s175 + $0x1668] sm:$0xff]
        %v959 = vld [vmem:[%s175 + $0x1670] sm:$0xff]
        %v960 = vld [vmem:[%s175 + $0x1678] sm:$0xff]
        %v961 = vld [vmem:[%s175 + $0x1680] sm:$0xff]
        %v962 = vld [vmem:[%s175 + $0x1688] sm:$0xff]
        %v963 = vld [vmem:[%s175 + $0x1690] sm:$0xff]
        %v964 = vld [vmem:[%s175 + $0x1698] sm:$0xff]
        %v965 = vld [vmem:[%s175 + $0x16a0] sm:$0xff]
        %v966 = vld [vmem:[%s175 + $0x16a8] sm:$0xff]
        %v967 = vld [vmem:[%s175 + $0x16b0] sm:$0xff]
        %v968 = vld [vmem:[%s175 + $0x16b8] sm:$0xff]
        %v969 = vld [vmem:[%s175 + $0x16c0] sm:$0xff]
        %v970 = vld [vmem:[%s175 + $0x16c8] sm:$0xff]
        %v971 = vld [vmem:[%s175 + $0x16d0] sm:$0xff]
        %v972 = vld [vmem:[%s175 + $0x16d8] sm:$0xff]
        %v973 = vld [vmem:[%s175 + $0x16e0] sm:$0xff]
        %v974 = vld [vmem:[%s175 + $0x16e8] sm:$0xff]
        %v975 = vld [vmem:[%s175 + $0x16f0] sm:$0xff]
        %v976 = vld [vmem:[%s175 + $0x16f8] sm:$0xff]
        %v977 = vld [vmem:[%s175 + $0x1700] sm:$0xff]
        %v978 = vld [vmem:[%s175 + $0x1708] sm:$0xff]
        %v979 = vld [vmem:[%s175 + $0x1710] sm:$0xff]
        %v980 = vld [vmem:[%s175 + $0x1718] sm:$0xff]
        %v981 = vld [vmem:[%s175 + $0x1720] sm:$0xff]
        %v982 = vld [vmem:[%s175 + $0x1728] sm:$0xff]
        %v983 = vld [vmem:[%s175 + $0x1730] sm:$0xff]
        %v984 = vld [vmem:[%s175 + $0x1738] sm:$0xff]
        %v985 = vld [vmem:[%s175 + $0x1740] sm:$0xff]
        %v986 = vld [vmem:[%s175 + $0x1748] sm:$0xff]
        %v987 = vld [vmem:[%s175 + $0x1750] sm:$0xff]
        %v988 = vld [vmem:[%s175 + $0x1758] sm:$0xff]
        %v989 = vld [vmem:[%s175 + $0x1760] sm:$0xff]
        %v990 = vld [vmem:[%s175 + $0x1768] sm:$0xff]
        %v991 = vld [vmem:[%s175 + $0x1770] sm:$0xff]
        %v992 = vld [vmem:[%s175 + $0x1778] sm:$0xff]
        %v993 = vld [vmem:[%s175 + $0x1780] sm:$0xff]
        %v994 = vld [vmem:[%s175 + $0x1788] sm:$0xff]
        %v995 = vld [vmem:[%s175 + $0x1790] sm:$0xff]
        %v996 = vld [vmem:[%s175 + $0x1798] sm:$0xff]
        %v997 = vld [vmem:[%s175 + $0x17a0] sm:$0xff]
        %v998 = vld [vmem:[%s175 + $0x17a8] sm:$0xff]
        %v999 = vld [vmem:[%s175 + $0x17b0] sm:$0xff]
        %v1000 = vld [vmem:[%s175 + $0x17b8] sm:$0xff]
        %v1001 = vld [vmem:[%s175 + $0x17c0] sm:$0xff]
        %v1002 = vld [vmem:[%s175 + $0x17c8] sm:$0xff]
        %v1003 = vld [vmem:[%s175 + $0x17d0] sm:$0xff]
        %v1004 = vld [vmem:[%s175 + $0x17d8] sm:$0xff]
        %v1005 = vld [vmem:[%s175 + $0x17e0] sm:$0xff]
        %v1006 = vld [vmem:[%s175 + $0x17e8] sm:$0xff]
        %v1007 = vld [vmem:[%s175 + $0x17f0] sm:$0xff]
        %v1008 = vld [vmem:[%s175 + $0x17f8] sm:$0xff]
        %v1009 = vld [vmem:[%s175 + $0x1800] sm:$0xff]
        %v1010 = vld [vmem:[%s175 + $0x1808] sm:$0xff]
        %v1011 = vld [vmem:[%s175 + $0x1810] sm:$0xff]
        %v1012 = vld [vmem:[%s175 + $0x1818] sm:$0xff]
        %v1013 = vld [vmem:[%s175 + $0x1820] sm:$0xff]
        %v1014 = vld [vmem:[%s175 + $0x1828] sm:$0xff]
        %v1015 = vld [vmem:[%s175 + $0x1830] sm:$0xff]
        %v1016 = vld [vmem:[%s175 + $0x1838] sm:$0xff]
        %v1017 = vld [vmem:[%s175 + $0x1840] sm:$0xff]
        %v1018 = vld [vmem:[%s175 + $0x1848] sm:$0xff]
        %v1019 = vld [vmem:[%s175 + $0x1850] sm:$0xff]
        %v1020 = vld [vmem:[%s175 + $0x1858] sm:$0xff]
        %v1021 = vld [vmem:[%s175 + $0x1860] sm:$0xff]
        %v1022 = vld [vmem:[%s175 + $0x1868] sm:$0xff]
        %v1023 = vld [vmem:[%s175 + $0x1870] sm:$0xff]
        %v1024 = vld [vmem:[%s175 + $0x1878] sm:$0xff]
        %v1025 = vld [vmem:[%s175 + $0x1880] sm:$0xff]
        %v1026 = vld [vmem:[%s175 + $0x1888] sm:$0xff]
        %v1027 = vld [vmem:[%s175 + $0x1890] sm:$0xff]
        %v1028 = vld [vmem:[%s175 + $0x1898] sm:$0xff]
        %v1029 = vld [vmem:[%s175 + $0x18a0] sm:$0xff]
        %v1030 = vld [vmem:[%s175 + $0x18a8] sm:$0xff]
        %v1031 = vld [vmem:[%s175 + $0x18b0] sm:$0xff]
        %v1032 = vld [vmem:[%s175 + $0x18b8] sm:$0xff]
        %v1033 = vld [vmem:[%s175 + $0x18c0] sm:$0xff]
        %v1034 = vld [vmem:[%s175 + $0x18c8] sm:$0xff]
        %v1035 = vld [vmem:[%s175 + $0x18d0] sm:$0xff]
        %v1036 = vld [vmem:[%s175 + $0x18d8] sm:$0xff]
        %v1037 = vld [vmem:[%s175 + $0x18e0] sm:$0xff]
        %v1038 = vld [vmem:[%s175 + $0x18e8] sm:$0xff]
        %v1039 = vld [vmem:[%s175 + $0x18f0] sm:$0xff]
        %v1040 = vld [vmem:[%s175 + $0x18f8] sm:$0xff]
        %v1041 = vld [vmem:[%s175 + $0x1900] sm:$0xff]
        %v1042 = vld [vmem:[%s175 + $0x1908] sm:$0xff]
        %v1043 = vld [vmem:[%s175 + $0x1910] sm:$0xff]
        %v1044 = vld [vmem:[%s175 + $0x1918] sm:$0xff]
        %v1045 = vld [vmem:[%s175 + $0x1920] sm:$0xff]
        %v1046 = vld [vmem:[%s175 + $0x1928] sm:$0xff]
        %v1047 = vld [vmem:[%s175 + $0x1930] sm:$0xff]
        %v1048 = vld [vmem:[%s175 + $0x1938] sm:$0xff]
        %v1049 = vld [vmem:[%s175 + $0x1940] sm:$0xff]
        %v1050 = vld [vmem:[%s175 + $0x1948] sm:$0xff]
        %v1051 = vld [vmem:[%s175 + $0x1950] sm:$0xff]
        %v1052 = vld [vmem:[%s175 + $0x1958] sm:$0xff]
        %v1053 = vld [vmem:[%s175 + $0x1960] sm:$0xff]
        %v1054 = vld [vmem:[%s175 + $0x1968] sm:$0xff]
        %v1055 = vld [vmem:[%s175 + $0x1970] sm:$0xff]
        %v1056 = vld [vmem:[%s175 + $0x1978] sm:$0xff]
        %v1057 = vld [vmem:[%s175 + $0x1980] sm:$0xff]
        %v1058 = vld [vmem:[%s175 + $0x1988] sm:$0xff]
        %v1059 = vld [vmem:[%s175 + $0x1990] sm:$0xff]
        %v1060 = vld [vmem:[%s175 + $0x1998] sm:$0xff]
        %v1061 = vld [vmem:[%s175 + $0x19a0] sm:$0xff]
        %v1062 = vld [vmem:[%s175 + $0x19a8] sm:$0xff]
        %v1063 = vld [vmem:[%s175 + $0x19b0] sm:$0xff]
        %v1064 = vld [vmem:[%s175 + $0x19b8] sm:$0xff]
        %v1065 = vld [vmem:[%s175 + $0x19c0] sm:$0xff]
        %v1066 = vld [vmem:[%s175 + $0x19c8] sm:$0xff]
        %v1067 = vld [vmem:[%s175 + $0x19d0] sm:$0xff]
        %v1068 = vld [vmem:[%s175 + $0x19d8] sm:$0xff]
        %v1069 = vld [vmem:[%s175 + $0x19e0] sm:$0xff]
        %v1070 = vld [vmem:[%s175 + $0x19e8] sm:$0xff]
        %v1071 = vld [vmem:[%s175 + $0x19f0] sm:$0xff]
        %v1072 = vld [vmem:[%s175 + $0x19f8] sm:$0xff]
        %v1073 = vld [vmem:[%s175 + $0x1a00] sm:$0xff]
        %v1074 = vld [vmem:[%s175 + $0x1a08] sm:$0xff]
        %v1075 = vld [vmem:[%s175 + $0x1a10] sm:$0xff]
        %v1076 = vld [vmem:[%s175 + $0x1a18] sm:$0xff]
        %v1077 = vld [vmem:[%s175 + $0x1a20] sm:$0xff]
        %v1078 = vld [vmem:[%s175 + $0x1a28] sm:$0xff]
        %v1079 = vld [vmem:[%s175 + $0x1a30] sm:$0xff]
        %v1080 = vld [vmem:[%s175 + $0x1a38] sm:$0xff]
        %v1081 = vld [vmem:[%s175 + $0x1a40] sm:$0xff]
        %v1082 = vld [vmem:[%s175 + $0x1a48] sm:$0xff]
        %v1083 = vld [vmem:[%s175 + $0x1a50] sm:$0xff]
        %v1084 = vld [vmem:[%s175 + $0x1a58] sm:$0xff]
        %v1085 = vld [vmem:[%s175 + $0x1a60] sm:$0xff]
        %v1086 = vld [vmem:[%s175 + $0x1a68] sm:$0xff]
        %v1087 = vld [vmem:[%s175 + $0x1a70] sm:$0xff]
        %v1088 = vld [vmem:[%s175 + $0x1a78] sm:$0xff]
        %v1089 = vld [vmem:[%s175 + $0x1a80] sm:$0xff]
        %v1090 = vld [vmem:[%s175 + $0x1a88] sm:$0xff]
        %v1091 = vld [vmem:[%s175 + $0x1a90] sm:$0xff]
        %v1092 = vld [vmem:[%s175 + $0x1a98] sm:$0xff]
        %v1093 = vld [vmem:[%s175 + $0x1aa0] sm:$0xff]
        %v1094 = vld [vmem:[%s175 + $0x1aa8] sm:$0xff]
        %v1095 = vld [vmem:[%s175 + $0x1ab0] sm:$0xff]
        %v1096 = vld [vmem:[%s175 + $0x1ab8] sm:$0xff]
        %v1097 = vld [vmem:[%s175 + $0x1ac0] sm:$0xff]
        %v1098 = vld [vmem:[%s175 + $0x1ac8] sm:$0xff]
        %v1099 = vld [vmem:[%s175 + $0x1ad0] sm:$0xff]
        %v1100 = vld [vmem:[%s175 + $0x1ad8] sm:$0xff]
        %v1101 = vld [vmem:[%s175 + $0x1ae0] sm:$0xff]
        %v1102 = vld [vmem:[%s175 + $0x1ae8] sm:$0xff]
        %v1103 = vld [vmem:[%s175 + $0x1af0] sm:$0xff]
        %v1104 = vld [vmem:[%s175 + $0x1af8] sm:$0xff]
        %v1105 = vld [vmem:[%s175 + $0x1b00] sm:$0xff]
        %v1106 = vld [vmem:[%s175 + $0x1b08] sm:$0xff]
        %v1107 = vld [vmem:[%s175 + $0x1b10] sm:$0xff]
        %v1108 = vld [vmem:[%s175 + $0x1b18] sm:$0xff]
        %v1109 = vld [vmem:[%s175 + $0x1b20] sm:$0xff]
        %v1110 = vld [vmem:[%s175 + $0x1b28] sm:$0xff]
        %v1111 = vld [vmem:[%s175 + $0x1b30] sm:$0xff]
        %v1112 = vld [vmem:[%s175 + $0x1b38] sm:$0xff]
        %v1113 = vld [vmem:[%s175 + $0x1b40] sm:$0xff]
        %v1114 = vld [vmem:[%s175 + $0x1b48] sm:$0xff]
        %v1115 = vld [vmem:[%s175 + $0x1b50] sm:$0xff]
        %v1116 = vld [vmem:[%s175 + $0x1b58] sm:$0xff]
        %v1117 = vld [vmem:[%s175 + $0x1b60] sm:$0xff]
        %v1118 = vld [vmem:[%s175 + $0x1b68] sm:$0xff]
        %v1119 = vld [vmem:[%s175 + $0x1b70] sm:$0xff]
        %v1120 = vld [vmem:[%s175 + $0x1b78] sm:$0xff]
        %v1121 = vld [vmem:[%s175 + $0x1b80] sm:$0xff]
        %v1122 = vld [vmem:[%s175 + $0x1b88] sm:$0xff]
        %v1123 = vld [vmem:[%s175 + $0x1b90] sm:$0xff]
        %v1124 = vld [vmem:[%s175 + $0x1b98] sm:$0xff]
        %v1125 = vld [vmem:[%s175 + $0x1ba0] sm:$0xff]
        %v1126 = vld [vmem:[%s175 + $0x1ba8] sm:$0xff]
        %v1127 = vld [vmem:[%s175 + $0x1bb0] sm:$0xff]
        %v1128 = vld [vmem:[%s175 + $0x1bb8] sm:$0xff]
        %v1129 = vld [vmem:[%s175 + $0x1bc0] sm:$0xff]
        %v1130 = vld [vmem:[%s175 + $0x1bc8] sm:$0xff]
        %v1131 = vld [vmem:[%s175 + $0x1bd0] sm:$0xff]
        %v1132 = vld [vmem:[%s175 + $0x1bd8] sm:$0xff]
        %v1133 = vld [vmem:[%s175 + $0x1be0] sm:$0xff]
        %v1134 = vld [vmem:[%s175 + $0x1be8] sm:$0xff]
        %v1135 = vld [vmem:[%s175 + $0x1bf0] sm:$0xff]
        %v1136 = vld [vmem:[%s175 + $0x1bf8] sm:$0xff]
        %v1137 = vld [vmem:[%s175 + $0x1c00] sm:$0xff]
        %v1138 = vld [vmem:[%s175 + $0x1c08] sm:$0xff]
        %v1139 = vld [vmem:[%s175 + $0x1c10] sm:$0xff]
        %v1140 = vld [vmem:[%s175 + $0x1c18] sm:$0xff]
        %v1141 = vld [vmem:[%s175 + $0x1c20] sm:$0xff]
        %v1142 = vld [vmem:[%s175 + $0x1c28] sm:$0xff]
        %v1143 = vld [vmem:[%s175 + $0x1c30] sm:$0xff]
        %v1144 = vld [vmem:[%s175 + $0x1c38] sm:$0xff]
        %v1145 = vld [vmem:[%s175 + $0x1c40] sm:$0xff]
        %v1146 = vld [vmem:[%s175 + $0x1c48] sm:$0xff]
        %v1147 = vld [vmem:[%s175 + $0x1c50] sm:$0xff]
        %v1148 = vld [vmem:[%s175 + $0x1c58] sm:$0xff]
        %v1149 = vld [vmem:[%s175 + $0x1c60] sm:$0xff]
        %v1150 = vld [vmem:[%s175 + $0x1c68] sm:$0xff]
        %v1151 = vld [vmem:[%s175 + $0x1c70] sm:$0xff]
        %v1152 = vld [vmem:[%s175 + $0x1c78] sm:$0xff]
        %v1153 = vld [vmem:[%s175 + $0x1c80] sm:$0xff]
        %v1154 = vld [vmem:[%s175 + $0x1c88] sm:$0xff]
        %v1155 = vld [vmem:[%s175 + $0x1c90] sm:$0xff]
        %v1156 = vld [vmem:[%s175 + $0x1c98] sm:$0xff]
        %v1157 = vld [vmem:[%s175 + $0x1ca0] sm:$0xff]
        %v1158 = vld [vmem:[%s175 + $0x1ca8] sm:$0xff]
        %v1159 = vld [vmem:[%s175 + $0x1cb0] sm:$0xff]
        %v1160 = vld [vmem:[%s175 + $0x1cb8] sm:$0xff]
        %v1161 = vld [vmem:[%s175 + $0x1cc0] sm:$0xff]
        %v1162 = vld [vmem:[%s175 + $0x1cc8] sm:$0xff]
        %v1163 = vld [vmem:[%s175 + $0x1cd0] sm:$0xff]
        %v1164 = vld [vmem:[%s175 + $0x1cd8] sm:$0xff]
        %v1165 = vld [vmem:[%s175 + $0x1ce0] sm:$0xff]
        %v1166 = vld [vmem:[%s175 + $0x1ce8] sm:$0xff]
        %v1167 = vld [vmem:[%s175 + $0x1cf0] sm:$0xff]
        %v1168 = vld [vmem:[%s175 + $0x1cf8] sm:$0xff]
        %v1169 = vld [vmem:[%s175 + $0x1d00] sm:$0xff]
        %v1170 = vld [vmem:[%s175 + $0x1d08] sm:$0xff]
        %v1171 = vld [vmem:[%s175 + $0x1d10] sm:$0xff]
        %v1172 = vld [vmem:[%s175 + $0x1d18] sm:$0xff]
        %v1173 = vld [vmem:[%s175 + $0x1d20] sm:$0xff]
        %v1174 = vld [vmem:[%s175 + $0x1d28] sm:$0xff]
        %v1175 = vld [vmem:[%s175 + $0x1d30] sm:$0xff]
        %v1176 = vld [vmem:[%s175 + $0x1d38] sm:$0xff]
        %v1177 = vld [vmem:[%s175 + $0x1d40] sm:$0xff]
        %v1178 = vld [vmem:[%s175 + $0x1d48] sm:$0xff]
        %v1179 = vld [vmem:[%s175 + $0x1d50] sm:$0xff]
        %v1180 = vld [vmem:[%s175 + $0x1d58] sm:$0xff]
        %v1181 = vld [vmem:[%s175 + $0x1d60] sm:$0xff]
        %v1182 = vld [vmem:[%s175 + $0x1d68] sm:$0xff]
        %v1183 = vld [vmem:[%s175 + $0x1d70] sm:$0xff]
        %v1184 = vld [vmem:[%s175 + $0x1d78] sm:$0xff]
        %v1185 = vld [vmem:[%s175 + $0x1d80] sm:$0xff]
        %v1186 = vld [vmem:[%s175 + $0x1d88] sm:$0xff]
        %v1187 = vld [vmem:[%s175 + $0x1d90] sm:$0xff]
        %v1188 = vld [vmem:[%s175 + $0x1d98] sm:$0xff]
        %v1189 = vld [vmem:[%s175 + $0x1da0] sm:$0xff]
        %v1190 = vld [vmem:[%s175 + $0x1da8] sm:$0xff]
        %v1191 = vld [vmem:[%s175 + $0x1db0] sm:$0xff]
        %v1192 = vld [vmem:[%s175 + $0x1db8] sm:$0xff]
        %v1193 = vld [vmem:[%s175 + $0x1dc0] sm:$0xff]
        %v1194 = vld [vmem:[%s175 + $0x1dc8] sm:$0xff]
        %v1195 = vld [vmem:[%s175 + $0x1dd0] sm:$0xff]
        %v1196 = vld [vmem:[%s175 + $0x1dd8] sm:$0xff]
        %v1197 = vld [vmem:[%s175 + $0x1de0] sm:$0xff]
        %v1198 = vld [vmem:[%s175 + $0x1de8] sm:$0xff]
        %v1199 = vld [vmem:[%s175 + $0x1df0] sm:$0xff]
        %v1200 = vld [vmem:[%s175 + $0x1df8] sm:$0xff]
        %v1201 = vld [vmem:[%s175 + $0x1e00] sm:$0xff]
        %v1202 = vld [vmem:[%s175 + $0x1e08] sm:$0xff]
        %v1203 = vld [vmem:[%s175 + $0x1e10] sm:$0xff]
        %v1204 = vld [vmem:[%s175 + $0x1e18] sm:$0xff]
        %v1205 = vld [vmem:[%s175 + $0x1e20] sm:$0xff]
        %v1206 = vld [vmem:[%s175 + $0x1e28] sm:$0xff]
        %v1207 = vld [vmem:[%s175 + $0x1e30] sm:$0xff]
        %v1208 = vld [vmem:[%s175 + $0x1e38] sm:$0xff]
        %v1209 = vld [vmem:[%s175 + $0x1e40] sm:$0xff]
        %v1210 = vld [vmem:[%s175 + $0x1e48] sm:$0xff]
        %v1211 = vld [vmem:[%s175 + $0x1e50] sm:$0xff]
        %v1212 = vld [vmem:[%s175 + $0x1e58] sm:$0xff]
        %v1213 = vld [vmem:[%s175 + $0x1e60] sm:$0xff]
        %v1214 = vld [vmem:[%s175 + $0x1e68] sm:$0xff]
        %v1215 = vld [vmem:[%s175 + $0x1e70] sm:$0xff]
        %v1216 = vld [vmem:[%s175 + $0x1e78] sm:$0xff]
        %v1217 = vld [vmem:[%s175 + $0x1e80] sm:$0xff]
        %v1218 = vld [vmem:[%s175 + $0x1e88] sm:$0xff]
        %v1219 = vld [vmem:[%s175 + $0x1e90] sm:$0xff]
        %v1220 = vld [vmem:[%s175 + $0x1e98] sm:$0xff]
        %v1221 = vld [vmem:[%s175 + $0x1ea0] sm:$0xff]
        %v1222 = vld [vmem:[%s175 + $0x1ea8] sm:$0xff]
        %v1223 = vld [vmem:[%s175 + $0x1eb0] sm:$0xff]
        %v1224 = vld [vmem:[%s175 + $0x1eb8] sm:$0xff]
        %v1225 = vld [vmem:[%s175 + $0x1ec0] sm:$0xff]
        %v1226 = vld [vmem:[%s175 + $0x1ec8] sm:$0xff]
        %v1227 = vld [vmem:[%s175 + $0x1ed0] sm:$0xff]
        %v1228 = vld [vmem:[%s175 + $0x1ed8] sm:$0xff]
        %v1229 = vld [vmem:[%s175 + $0x1ee0] sm:$0xff]
        %v1230 = vld [vmem:[%s175 + $0x1ee8] sm:$0xff]
        %v1231 = vld [vmem:[%s175 + $0x1ef0] sm:$0xff]
        %v1232 = vld [vmem:[%s175 + $0x1ef8] sm:$0xff]
        %v1233 = vld [vmem:[%s175 + $0x1f00] sm:$0xff]
        %v1234 = vld [vmem:[%s175 + $0x1f08] sm:$0xff]
        %v1235 = vld [vmem:[%s175 + $0x1f10] sm:$0xff]
        %v1236 = vld [vmem:[%s175 + $0x1f18] sm:$0xff]
        %v1237 = vld [vmem:[%s175 + $0x1f20] sm:$0xff]
        %v1238 = vld [vmem:[%s175 + $0x1f28] sm:$0xff]
        %v1239 = vld [vmem:[%s175 + $0x1f30] sm:$0xff]
        %v1240 = vld [vmem:[%s175 + $0x1f38] sm:$0xff]
        %v1241 = vld [vmem:[%s175 + $0x1f40] sm:$0xff]
        %v1242 = vld [vmem:[%s175 + $0x1f48] sm:$0xff]
        %v1243 = vld [vmem:[%s175 + $0x1f50] sm:$0xff]
        %v1244 = vld [vmem:[%s175 + $0x1f58] sm:$0xff]
        %v1245 = vld [vmem:[%s175 + $0x1f60] sm:$0xff]
        %v1246 = vld [vmem:[%s175 + $0x1f68] sm:$0xff]
        %v1247 = vld [vmem:[%s175 + $0x1f70] sm:$0xff]
        %v1248 = vld [vmem:[%s175 + $0x1f78] sm:$0xff]
        %v1249 = vld [vmem:[%s175 + $0x1f80] sm:$0xff]
        %v1250 = vld [vmem:[%s175 + $0x1f88] sm:$0xff]
        %v1251 = vld [vmem:[%s175 + $0x1f90] sm:$0xff]
        %v1252 = vld [vmem:[%s175 + $0x1f98] sm:$0xff]
        %v1253 = vld [vmem:[%s175 + $0x1fa0] sm:$0xff]
        %v1254 = vld [vmem:[%s175 + $0x1fa8] sm:$0xff]
        %v1255 = vld [vmem:[%s175 + $0x1fb0] sm:$0xff]
        %v1256 = vld [vmem:[%s175 + $0x1fb8] sm:$0xff]
        %v1257 = vld [vmem:[%s175 + $0x1fc0] sm:$0xff]
        %v1258 = vld [vmem:[%s175 + $0x1fc8] sm:$0xff]
        %v1259 = vld [vmem:[%s175 + $0x1fd0] sm:$0xff]
        %v1260 = vld [vmem:[%s175 + $0x1fd8] sm:$0xff]
        %v1261 = vld [vmem:[%s175 + $0x1fe0] sm:$0xff]
        %v1262 = vld [vmem:[%s175 + $0x1fe8] sm:$0xff]
        %v1263 = vld [vmem:[%s175 + $0x1ff0] sm:$0xff]
        %v1264 = vld [vmem:[%s175 + $0x1ff8] sm:$0xff]
        %v1281 = vcombine.high %v225, %v225
        %v1283 = vunpack.c.l.s4 1983009808
        %v1284 = vunpack.c.0.s8 %v1283
        %v1285 = vlaneseq
        %v1286 = vshrl.u32 %v1285, 7
        %v1287 = vsub.s32 %v1284, %v1286
        %v1288 = vrot.slane %v225, %v1287
        %v1290 = vunpack.c.l.s4 1983009808
        %v1291 = vunpack.c.0.s8 %v1290
        %v1292 = vlaneseq
        %v1293 = vshrl.u32 %v1292, 7
        %v1294 = vsub.s32 %v1291, %v1293
        %v1295 = vrot.slane %v1281, %v1294
        %v1296 = vcombine.high %v1288, %v1288
        %v1297 = vcombine.high %v1295, %v1295
        %v1298 = vcombine.high %v226, %v226
        %v1300 = vunpack.c.l.s4 1983009808
        %v1301 = vunpack.c.0.s8 %v1300
        %v1302 = vlaneseq
        %v1303 = vshrl.u32 %v1302, 7
        %v1304 = vsub.s32 %v1301, %v1303
        %v1305 = vrot.slane %v226, %v1304
        %v1307 = vunpack.c.l.s4 1983009808
        %v1308 = vunpack.c.0.s8 %v1307
        %v1309 = vlaneseq
        %v1310 = vshrl.u32 %v1309, 7
        %v1311 = vsub.s32 %v1308, %v1310
        %v1312 = vrot.slane %v1298, %v1311
        %v1313 = vcombine.high %v1305, %v1305
        %v1314 = vcombine.high %v1312, %v1312
        %v1315 = vcombine.high %v227, %v227
        %v1317 = vunpack.c.l.s4 1983009808
        %v1318 = vunpack.c.0.s8 %v1317
        %v1319 = vlaneseq
        %v1320 = vshrl.u32 %v1319, 7
        %v1321 = vsub.s32 %v1318, %v1320
        %v1322 = vrot.slane %v227, %v1321
        %v1324 = vunpack.c.l.s4 1983009808
        %v1325 = vunpack.c.0.s8 %v1324
        %v1326 = vlaneseq
        %v1327 = vshrl.u32 %v1326, 7
        %v1328 = vsub.s32 %v1325, %v1327
        %v1329 = vrot.slane %v1315, %v1328
        %v1330 = vcombine.high %v1322, %v1322
        %v1331 = vcombine.high %v1329, %v1329
        %v1332 = vcombine.high %v228, %v228
        %v1334 = vunpack.c.l.s4 1983009808
        %v1335 = vunpack.c.0.s8 %v1334
        %v1336 = vlaneseq
        %v1337 = vshrl.u32 %v1336, 7
        %v1338 = vsub.s32 %v1335, %v1337
        %v1339 = vrot.slane %v228, %v1338
        %v1341 = vunpack.c.l.s4 1983009808
        %v1342 = vunpack.c.0.s8 %v1341
        %v1343 = vlaneseq
        %v1344 = vshrl.u32 %v1343, 7
        %v1345 = vsub.s32 %v1342, %v1344
        %v1346 = vrot.slane %v1332, %v1345
        %v1347 = vcombine.high %v1339, %v1339
        %v1348 = vcombine.high %v1346, %v1346
        %v1349 = vcombine.high %v229, %v229
        %v1351 = vunpack.c.l.s4 1983009808
        %v1352 = vunpack.c.0.s8 %v1351
        %v1353 = vlaneseq
        %v1354 = vshrl.u32 %v1353, 7
        %v1355 = vsub.s32 %v1352, %v1354
        %v1356 = vrot.slane %v229, %v1355
        %v1358 = vunpack.c.l.s4 1983009808
        %v1359 = vunpack.c.0.s8 %v1358
        %v1360 = vlaneseq
        %v1361 = vshrl.u32 %v1360, 7
        %v1362 = vsub.s32 %v1359, %v1361
        %v1363 = vrot.slane %v1349, %v1362
        %v1364 = vcombine.high %v1356, %v1356
        %v1365 = vcombine.high %v1363, %v1363
        %v1366 = vcombine.high %v230, %v230
        %v1368 = vunpack.c.l.s4 1983009808
        %v1369 = vunpack.c.0.s8 %v1368
        %v1370 = vlaneseq
        %v1371 = vshrl.u32 %v1370, 7
        %v1372 = vsub.s32 %v1369, %v1371
        %v1373 = vrot.slane %v230, %v1372
        %v1375 = vunpack.c.l.s4 1983009808
        %v1376 = vunpack.c.0.s8 %v1375
        %v1377 = vlaneseq
        %v1378 = vshrl.u32 %v1377, 7
        %v1379 = vsub.s32 %v1376, %v1378
        %v1380 = vrot.slane %v1366, %v1379
        %v1381 = vcombine.high %v1373, %v1373
        %v1382 = vcombine.high %v1380, %v1380
        %v1383 = vcombine.high %v231, %v231
        %v1385 = vunpack.c.l.s4 1983009808
        %v1386 = vunpack.c.0.s8 %v1385
        %v1387 = vlaneseq
        %v1388 = vshrl.u32 %v1387, 7
        %v1389 = vsub.s32 %v1386, %v1388
        %v1390 = vrot.slane %v231, %v1389
        %v1392 = vunpack.c.l.s4 1983009808
        %v1393 = vunpack.c.0.s8 %v1392
        %v1394 = vlaneseq
        %v1395 = vshrl.u32 %v1394, 7
        %v1396 = vsub.s32 %v1393, %v1395
        %v1397 = vrot.slane %v1383, %v1396
        %v1398 = vcombine.high %v1390, %v1390
        %v1399 = vcombine.high %v1397, %v1397
        %v1400 = vcombine.high %v232, %v232
        %v1402 = vunpack.c.l.s4 1983009808
        %v1403 = vunpack.c.0.s8 %v1402
        %v1404 = vlaneseq
        %v1405 = vshrl.u32 %v1404, 7
        %v1406 = vsub.s32 %v1403, %v1405
        %v1407 = vrot.slane %v232, %v1406
        %v1409 = vunpack.c.l.s4 1983009808
        %v1410 = vunpack.c.0.s8 %v1409
        %v1411 = vlaneseq
        %v1412 = vshrl.u32 %v1411, 7
        %v1413 = vsub.s32 %v1410, %v1412
        %v1414 = vrot.slane %v1400, %v1413
        %v1415 = vcombine.high %v1407, %v1407
        %v1416 = vcombine.high %v1414, %v1414
        %v1417 = vcombine.high %v233, %v233
        %v1419 = vunpack.c.l.s4 1983009808
        %v1420 = vunpack.c.0.s8 %v1419
        %v1421 = vlaneseq
        %v1422 = vshrl.u32 %v1421, 7
        %v1423 = vsub.s32 %v1420, %v1422
        %v1424 = vrot.slane %v233, %v1423
        %v1426 = vunpack.c.l.s4 1983009808
        %v1427 = vunpack.c.0.s8 %v1426
        %v1428 = vlaneseq
        %v1429 = vshrl.u32 %v1428, 7
        %v1430 = vsub.s32 %v1427, %v1429
        %v1431 = vrot.slane %v1417, %v1430
        %v1432 = vcombine.high %v1424, %v1424
        %v1433 = vcombine.high %v1431, %v1431
        %v1434 = vcombine.high %v234, %v234
        %v1436 = vunpack.c.l.s4 1983009808
        %v1437 = vunpack.c.0.s8 %v1436
        %v1438 = vlaneseq
        %v1439 = vshrl.u32 %v1438, 7
        %v1440 = vsub.s32 %v1437, %v1439
        %v1441 = vrot.slane %v234, %v1440
        %v1443 = vunpack.c.l.s4 1983009808
        %v1444 = vunpack.c.0.s8 %v1443
        %v1445 = vlaneseq
        %v1446 = vshrl.u32 %v1445, 7
        %v1447 = vsub.s32 %v1444, %v1446
        %v1448 = vrot.slane %v1434, %v1447
        %v1449 = vcombine.high %v1441, %v1441
        %v1450 = vcombine.high %v1448, %v1448
        %v1451 = vcombine.high %v235, %v235
        %v1453 = vunpack.c.l.s4 1983009808
        %v1454 = vunpack.c.0.s8 %v1453
        %v1455 = vlaneseq
        %v1456 = vshrl.u32 %v1455, 7
        %v1457 = vsub.s32 %v1454, %v1456
        %v1458 = vrot.slane %v235, %v1457
        %v1460 = vunpack.c.l.s4 1983009808
        %v1461 = vunpack.c.0.s8 %v1460
        %v1462 = vlaneseq
        %v1463 = vshrl.u32 %v1462, 7
        %v1464 = vsub.s32 %v1461, %v1463
        %v1465 = vrot.slane %v1451, %v1464
        %v1466 = vcombine.high %v1458, %v1458
        %v1467 = vcombine.high %v1465, %v1465
        %v1468 = vcombine.high %v236, %v236
        %v1470 = vunpack.c.l.s4 1983009808
        %v1471 = vunpack.c.0.s8 %v1470
        %v1472 = vlaneseq
        %v1473 = vshrl.u32 %v1472, 7
        %v1474 = vsub.s32 %v1471, %v1473
        %v1475 = vrot.slane %v236, %v1474
        %v1477 = vunpack.c.l.s4 1983009808
        %v1478 = vunpack.c.0.s8 %v1477
        %v1479 = vlaneseq
        %v1480 = vshrl.u32 %v1479, 7
        %v1481 = vsub.s32 %v1478, %v1480
        %v1482 = vrot.slane %v1468, %v1481
        %v1483 = vcombine.high %v1475, %v1475
        %v1484 = vcombine.high %v1482, %v1482
        %v1485 = vcombine.high %v237, %v237
        %v1487 = vunpack.c.l.s4 1983009808
        %v1488 = vunpack.c.0.s8 %v1487
        %v1489 = vlaneseq
        %v1490 = vshrl.u32 %v1489, 7
        %v1491 = vsub.s32 %v1488, %v1490
        %v1492 = vrot.slane %v237, %v1491
        %v1494 = vunpack.c.l.s4 1983009808
        %v1495 = vunpack.c.0.s8 %v1494
        %v1496 = vlaneseq
        %v1497 = vshrl.u32 %v1496, 7
        %v1498 = vsub.s32 %v1495, %v1497
        %v1499 = vrot.slane %v1485, %v1498
        %v1500 = vcombine.high %v1492, %v1492
        %v1501 = vcombine.high %v1499, %v1499
        %v1502 = vcombine.high %v238, %v238
        %v1504 = vunpack.c.l.s4 1983009808
        %v1505 = vunpack.c.0.s8 %v1504
        %v1506 = vlaneseq
        %v1507 = vshrl.u32 %v1506, 7
        %v1508 = vsub.s32 %v1505, %v1507
        %v1509 = vrot.slane %v238, %v1508
        %v1511 = vunpack.c.l.s4 1983009808
        %v1512 = vunpack.c.0.s8 %v1511
        %v1513 = vlaneseq
        %v1514 = vshrl.u32 %v1513, 7
        %v1515 = vsub.s32 %v1512, %v1514
        %v1516 = vrot.slane %v1502, %v1515
        %v1517 = vcombine.high %v1509, %v1509
        %v1518 = vcombine.high %v1516, %v1516
        %v1519 = vcombine.high %v239, %v239
        %v1521 = vunpack.c.l.s4 1983009808
        %v1522 = vunpack.c.0.s8 %v1521
        %v1523 = vlaneseq
        %v1524 = vshrl.u32 %v1523, 7
        %v1525 = vsub.s32 %v1522, %v1524
        %v1526 = vrot.slane %v239, %v1525
        %v1528 = vunpack.c.l.s4 1983009808
        %v1529 = vunpack.c.0.s8 %v1528
        %v1530 = vlaneseq
        %v1531 = vshrl.u32 %v1530, 7
        %v1532 = vsub.s32 %v1529, %v1531
        %v1533 = vrot.slane %v1519, %v1532
        %v1534 = vcombine.high %v1526, %v1526
        %v1535 = vcombine.high %v1533, %v1533
        %v1536 = vcombine.high %v240, %v240
        %v1538 = vunpack.c.l.s4 1983009808
        %v1539 = vunpack.c.0.s8 %v1538
        %v1540 = vlaneseq
        %v1541 = vshrl.u32 %v1540, 7
        %v1542 = vsub.s32 %v1539, %v1541
        %v1543 = vrot.slane %v240, %v1542
        %v1545 = vunpack.c.l.s4 1983009808
        %v1546 = vunpack.c.0.s8 %v1545
        %v1547 = vlaneseq
        %v1548 = vshrl.u32 %v1547, 7
        %v1549 = vsub.s32 %v1546, %v1548
        %v1550 = vrot.slane %v1536, %v1549
        %v1551 = vcombine.high %v1543, %v1543
        %v1552 = vcombine.high %v1550, %v1550
        %1617 = vmatprep.subr.mxu0 0.0
        %1618 = vmatpush1.msra.mxu0 %v241
        %1619 = vmatprep.subr.mxu0 0.0
        %1620 = vmatpush1.msra.mxu0 %v242
        %1621 = vmatprep.subr.mxu0 0.0
        %1622 = vmatpush1.msra.mxu0 %v243
        %1623 = vmatprep.subr.mxu0 0.0
        %1624 = vmatpush1.msra.mxu0 %v244
        %1625 = vmatprep.subr.mxu0 0.0
        %1626 = vmatpush1.msra.mxu0 %v245
        %1627 = vmatprep.subr.mxu0 0.0
        %1628 = vmatpush1.msra.mxu0 %v246
        %1629 = vmatprep.subr.mxu0 0.0
        %1630 = vmatpush1.msra.mxu0 %v247
        %1631 = vmatprep.subr.mxu0 0.0
        %1632 = vmatpush1.msra.mxu0 %v248
        %1633 = vmatprep.subr.mxu0 0.0
        %1634 = vmatpush1.msra.mxu0 %v249
        %1635 = vmatprep.subr.mxu0 0.0
        %1636 = vmatpush1.msra.mxu0 %v250
        %1637 = vmatprep.subr.mxu0 0.0
        %1638 = vmatpush1.msra.mxu0 %v251
        %1639 = vmatprep.subr.mxu0 0.0
        %1640 = vmatpush1.msra.mxu0 %v252
        %1641 = vmatprep.subr.mxu0 0.0
        %1642 = vmatpush1.msra.mxu0 %v253
        %1643 = vmatprep.subr.mxu0 0.0
        %1644 = vmatpush1.msra.mxu0 %v254
        %1645 = vmatprep.subr.mxu0 0.0
        %1646 = vmatpush1.msra.mxu0 %v255
        %1647 = vmatprep.subr.mxu0 0.0
        %1648 = vmatpush1.msra.mxu0 %v256
        %1649 = vmatprep.subr.mxu0 0.0
        %1650 = vmatpush1.msra.mxu0 %v257
        %1651 = vmatprep.subr.mxu0 0.0
        %1652 = vmatpush1.msra.mxu0 %v258
        %1653 = vmatprep.subr.mxu0 0.0
        %1654 = vmatpush1.msra.mxu0 %v259
        %1655 = vmatprep.subr.mxu0 0.0
        %1656 = vmatpush1.msra.mxu0 %v260
        %1657 = vmatprep.subr.mxu0 0.0
        %1658 = vmatpush1.msra.mxu0 %v261
        %1659 = vmatprep.subr.mxu0 0.0
        %1660 = vmatpush1.msra.mxu0 %v262
        %1661 = vmatprep.subr.mxu0 0.0
        %1662 = vmatpush1.msra.mxu0 %v263
        %1663 = vmatprep.subr.mxu0 0.0
        %1664 = vmatpush1.msra.mxu0 %v264
        %1665 = vmatprep.subr.mxu0 0.0
        %1666 = vmatpush1.msra.mxu0 %v265
        %1667 = vmatprep.subr.mxu0 0.0
        %1668 = vmatpush1.msra.mxu0 %v266
        %1669 = vmatprep.subr.mxu0 0.0
        %1670 = vmatpush1.msra.mxu0 %v267
        %1671 = vmatprep.subr.mxu0 0.0
        %1672 = vmatpush1.msra.mxu0 %v268
        %1673 = vmatprep.subr.mxu0 0.0
        %1674 = vmatpush1.msra.mxu0 %v269
        %1675 = vmatprep.subr.mxu0 0.0
        %1676 = vmatpush1.msra.mxu0 %v270
        %1677 = vmatprep.subr.mxu0 0.0
        %1678 = vmatpush1.msra.mxu0 %v271
        %1679 = vmatprep.subr.mxu0 0.0
        %1680 = vmatpush1.msra.mxu0 %v272
        %1681 = vmatprep.mubr.f32.mxu0 %v1296
        %1682 = vmatmul.mubr.f32.gmra.mrb[0].mxu0 %v1288
        %v1683 = vpop.f32.mrb[0].mxu0
        %v1684 = vadd.f32 0.0, %v1683
        %v1685 = vpop.f32.mrb[0].mxu0
        %1686 = vdwg.mxu0
        %1687 = vmatprep.subr.mxu0 0.0
        %1688 = vmatpush1.msra.mxu0 %v273
        %1689 = vmatprep.subr.mxu0 0.0
        %1690 = vmatpush1.msra.mxu0 %v274
        %1691 = vmatprep.subr.mxu0 0.0
        %1692 = vmatpush1.msra.mxu0 %v275
        %1693 = vmatprep.subr.mxu0 0.0
        %1694 = vmatpush1.msra.mxu0 %v276
        %1695 = vmatprep.subr.mxu0 0.0
        %1696 = vmatpush1.msra.mxu0 %v277
        %1697 = vmatprep.subr.mxu0 0.0
        %1698 = vmatpush1.msra.mxu0 %v278
        %1699 = vmatprep.subr.mxu0 0.0
        %1700 = vmatpush1.msra.mxu0 %v279
        %1701 = vmatprep.subr.mxu0 0.0
        %1702 = vmatpush1.msra.mxu0 %v280
        %1703 = vmatprep.subr.mxu0 0.0
        %1704 = vmatpush1.msra.mxu0 %v281
        %1705 = vmatprep.subr.mxu0 0.0
        %1706 = vmatpush1.msra.mxu0 %v282
        %1707 = vmatprep.subr.mxu0 0.0
        %1708 = vmatpush1.msra.mxu0 %v283
        %1709 = vmatprep.subr.mxu0 0.0
        %1710 = vmatpush1.msra.mxu0 %v284
        %1711 = vmatprep.subr.mxu0 0.0
        %1712 = vmatpush1.msra.mxu0 %v285
        %1713 = vmatprep.subr.mxu0 0.0
        %1714 = vmatpush1.msra.mxu0 %v286
        %1715 = vmatprep.subr.mxu0 0.0
        %1716 = vmatpush1.msra.mxu0 %v287
        %1717 = vmatprep.subr.mxu0 0.0
        %1718 = vmatpush1.msra.mxu0 %v288
        %1719 = vmatprep.subr.mxu0 0.0
        %1720 = vmatpush1.msra.mxu0 %v289
        %1721 = vmatprep.subr.mxu0 0.0
        %1722 = vmatpush1.msra.mxu0 %v290
        %1723 = vmatprep.subr.mxu0 0.0
        %1724 = vmatpush1.msra.mxu0 %v291
        %1725 = vmatprep.subr.mxu0 0.0
        %1726 = vmatpush1.msra.mxu0 %v292
        %1727 = vmatprep.subr.mxu0 0.0
        %1728 = vmatpush1.msra.mxu0 %v293
        %1729 = vmatprep.subr.mxu0 0.0
        %1730 = vmatpush1.msra.mxu0 %v294
        %1731 = vmatprep.subr.mxu0 0.0
        %1732 = vmatpush1.msra.mxu0 %v295
        %1733 = vmatprep.subr.mxu0 0.0
        %1734 = vmatpush1.msra.mxu0 %v296
        %1735 = vmatprep.subr.mxu0 0.0
        %1736 = vmatpush1.msra.mxu0 %v297
        %1737 = vmatprep.subr.mxu0 0.0
        %1738 = vmatpush1.msra.mxu0 %v298
        %1739 = vmatprep.subr.mxu0 0.0
        %1740 = vmatpush1.msra.mxu0 %v299
        %1741 = vmatprep.subr.mxu0 0.0
        %1742 = vmatpush1.msra.mxu0 %v300
        %1743 = vmatprep.subr.mxu0 0.0
        %1744 = vmatpush1.msra.mxu0 %v301
        %1745 = vmatprep.subr.mxu0 0.0
        %1746 = vmatpush1.msra.mxu0 %v302
        %1747 = vmatprep.subr.mxu0 0.0
        %1748 = vmatpush1.msra.mxu0 %v303
        %1749 = vmatprep.subr.mxu0 0.0
        %1750 = vmatpush1.msra.mxu0 %v304
        %1751 = vmatprep.mubr.f32.mxu0 %v1297
        %1752 = vmatmul.mubr.f32.gmra.mrb[0].mxu0 %v1295
        %v1753 = vpop.f32.mrb[0].mxu0
        %v1754 = vadd.f32 %v1684, %v1753
        %v1755 = vpop.f32.mrb[0].mxu0
        %1756 = vdwg.mxu0
        %1757 = vmatprep.subr.mxu0 0.0
        %1758 = vmatpush1.msra.mxu0 %v305
        %1759 = vmatprep.subr.mxu0 0.0
        %1760 = vmatpush1.msra.mxu0 %v306
        %1761 = vmatprep.subr.mxu0 0.0
        %1762 = vmatpush1.msra.mxu0 %v307
        %1763 = vmatprep.subr.mxu0 0.0
        %1764 = vmatpush1.msra.mxu0 %v308
        %1765 = vmatprep.subr.mxu0 0.0
        %1766 = vmatpush1.msra.mxu0 %v309
        %1767 = vmatprep.subr.mxu0 0.0
        %1768 = vmatpush1.msra.mxu0 %v310
        %1769 = vmatprep.subr.mxu0 0.0
        %1770 = vmatpush1.msra.mxu0 %v311
        %1771 = vmatprep.subr.mxu0 0.0
        %1772 = vmatpush1.msra.mxu0 %v312
        %1773 = vmatprep.subr.mxu0 0.0
        %1774 = vmatpush1.msra.mxu0 %v313
        %1775 = vmatprep.subr.mxu0 0.0
        %1776 = vmatpush1.msra.mxu0 %v314
        %1777 = vmatprep.subr.mxu0 0.0
        %1778 = vmatpush1.msra.mxu0 %v315
        %1779 = vmatprep.subr.mxu0 0.0
        %1780 = vmatpush1.msra.mxu0 %v316
        %1781 = vmatprep.subr.mxu0 0.0
        %1782 = vmatpush1.msra.mxu0 %v317
        %1783 = vmatprep.subr.mxu0 0.0
        %1784 = vmatpush1.msra.mxu0 %v318
        %1785 = vmatprep.subr.mxu0 0.0
        %1786 = vmatpush1.msra.mxu0 %v319
        %1787 = vmatprep.subr.mxu0 0.0
        %1788 = vmatpush1.msra.mxu0 %v320
        %1789 = vmatprep.subr.mxu0 0.0
        %1790 = vmatpush1.msra.mxu0 %v321
        %1791 = vmatprep.subr.mxu0 0.0
        %1792 = vmatpush1.msra.mxu0 %v322
        %1793 = vmatprep.subr.mxu0 0.0
        %1794 = vmatpush1.msra.mxu0 %v323
        %1795 = vmatprep.subr.mxu0 0.0
        %1796 = vmatpush1.msra.mxu0 %v324
        %1797 = vmatprep.subr.mxu0 0.0
        %1798 = vmatpush1.msra.mxu0 %v325
        %1799 = vmatprep.subr.mxu0 0.0
        %1800 = vmatpush1.msra.mxu0 %v326
        %1801 = vmatprep.subr.mxu0 0.0
        %1802 = vmatpush1.msra.mxu0 %v327
        %1803 = vmatprep.subr.mxu0 0.0
        %1804 = vmatpush1.msra.mxu0 %v328
        %1805 = vmatprep.subr.mxu0 0.0
        %1806 = vmatpush1.msra.mxu0 %v329
        %1807 = vmatprep.subr.mxu0 0.0
        %1808 = vmatpush1.msra.mxu0 %v330
        %1809 = vmatprep.subr.mxu0 0.0
        %1810 = vmatpush1.msra.mxu0 %v331
        %1811 = vmatprep.subr.mxu0 0.0
        %1812 = vmatpush1.msra.mxu0 %v332
        %1813 = vmatprep.subr.mxu0 0.0
        %1814 = vmatpush1.msra.mxu0 %v333
        %1815 = vmatprep.subr.mxu0 0.0
        %1816 = vmatpush1.msra.mxu0 %v334
        %1817 = vmatprep.subr.mxu0 0.0
        %1818 = vmatpush1.msra.mxu0 %v335
        %1819 = vmatprep.subr.mxu0 0.0
        %1820 = vmatpush1.msra.mxu0 %v336
        %1821 = vmatprep.mubr.f32.mxu0 %v1313
        %1822 = vmatmul.mubr.f32.gmra.mrb[0].mxu0 %v1305
        %v1823 = vpop.f32.mrb[0].mxu0
        %v1824 = vadd.f32 %v1754, %v1823
        %v1825 = vpop.f32.mrb[0].mxu0
        %1826 = vdwg.mxu0
        %1827 = vmatprep.subr.mxu0 0.0
        %1828 = vmatpush1.msra.mxu0 %v337
        %1829 = vmatprep.subr.mxu0 0.0
        %1830 = vmatpush1.msra.mxu0 %v338
        %1831 = vmatprep.subr.mxu0 0.0
        %1832 = vmatpush1.msra.mxu0 %v339
        %1833 = vmatprep.subr.mxu0 0.0
        %1834 = vmatpush1.msra.mxu0 %v340
        %1835 = vmatprep.subr.mxu0 0.0
        %1836 = vmatpush1.msra.mxu0 %v341
        %1837 = vmatprep.subr.mxu0 0.0
        %1838 = vmatpush1.msra.mxu0 %v342
        %1839 = vmatprep.subr.mxu0 0.0
        %1840 = vmatpush1.msra.mxu0 %v343
        %1841 = vmatprep.subr.mxu0 0.0
        %1842 = vmatpush1.msra.mxu0 %v344
        %1843 = vmatprep.subr.mxu0 0.0
        %1844 = vmatpush1.msra.mxu0 %v345
        %1845 = vmatprep.subr.mxu0 0.0
        %1846 = vmatpush1.msra.mxu0 %v346
        %1847 = vmatprep.subr.mxu0 0.0
        %1848 = vmatpush1.msra.mxu0 %v347
        %1849 = vmatprep.subr.mxu0 0.0
        %1850 = vmatpush1.msra.mxu0 %v348
        %1851 = vmatprep.subr.mxu0 0.0
        %1852 = vmatpush1.msra.mxu0 %v349
        %1853 = vmatprep.subr.mxu0 0.0
        %1854 = vmatpush1.msra.mxu0 %v350
        %1855 = vmatprep.subr.mxu0 0.0
        %1856 = vmatpush1.msra.mxu0 %v351
        %1857 = vmatprep.subr.mxu0 0.0
        %1858 = vmatpush1.msra.mxu0 %v352
        %1859 = vmatprep.subr.mxu0 0.0
        %1860 = vmatpush1.msra.mxu0 %v353
        %1861 = vmatprep.subr.mxu0 0.0
        %1862 = vmatpush1.msra.mxu0 %v354
        %1863 = vmatprep.subr.mxu0 0.0
        %1864 = vmatpush1.msra.mxu0 %v355
        %1865 = vmatprep.subr.mxu0 0.0
        %1866 = vmatpush1.msra.mxu0 %v356
        %1867 = vmatprep.subr.mxu0 0.0
        %1868 = vmatpush1.msra.mxu0 %v357
        %1869 = vmatprep.subr.mxu0 0.0
        %1870 = vmatpush1.msra.mxu0 %v358
        %1871 = vmatprep.subr.mxu0 0.0
        %1872 = vmatpush1.msra.mxu0 %v359
        %1873 = vmatprep.subr.mxu0 0.0
        %1874 = vmatpush1.msra.mxu0 %v360
        %1875 = vmatprep.subr.mxu0 0.0
        %1876 = vmatpush1.msra.mxu0 %v361
        %1877 = vmatprep.subr.mxu0 0.0
        %1878 = vmatpush1.msra.mxu0 %v362
        %1879 = vmatprep.subr.mxu0 0.0
        %1880 = vmatpush1.msra.mxu0 %v363
        %1881 = vmatprep.subr.mxu0 0.0
        %1882 = vmatpush1.msra.mxu0 %v364
        %1883 = vmatprep.subr.mxu0 0.0
        %1884 = vmatpush1.msra.mxu0 %v365
        %1885 = vmatprep.subr.mxu0 0.0
        %1886 = vmatpush1.msra.mxu0 %v366
        %1887 = vmatprep.subr.mxu0 0.0
        %1888 = vmatpush1.msra.mxu0 %v367
        %1889 = vmatprep.subr.mxu0 0.0
        %1890 = vmatpush1.msra.mxu0 %v368
        %1891 = vmatprep.mubr.f32.mxu0 %v1314
        %1892 = vmatmul.mubr.f32.gmra.mrb[0].mxu0 %v1312
        %v1893 = vpop.f32.mrb[0].mxu0
        %v1894 = vadd.f32 %v1824, %v1893
        %v1895 = vpop.f32.mrb[0].mxu0
        %1896 = vdwg.mxu0
        %1897 = vmatprep.subr.mxu0 0.0
        %1898 = vmatpush1.msra.mxu0 %v369
        %1899 = vmatprep.subr.mxu0 0.0
        %1900 = vmatpush1.msra.mxu0 %v370
        %1901 = vmatprep.subr.mxu0 0.0
        %1902 = vmatpush1.msra.mxu0 %v371
        %1903 = vmatprep.subr.mxu0 0.0
        %1904 = vmatpush1.msra.mxu0 %v372
        %1905 = vmatprep.subr.mxu0 0.0
        %1906 = vmatpush1.msra.mxu0 %v373
        %1907 = vmatprep.subr.mxu0 0.0
        %1908 = vmatpush1.msra.mxu0 %v374
        %1909 = vmatprep.subr.mxu0 0.0
        %1910 = vmatpush1.msra.mxu0 %v375
        %1911 = vmatprep.subr.mxu0 0.0
        %1912 = vmatpush1.msra.mxu0 %v376
        %1913 = vmatprep.subr.mxu0 0.0
        %1914 = vmatpush1.msra.mxu0 %v377
        %1915 = vmatprep.subr.mxu0 0.0
        %1916 = vmatpush1.msra.mxu0 %v378
        %1917 = vmatprep.subr.mxu0 0.0
        %1918 = vmatpush1.msra.mxu0 %v379
        %1919 = vmatprep.subr.mxu0 0.0
        %1920 = vmatpush1.msra.mxu0 %v380
        %1921 = vmatprep.subr.mxu0 0.0
        %1922 = vmatpush1.msra.mxu0 %v381
        %1923 = vmatprep.subr.mxu0 0.0
        %1924 = vmatpush1.msra.mxu0 %v382
        %1925 = vmatprep.subr.mxu0 0.0
        %1926 = vmatpush1.msra.mxu0 %v383
        %1927 = vmatprep.subr.mxu0 0.0
        %1928 = vmatpush1.msra.mxu0 %v384
        %1929 = vmatprep.subr.mxu0 0.0
        %1930 = vmatpush1.msra.mxu0 %v385
        %1931 = vmatprep.subr.mxu0 0.0
        %1932 = vmatpush1.msra.mxu0 %v386
        %1933 = vmatprep.subr.mxu0 0.0
        %1934 = vmatpush1.msra.mxu0 %v387
        %1935 = vmatprep.subr.mxu0 0.0
        %1936 = vmatpush1.msra.mxu0 %v388
        %1937 = vmatprep.subr.mxu0 0.0
        %1938 = vmatpush1.msra.mxu0 %v389
        %1939 = vmatprep.subr.mxu0 0.0
        %1940 = vmatpush1.msra.mxu0 %v390
        %1941 = vmatprep.subr.mxu0 0.0
        %1942 = vmatpush1.msra.mxu0 %v391
        %1943 = vmatprep.subr.mxu0 0.0
        %1944 = vmatpush1.msra.mxu0 %v392
        %1945 = vmatprep.subr.mxu0 0.0
        %1946 = vmatpush1.msra.mxu0 %v393
        %1947 = vmatprep.subr.mxu0 0.0
        %1948 = vmatpush1.msra.mxu0 %v394
        %1949 = vmatprep.subr.mxu0 0.0
        %1950 = vmatpush1.msra.mxu0 %v395
        %1951 = vmatprep.subr.mxu0 0.0
        %1952 = vmatpush1.msra.mxu0 %v396
        %1953 = vmatprep.subr.mxu0 0.0
        %1954 = vmatpush1.msra.mxu0 %v397
        %1955 = vmatprep.subr.mxu0 0.0
        %1956 = vmatpush1.msra.mxu0 %v398
        %1957 = vmatprep.subr.mxu0 0.0
        %1958 = vmatpush1.msra.mxu0 %v399
        %1959 = vmatprep.subr.mxu0 0.0
        %1960 = vmatpush1.msra.mxu0 %v400
        %1961 = vmatprep.mubr.f32.mxu0 %v1330
        %1962 = vmatmul.mubr.f32.gmra.mrb[0].mxu0 %v1322
        %v1963 = vpop.f32.mrb[0].mxu0
        %v1964 = vadd.f32 %v1894, %v1963
        %v1965 = vpop.f32.mrb[0].mxu0
        %1966 = vdwg.mxu0
        %1967 = vmatprep.subr.mxu0 0.0
        %1968 = vmatpush1.msra.mxu0 %v401
        %1969 = vmatprep.subr.mxu0 0.0
        %1970 = vmatpush1.msra.mxu0 %v402
        %1971 = vmatprep.subr.mxu0 0.0
        %1972 = vmatpush1.msra.mxu0 %v403
        %1973 = vmatprep.subr.mxu0 0.0
        %1974 = vmatpush1.msra.mxu0 %v404
        %1975 = vmatprep.subr.mxu0 0.0
        %1976 = vmatpush1.msra.mxu0 %v405
        %1977 = vmatprep.subr.mxu0 0.0
        %1978 = vmatpush1.msra.mxu0 %v406
        %1979 = vmatprep.subr.mxu0 0.0
        %1980 = vmatpush1.msra.mxu0 %v407
        %1981 = vmatprep.subr.mxu0 0.0
        %1982 = vmatpush1.msra.mxu0 %v408
        %1983 = vmatprep.subr.mxu0 0.0
        %1984 = vmatpush1.msra.mxu0 %v409
        %1985 = vmatprep.subr.mxu0 0.0
        %1986 = vmatpush1.msra.mxu0 %v410
        %1987 = vmatprep.subr.mxu0 0.0
        %1988 = vmatpush1.msra.mxu0 %v411
        %1989 = vmatprep.subr.mxu0 0.0
        %1990 = vmatpush1.msra.mxu0 %v412
        %1991 = vmatprep.subr.mxu0 0.0
        %1992 = vmatpush1.msra.mxu0 %v413
        %1993 = vmatprep.subr.mxu0 0.0
        %1994 = vmatpush1.msra.mxu0 %v414
        %1995 = vmatprep.subr.mxu0 0.0
        %1996 = vmatpush1.msra.mxu0 %v415
        %1997 = vmatprep.subr.mxu0 0.0
        %1998 = vmatpush1.msra.mxu0 %v416
        %1999 = vmatprep.subr.mxu0 0.0
        %2000 = vmatpush1.msra.mxu0 %v417
        %2001 = vmatprep.subr.mxu0 0.0
        %2002 = vmatpush1.msra.mxu0 %v418
        %2003 = vmatprep.subr.mxu0 0.0
        %2004 = vmatpush1.msra.mxu0 %v419
        %2005 = vmatprep.subr.mxu0 0.0
        %2006 = vmatpush1.msra.mxu0 %v420
        %2007 = vmatprep.subr.mxu0 0.0
        %2008 = vmatpush1.msra.mxu0 %v421
        %2009 = vmatprep.subr.mxu0 0.0
        %2010 = vmatpush1.msra.mxu0 %v422
        %2011 = vmatprep.subr.mxu0 0.0
        %2012 = vmatpush1.msra.mxu0 %v423
        %2013 = vmatprep.subr.mxu0 0.0
        %2014 = vmatpush1.msra.mxu0 %v424
        %2015 = vmatprep.subr.mxu0 0.0
        %2016 = vmatpush1.msra.mxu0 %v425
        %2017 = vmatprep.subr.mxu0 0.0
        %2018 = vmatpush1.msra.mxu0 %v426
        %2019 = vmatprep.subr.mxu0 0.0
        %2020 = vmatpush1.msra.mxu0 %v427
        %2021 = vmatprep.subr.mxu0 0.0
        %2022 = vmatpush1.msra.mxu0 %v428
        %2023 = vmatprep.subr.mxu0 0.0
        %2024 = vmatpush1.msra.mxu0 %v429
        %2025 = vmatprep.subr.mxu0 0.0
        %2026 = vmatpush1.msra.mxu0 %v430
        %2027 = vmatprep.subr.mxu0 0.0
        %2028 = vmatpush1.msra.mxu0 %v431
        %2029 = vmatprep.subr.mxu0 0.0
        %2030 = vmatpush1.msra.mxu0 %v432
        %2031 = vmatprep.mubr.f32.mxu0 %v1331
        %2032 = vmatmul.mubr.f32.gmra.mrb[0].mxu0 %v1329
        %v2033 = vpop.f32.mrb[0].mxu0
        %v2034 = vadd.f32 %v1964, %v2033
        %v2035 = vpop.f32.mrb[0].mxu0
        %2036 = vdwg.mxu0
        %2037 = vmatprep.subr.mxu0 0.0
        %2038 = vmatpush1.msra.mxu0 %v433
        %2039 = vmatprep.subr.mxu0 0.0
        %2040 = vmatpush1.msra.mxu0 %v434
        %2041 = vmatprep.subr.mxu0 0.0
        %2042 = vmatpush1.msra.mxu0 %v435
        %2043 = vmatprep.subr.mxu0 0.0
        %2044 = vmatpush1.msra.mxu0 %v436
        %2045 = vmatprep.subr.mxu0 0.0
        %2046 = vmatpush1.msra.mxu0 %v437
        %2047 = vmatprep.subr.mxu0 0.0
        %2048 = vmatpush1.msra.mxu0 %v438
        %2049 = vmatprep.subr.mxu0 0.0
        %2050 = vmatpush1.msra.mxu0 %v439
        %2051 = vmatprep.subr.mxu0 0.0
        %2052 = vmatpush1.msra.mxu0 %v440
        %2053 = vmatprep.subr.mxu0 0.0
        %2054 = vmatpush1.msra.mxu0 %v441
        %2055 = vmatprep.subr.mxu0 0.0
        %2056 = vmatpush1.msra.mxu0 %v442
        %2057 = vmatprep.subr.mxu0 0.0
        %2058 = vmatpush1.msra.mxu0 %v443
        %2059 = vmatprep.subr.mxu0 0.0
        %2060 = vmatpush1.msra.mxu0 %v444
        %2061 = vmatprep.subr.mxu0 0.0
        %2062 = vmatpush1.msra.mxu0 %v445
        %2063 = vmatprep.subr.mxu0 0.0
        %2064 = vmatpush1.msra.mxu0 %v446
        %2065 = vmatprep.subr.mxu0 0.0
        %2066 = vmatpush1.msra.mxu0 %v447
        %2067 = vmatprep.subr.mxu0 0.0
        %2068 = vmatpush1.msra.mxu0 %v448
        %2069 = vmatprep.subr.mxu0 0.0
        %2070 = vmatpush1.msra.mxu0 %v449
        %2071 = vmatprep.subr.mxu0 0.0
        %2072 = vmatpush1.msra.mxu0 %v450
        %2073 = vmatprep.subr.mxu0 0.0
        %2074 = vmatpush1.msra.mxu0 %v451
        %2075 = vmatprep.subr.mxu0 0.0
        %2076 = vmatpush1.msra.mxu0 %v452
        %2077 = vmatprep.subr.mxu0 0.0
        %2078 = vmatpush1.msra.mxu0 %v453
        %2079 = vmatprep.subr.mxu0 0.0
        %2080 = vmatpush1.msra.mxu0 %v454
        %2081 = vmatprep.subr.mxu0 0.0
        %2082 = vmatpush1.msra.mxu0 %v455
        %2083 = vmatprep.subr.mxu0 0.0
        %2084 = vmatpush1.msra.mxu0 %v456
        %2085 = vmatprep.subr.mxu0 0.0
        %2086 = vmatpush1.msra.mxu0 %v457
        %2087 = vmatprep.subr.mxu0 0.0
        %2088 = vmatpush1.msra.mxu0 %v458
        %2089 = vmatprep.subr.mxu0 0.0
        %2090 = vmatpush1.msra.mxu0 %v459
        %2091 = vmatprep.subr.mxu0 0.0
        %2092 = vmatpush1.msra.mxu0 %v460
        %2093 = vmatprep.subr.mxu0 0.0
        %2094 = vmatpush1.msra.mxu0 %v461
        %2095 = vmatprep.subr.mxu0 0.0
        %2096 = vmatpush1.msra.mxu0 %v462
        %2097 = vmatprep.subr.mxu0 0.0
        %2098 = vmatpush1.msra.mxu0 %v463
        %2099 = vmatprep.subr.mxu0 0.0
        %2100 = vmatpush1.msra.mxu0 %v464
        %2101 = vmatprep.mubr.f32.mxu0 %v1347
        %2102 = vmatmul.mubr.f32.gmra.mrb[0].mxu0 %v1339
        %v2103 = vpop.f32.mrb[0].mxu0
        %v2104 = vadd.f32 %v2034, %v2103
        %v2105 = vpop.f32.mrb[0].mxu0
        %2106 = vdwg.mxu0
        %2107 = vmatprep.subr.mxu0 0.0
        %2108 = vmatpush1.msra.mxu0 %v465
        %2109 = vmatprep.subr.mxu0 0.0
        %2110 = vmatpush1.msra.mxu0 %v466
        %2111 = vmatprep.subr.mxu0 0.0
        %2112 = vmatpush1.msra.mxu0 %v467
        %2113 = vmatprep.subr.mxu0 0.0
        %2114 = vmatpush1.msra.mxu0 %v468
        %2115 = vmatprep.subr.mxu0 0.0
        %2116 = vmatpush1.msra.mxu0 %v469
        %2117 = vmatprep.subr.mxu0 0.0
        %2118 = vmatpush1.msra.mxu0 %v470
        %2119 = vmatprep.subr.mxu0 0.0
        %2120 = vmatpush1.msra.mxu0 %v471
        %2121 = vmatprep.subr.mxu0 0.0
        %2122 = vmatpush1.msra.mxu0 %v472
        %2123 = vmatprep.subr.mxu0 0.0
        %2124 = vmatpush1.msra.mxu0 %v473
        %2125 = vmatprep.subr.mxu0 0.0
        %2126 = vmatpush1.msra.mxu0 %v474
        %2127 = vmatprep.subr.mxu0 0.0
        %2128 = vmatpush1.msra.mxu0 %v475
        %2129 = vmatprep.subr.mxu0 0.0
        %2130 = vmatpush1.msra.mxu0 %v476
        %2131 = vmatprep.subr.mxu0 0.0
        %2132 = vmatpush1.msra.mxu0 %v477
        %2133 = vmatprep.subr.mxu0 0.0
        %2134 = vmatpush1.msra.mxu0 %v478
        %2135 = vmatprep.subr.mxu0 0.0
        %2136 = vmatpush1.msra.mxu0 %v479
        %2137 = vmatprep.subr.mxu0 0.0
        %2138 = vmatpush1.msra.mxu0 %v480
        %2139 = vmatprep.subr.mxu0 0.0
        %2140 = vmatpush1.msra.mxu0 %v481
        %2141 = vmatprep.subr.mxu0 0.0
        %2142 = vmatpush1.msra.mxu0 %v482
        %2143 = vmatprep.subr.mxu0 0.0
        %2144 = vmatpush1.msra.mxu0 %v483
        %2145 = vmatprep.subr.mxu0 0.0
        %2146 = vmatpush1.msra.mxu0 %v484
        %2147 = vmatprep.subr.mxu0 0.0
        %2148 = vmatpush1.msra.mxu0 %v485
        %2149 = vmatprep.subr.mxu0 0.0
        %2150 = vmatpush1.msra.mxu0 %v486
        %2151 = vmatprep.subr.mxu0 0.0
        %2152 = vmatpush1.msra.mxu0 %v487
        %2153 = vmatprep.subr.mxu0 0.0
        %2154 = vmatpush1.msra.mxu0 %v488
        %2155 = vmatprep.subr.mxu0 0.0
        %2156 = vmatpush1.msra.mxu0 %v489
        %2157 = vmatprep.subr.mxu0 0.0
        %2158 = vmatpush1.msra.mxu0 %v490
        %2159 = vmatprep.subr.mxu0 0.0
        %2160 = vmatpush1.msra.mxu0 %v491
        %2161 = vmatprep.subr.mxu0 0.0
        %2162 = vmatpush1.msra.mxu0 %v492
        %2163 = vmatprep.subr.mxu0 0.0
        %2164 = vmatpush1.msra.mxu0 %v493
        %2165 = vmatprep.subr.mxu0 0.0
        %2166 = vmatpush1.msra.mxu0 %v494
        %2167 = vmatprep.subr.mxu0 0.0
        %2168 = vmatpush1.msra.mxu0 %v495
        %2169 = vmatprep.subr.mxu0 0.0
        %2170 = vmatpush1.msra.mxu0 %v496
        %2171 = vmatprep.mubr.f32.mxu0 %v1348
        %2172 = vmatmul.mubr.f32.gmra.mrb[0].mxu0 %v1346
        %v2173 = vpop.f32.mrb[0].mxu0
        %v2174 = vadd.f32 %v2104, %v2173
        %v2175 = vpop.f32.mrb[0].mxu0
        %2176 = vdwg.mxu0
        %2177 = vmatprep.subr.mxu0 0.0
        %2178 = vmatpush1.msra.mxu0 %v497
        %2179 = vmatprep.subr.mxu0 0.0
        %2180 = vmatpush1.msra.mxu0 %v498
        %2181 = vmatprep.subr.mxu0 0.0
        %2182 = vmatpush1.msra.mxu0 %v499
        %2183 = vmatprep.subr.mxu0 0.0
        %2184 = vmatpush1.msra.mxu0 %v500
        %2185 = vmatprep.subr.mxu0 0.0
        %2186 = vmatpush1.msra.mxu0 %v501
        %2187 = vmatprep.subr.mxu0 0.0
        %2188 = vmatpush1.msra.mxu0 %v502
        %2189 = vmatprep.subr.mxu0 0.0
        %2190 = vmatpush1.msra.mxu0 %v503
        %2191 = vmatprep.subr.mxu0 0.0
        %2192 = vmatpush1.msra.mxu0 %v504
        %2193 = vmatprep.subr.mxu0 0.0
        %2194 = vmatpush1.msra.mxu0 %v505
        %2195 = vmatprep.subr.mxu0 0.0
        %2196 = vmatpush1.msra.mxu0 %v506
        %2197 = vmatprep.subr.mxu0 0.0
        %2198 = vmatpush1.msra.mxu0 %v507
        %2199 = vmatprep.subr.mxu0 0.0
        %2200 = vmatpush1.msra.mxu0 %v508
        %2201 = vmatprep.subr.mxu0 0.0
        %2202 = vmatpush1.msra.mxu0 %v509
        %2203 = vmatprep.subr.mxu0 0.0
        %2204 = vmatpush1.msra.mxu0 %v510
        %2205 = vmatprep.subr.mxu0 0.0
        %2206 = vmatpush1.msra.mxu0 %v511
        %2207 = vmatprep.subr.mxu0 0.0
        %2208 = vmatpush1.msra.mxu0 %v512
        %2209 = vmatprep.subr.mxu0 0.0
        %2210 = vmatpush1.msra.mxu0 %v513
        %2211 = vmatprep.subr.mxu0 0.0
        %2212 = vmatpush1.msra.mxu0 %v514
        %2213 = vmatprep.subr.mxu0 0.0
        %2214 = vmatpush1.msra.mxu0 %v515
        %2215 = vmatprep.subr.mxu0 0.0
        %2216 = vmatpush1.msra.mxu0 %v516
        %2217 = vmatprep.subr.mxu0 0.0
        %2218 = vmatpush1.msra.mxu0 %v517
        %2219 = vmatprep.subr.mxu0 0.0
        %2220 = vmatpush1.msra.mxu0 %v518
        %2221 = vmatprep.subr.mxu0 0.0
        %2222 = vmatpush1.msra.mxu0 %v519
        %2223 = vmatprep.subr.mxu0 0.0
        %2224 = vmatpush1.msra.mxu0 %v520
        %2225 = vmatprep.subr.mxu0 0.0
        %2226 = vmatpush1.msra.mxu0 %v521
        %2227 = vmatprep.subr.mxu0 0.0
        %2228 = vmatpush1.msra.mxu0 %v522
        %2229 = vmatprep.subr.mxu0 0.0
        %2230 = vmatpush1.msra.mxu0 %v523
        %2231 = vmatprep.subr.mxu0 0.0
        %2232 = vmatpush1.msra.mxu0 %v524
        %2233 = vmatprep.subr.mxu0 0.0
        %2234 = vmatpush1.msra.mxu0 %v525
        %2235 = vmatprep.subr.mxu0 0.0
        %2236 = vmatpush1.msra.mxu0 %v526
        %2237 = vmatprep.subr.mxu0 0.0
        %2238 = vmatpush1.msra.mxu0 %v527
        %2239 = vmatprep.subr.mxu0 0.0
        %2240 = vmatpush1.msra.mxu0 %v528
        %2241 = vmatprep.mubr.f32.mxu0 %v1364
        %2242 = vmatmul.mubr.f32.gmra.mrb[0].mxu0 %v1356
        %v2243 = vpop.f32.mrb[0].mxu0
        %v2244 = vadd.f32 %v2174, %v2243
        %v2245 = vpop.f32.mrb[0].mxu0
        %2246 = vdwg.mxu0
        %2247 = vmatprep.subr.mxu0 0.0
        %2248 = vmatpush1.msra.mxu0 %v529
        %2249 = vmatprep.subr.mxu0 0.0
        %2250 = vmatpush1.msra.mxu0 %v530
        %2251 = vmatprep.subr.mxu0 0.0
        %2252 = vmatpush1.msra.mxu0 %v531
        %2253 = vmatprep.subr.mxu0 0.0
        %2254 = vmatpush1.msra.mxu0 %v532
        %2255 = vmatprep.subr.mxu0 0.0
        %2256 = vmatpush1.msra.mxu0 %v533
        %2257 = vmatprep.subr.mxu0 0.0
        %2258 = vmatpush1.msra.mxu0 %v534
        %2259 = vmatprep.subr.mxu0 0.0
        %2260 = vmatpush1.msra.mxu0 %v535
        %2261 = vmatprep.subr.mxu0 0.0
        %2262 = vmatpush1.msra.mxu0 %v536
        %2263 = vmatprep.subr.mxu0 0.0
        %2264 = vmatpush1.msra.mxu0 %v537
        %2265 = vmatprep.subr.mxu0 0.0
        %2266 = vmatpush1.msra.mxu0 %v538
        %2267 = vmatprep.subr.mxu0 0.0
        %2268 = vmatpush1.msra.mxu0 %v539
        %2269 = vmatprep.subr.mxu0 0.0
        %2270 = vmatpush1.msra.mxu0 %v540
        %2271 = vmatprep.subr.mxu0 0.0
        %2272 = vmatpush1.msra.mxu0 %v541
        %2273 = vmatprep.subr.mxu0 0.0
        %2274 = vmatpush1.msra.mxu0 %v542
        %2275 = vmatprep.subr.mxu0 0.0
        %2276 = vmatpush1.msra.mxu0 %v543
        %2277 = vmatprep.subr.mxu0 0.0
        %2278 = vmatpush1.msra.mxu0 %v544
        %2279 = vmatprep.subr.mxu0 0.0
        %2280 = vmatpush1.msra.mxu0 %v545
        %2281 = vmatprep.subr.mxu0 0.0
        %2282 = vmatpush1.msra.mxu0 %v546
        %2283 = vmatprep.subr.mxu0 0.0
        %2284 = vmatpush1.msra.mxu0 %v547
        %2285 = vmatprep.subr.mxu0 0.0
        %2286 = vmatpush1.msra.mxu0 %v548
        %2287 = vmatprep.subr.mxu0 0.0
        %2288 = vmatpush1.msra.mxu0 %v549
        %2289 = vmatprep.subr.mxu0 0.0
        %2290 = vmatpush1.msra.mxu0 %v550
        %2291 = vmatprep.subr.mxu0 0.0
        %2292 = vmatpush1.msra.mxu0 %v551
        %2293 = vmatprep.subr.mxu0 0.0
        %2294 = vmatpush1.msra.mxu0 %v552
        %2295 = vmatprep.subr.mxu0 0.0
        %2296 = vmatpush1.msra.mxu0 %v553
        %2297 = vmatprep.subr.mxu0 0.0
        %2298 = vmatpush1.msra.mxu0 %v554
        %2299 = vmatprep.subr.mxu0 0.0
        %2300 = vmatpush1.msra.mxu0 %v555
        %2301 = vmatprep.subr.mxu0 0.0
        %2302 = vmatpush1.msra.mxu0 %v556
        %2303 = vmatprep.subr.mxu0 0.0
        %2304 = vmatpush1.msra.mxu0 %v557
        %2305 = vmatprep.subr.mxu0 0.0
        %2306 = vmatpush1.msra.mxu0 %v558
        %2307 = vmatprep.subr.mxu0 0.0
        %2308 = vmatpush1.msra.mxu0 %v559
        %2309 = vmatprep.subr.mxu0 0.0
        %2310 = vmatpush1.msra.mxu0 %v560
        %2311 = vmatprep.mubr.f32.mxu0 %v1365
        %2312 = vmatmul.mubr.f32.gmra.mrb[0].mxu0 %v1363
        %v2313 = vpop.f32.mrb[0].mxu0
        %v2314 = vadd.f32 %v2244, %v2313
        %v2315 = vpop.f32.mrb[0].mxu0
        %2316 = vdwg.mxu0
        %2317 = vmatprep.subr.mxu0 0.0
        %2318 = vmatpush1.msra.mxu0 %v561
        %2319 = vmatprep.subr.mxu0 0.0
        %2320 = vmatpush1.msra.mxu0 %v562
        %2321 = vmatprep.subr.mxu0 0.0
        %2322 = vmatpush1.msra.mxu0 %v563
        %2323 = vmatprep.subr.mxu0 0.0
        %2324 = vmatpush1.msra.mxu0 %v564
        %2325 = vmatprep.subr.mxu0 0.0
        %2326 = vmatpush1.msra.mxu0 %v565
        %2327 = vmatprep.subr.mxu0 0.0
        %2328 = vmatpush1.msra.mxu0 %v566
        %2329 = vmatprep.subr.mxu0 0.0
        %2330 = vmatpush1.msra.mxu0 %v567
        %2331 = vmatprep.subr.mxu0 0.0
        %2332 = vmatpush1.msra.mxu0 %v568
        %2333 = vmatprep.subr.mxu0 0.0
        %2334 = vmatpush1.msra.mxu0 %v569
        %2335 = vmatprep.subr.mxu0 0.0
        %2336 = vmatpush1.msra.mxu0 %v570
        %2337 = vmatprep.subr.mxu0 0.0
        %2338 = vmatpush1.msra.mxu0 %v571
        %2339 = vmatprep.subr.mxu0 0.0
        %2340 = vmatpush1.msra.mxu0 %v572
        %2341 = vmatprep.subr.mxu0 0.0
        %2342 = vmatpush1.msra.mxu0 %v573
        %2343 = vmatprep.subr.mxu0 0.0
        %2344 = vmatpush1.msra.mxu0 %v574
        %2345 = vmatprep.subr.mxu0 0.0
        %2346 = vmatpush1.msra.mxu0 %v575
        %2347 = vmatprep.subr.mxu0 0.0
        %2348 = vmatpush1.msra.mxu0 %v576
        %2349 = vmatprep.subr.mxu0 0.0
        %2350 = vmatpush1.msra.mxu0 %v577
        %2351 = vmatprep.subr.mxu0 0.0
        %2352 = vmatpush1.msra.mxu0 %v578
        %2353 = vmatprep.subr.mxu0 0.0
        %2354 = vmatpush1.msra.mxu0 %v579
        %2355 = vmatprep.subr.mxu0 0.0
        %2356 = vmatpush1.msra.mxu0 %v580
        %2357 = vmatprep.subr.mxu0 0.0
        %2358 = vmatpush1.msra.mxu0 %v581
        %2359 = vmatprep.subr.mxu0 0.0
        %2360 = vmatpush1.msra.mxu0 %v582
        %2361 = vmatprep.subr.mxu0 0.0
        %2362 = vmatpush1.msra.mxu0 %v583
        %2363 = vmatprep.subr.mxu0 0.0
        %2364 = vmatpush1.msra.mxu0 %v584
        %2365 = vmatprep.subr.mxu0 0.0
        %2366 = vmatpush1.msra.mxu0 %v585
        %2367 = vmatprep.subr.mxu0 0.0
        %2368 = vmatpush1.msra.mxu0 %v586
        %2369 = vmatprep.subr.mxu0 0.0
        %2370 = vmatpush1.msra.mxu0 %v587
        %2371 = vmatprep.subr.mxu0 0.0
        %2372 = vmatpush1.msra.mxu0 %v588
        %2373 = vmatprep.subr.mxu0 0.0
        %2374 = vmatpush1.msra.mxu0 %v589
        %2375 = vmatprep.subr.mxu0 0.0
        %2376 = vmatpush1.msra.mxu0 %v590
        %2377 = vmatprep.subr.mxu0 0.0
        %2378 = vmatpush1.msra.mxu0 %v591
        %2379 = vmatprep.subr.mxu0 0.0
        %2380 = vmatpush1.msra.mxu0 %v592
        %2381 = vmatprep.mubr.f32.mxu0 %v1381
        %2382 = vmatmul.mubr.f32.gmra.mrb[0].mxu0 %v1373
        %v2383 = vpop.f32.mrb[0].mxu0
        %v2384 = vadd.f32 %v2314, %v2383
        %v2385 = vpop.f32.mrb[0].mxu0
        %2386 = vdwg.mxu0
        %2387 = vmatprep.subr.mxu0 0.0
        %2388 = vmatpush1.msra.mxu0 %v593
        %2389 = vmatprep.subr.mxu0 0.0
        %2390 = vmatpush1.msra.mxu0 %v594
        %2391 = vmatprep.subr.mxu0 0.0
        %2392 = vmatpush1.msra.mxu0 %v595
        %2393 = vmatprep.subr.mxu0 0.0
        %2394 = vmatpush1.msra.mxu0 %v596
        %2395 = vmatprep.subr.mxu0 0.0
        %2396 = vmatpush1.msra.mxu0 %v597
        %2397 = vmatprep.subr.mxu0 0.0
        %2398 = vmatpush1.msra.mxu0 %v598
        %2399 = vmatprep.subr.mxu0 0.0
        %2400 = vmatpush1.msra.mxu0 %v599
        %2401 = vmatprep.subr.mxu0 0.0
        %2402 = vmatpush1.msra.mxu0 %v600
        %2403 = vmatprep.subr.mxu0 0.0
        %2404 = vmatpush1.msra.mxu0 %v601
        %2405 = vmatprep.subr.mxu0 0.0
        %2406 = vmatpush1.msra.mxu0 %v602
        %2407 = vmatprep.subr.mxu0 0.0
        %2408 = vmatpush1.msra.mxu0 %v603
        %2409 = vmatprep.subr.mxu0 0.0
        %2410 = vmatpush1.msra.mxu0 %v604
        %2411 = vmatprep.subr.mxu0 0.0
        %2412 = vmatpush1.msra.mxu0 %v605
        %2413 = vmatprep.subr.mxu0 0.0
        %2414 = vmatpush1.msra.mxu0 %v606
        %2415 = vmatprep.subr.mxu0 0.0
        %2416 = vmatpush1.msra.mxu0 %v607
        %2417 = vmatprep.subr.mxu0 0.0
        %2418 = vmatpush1.msra.mxu0 %v608
        %2419 = vmatprep.subr.mxu0 0.0
        %2420 = vmatpush1.msra.mxu0 %v609
        %2421 = vmatprep.subr.mxu0 0.0
        %2422 = vmatpush1.msra.mxu0 %v610
        %2423 = vmatprep.subr.mxu0 0.0
        %2424 = vmatpush1.msra.mxu0 %v611
        %2425 = vmatprep.subr.mxu0 0.0
        %2426 = vmatpush1.msra.mxu0 %v612
        %2427 = vmatprep.subr.mxu0 0.0
        %2428 = vmatpush1.msra.mxu0 %v613
        %2429 = vmatprep.subr.mxu0 0.0
        %2430 = vmatpush1.msra.mxu0 %v614
        %2431 = vmatprep.subr.mxu0 0.0
        %2432 = vmatpush1.msra.mxu0 %v615
        %2433 = vmatprep.subr.mxu0 0.0
        %2434 = vmatpush1.msra.mxu0 %v616
        %2435 = vmatprep.subr.mxu0 0.0
        %2436 = vmatpush1.msra.mxu0 %v617
        %2437 = vmatprep.subr.mxu0 0.0
        %2438 = vmatpush1.msra.mxu0 %v618
        %2439 = vmatprep.subr.mxu0 0.0
        %2440 = vmatpush1.msra.mxu0 %v619
        %2441 = vmatprep.subr.mxu0 0.0
        %2442 = vmatpush1.msra.mxu0 %v620
        %2443 = vmatprep.subr.mxu0 0.0
        %2444 = vmatpush1.msra.mxu0 %v621
        %2445 = vmatprep.subr.mxu0 0.0
        %2446 = vmatpush1.msra.mxu0 %v622
        %2447 = vmatprep.subr.mxu0 0.0
        %2448 = vmatpush1.msra.mxu0 %v623
        %2449 = vmatprep.subr.mxu0 0.0
        %2450 = vmatpush1.msra.mxu0 %v624
        %2451 = vmatprep.mubr.f32.mxu0 %v1382
        %2452 = vmatmul.mubr.f32.gmra.mrb[0].mxu0 %v1380
        %v2453 = vpop.f32.mrb[0].mxu0
        %v2454 = vadd.f32 %v2384, %v2453
        %v2455 = vpop.f32.mrb[0].mxu0
        %2456 = vdwg.mxu0
        %2457 = vmatprep.subr.mxu0 0.0
        %2458 = vmatpush1.msra.mxu0 %v625
        %2459 = vmatprep.subr.mxu0 0.0
        %2460 = vmatpush1.msra.mxu0 %v626
        %2461 = vmatprep.subr.mxu0 0.0
        %2462 = vmatpush1.msra.mxu0 %v627
        %2463 = vmatprep.subr.mxu0 0.0
        %2464 = vmatpush1.msra.mxu0 %v628
        %2465 = vmatprep.subr.mxu0 0.0
        %2466 = vmatpush1.msra.mxu0 %v629
        %2467 = vmatprep.subr.mxu0 0.0
        %2468 = vmatpush1.msra.mxu0 %v630
        %2469 = vmatprep.subr.mxu0 0.0
        %2470 = vmatpush1.msra.mxu0 %v631
        %2471 = vmatprep.subr.mxu0 0.0
        %2472 = vmatpush1.msra.mxu0 %v632
        %2473 = vmatprep.subr.mxu0 0.0
        %2474 = vmatpush1.msra.mxu0 %v633
        %2475 = vmatprep.subr.mxu0 0.0
        %2476 = vmatpush1.msra.mxu0 %v634
        %2477 = vmatprep.subr.mxu0 0.0
        %2478 = vmatpush1.msra.mxu0 %v635
        %2479 = vmatprep.subr.mxu0 0.0
        %2480 = vmatpush1.msra.mxu0 %v636
        %2481 = vmatprep.subr.mxu0 0.0
        %2482 = vmatpush1.msra.mxu0 %v637
        %2483 = vmatprep.subr.mxu0 0.0
        %2484 = vmatpush1.msra.mxu0 %v638
        %2485 = vmatprep.subr.mxu0 0.0
        %2486 = vmatpush1.msra.mxu0 %v639
        %2487 = vmatprep.subr.mxu0 0.0
        %2488 = vmatpush1.msra.mxu0 %v640
        %2489 = vmatprep.subr.mxu0 0.0
        %2490 = vmatpush1.msra.mxu0 %v641
        %2491 = vmatprep.subr.mxu0 0.0
        %2492 = vmatpush1.msra.mxu0 %v642
        %2493 = vmatprep.subr.mxu0 0.0
        %2494 = vmatpush1.msra.mxu0 %v643
        %2495 = vmatprep.subr.mxu0 0.0
        %2496 = vmatpush1.msra.mxu0 %v644
        %2497 = vmatprep.subr.mxu0 0.0
        %2498 = vmatpush1.msra.mxu0 %v645
        %2499 = vmatprep.subr.mxu0 0.0
        %2500 = vmatpush1.msra.mxu0 %v646
        %2501 = vmatprep.subr.mxu0 0.0
        %2502 = vmatpush1.msra.mxu0 %v647
        %2503 = vmatprep.subr.mxu0 0.0
        %2504 = vmatpush1.msra.mxu0 %v648
        %2505 = vmatprep.subr.mxu0 0.0
        %2506 = vmatpush1.msra.mxu0 %v649
        %2507 = vmatprep.subr.mxu0 0.0
        %2508 = vmatpush1.msra.mxu0 %v650
        %2509 = vmatprep.subr.mxu0 0.0
        %2510 = vmatpush1.msra.mxu0 %v651
        %2511 = vmatprep.subr.mxu0 0.0
        %2512 = vmatpush1.msra.mxu0 %v652
        %2513 = vmatprep.subr.mxu0 0.0
        %2514 = vmatpush1.msra.mxu0 %v653
        %2515 = vmatprep.subr.mxu0 0.0
        %2516 = vmatpush1.msra.mxu0 %v654
        %2517 = vmatprep.subr.mxu0 0.0
        %2518 = vmatpush1.msra.mxu0 %v655
        %2519 = vmatprep.subr.mxu0 0.0
        %2520 = vmatpush1.msra.mxu0 %v656
        %2521 = vmatprep.mubr.f32.mxu0 %v1398
        %2522 = vmatmul.mubr.f32.gmra.mrb[0].mxu0 %v1390
        %v2523 = vpop.f32.mrb[0].mxu0
        %v2524 = vadd.f32 %v2454, %v2523
        %v2525 = vpop.f32.mrb[0].mxu0
        %2526 = vdwg.mxu0
        %2527 = vmatprep.subr.mxu0 0.0
        %2528 = vmatpush1.msra.mxu0 %v657
        %2529 = vmatprep.subr.mxu0 0.0
        %2530 = vmatpush1.msra.mxu0 %v658
        %2531 = vmatprep.subr.mxu0 0.0
        %2532 = vmatpush1.msra.mxu0 %v659
        %2533 = vmatprep.subr.mxu0 0.0
        %2534 = vmatpush1.msra.mxu0 %v660
        %2535 = vmatprep.subr.mxu0 0.0
        %2536 = vmatpush1.msra.mxu0 %v661
        %2537 = vmatprep.subr.mxu0 0.0
        %2538 = vmatpush1.msra.mxu0 %v662
        %2539 = vmatprep.subr.mxu0 0.0
        %2540 = vmatpush1.msra.mxu0 %v663
        %2541 = vmatprep.subr.mxu0 0.0
        %2542 = vmatpush1.msra.mxu0 %v664
        %2543 = vmatprep.subr.mxu0 0.0
        %2544 = vmatpush1.msra.mxu0 %v665
        %2545 = vmatprep.subr.mxu0 0.0
        %2546 = vmatpush1.msra.mxu0 %v666
        %2547 = vmatprep.subr.mxu0 0.0
        %2548 = vmatpush1.msra.mxu0 %v667
        %2549 = vmatprep.subr.mxu0 0.0
        %2550 = vmatpush1.msra.mxu0 %v668
        %2551 = vmatprep.subr.mxu0 0.0
        %2552 = vmatpush1.msra.mxu0 %v669
        %2553 = vmatprep.subr.mxu0 0.0
        %2554 = vmatpush1.msra.mxu0 %v670
        %2555 = vmatprep.subr.mxu0 0.0
        %2556 = vmatpush1.msra.mxu0 %v671
        %2557 = vmatprep.subr.mxu0 0.0
        %2558 = vmatpush1.msra.mxu0 %v672
        %2559 = vmatprep.subr.mxu0 0.0
        %2560 = vmatpush1.msra.mxu0 %v673
        %2561 = vmatprep.subr.mxu0 0.0
        %2562 = vmatpush1.msra.mxu0 %v674
        %2563 = vmatprep.subr.mxu0 0.0
        %2564 = vmatpush1.msra.mxu0 %v675
        %2565 = vmatprep.subr.mxu0 0.0
        %2566 = vmatpush1.msra.mxu0 %v676
        %2567 = vmatprep.subr.mxu0 0.0
        %2568 = vmatpush1.msra.mxu0 %v677
        %2569 = vmatprep.subr.mxu0 0.0
        %2570 = vmatpush1.msra.mxu0 %v678
        %2571 = vmatprep.subr.mxu0 0.0
        %2572 = vmatpush1.msra.mxu0 %v679
        %2573 = vmatprep.subr.mxu0 0.0
        %2574 = vmatpush1.msra.mxu0 %v680
        %2575 = vmatprep.subr.mxu0 0.0
        %2576 = vmatpush1.msra.mxu0 %v681
        %2577 = vmatprep.subr.mxu0 0.0
        %2578 = vmatpush1.msra.mxu0 %v682
        %2579 = vmatprep.subr.mxu0 0.0
        %2580 = vmatpush1.msra.mxu0 %v683
        %2581 = vmatprep.subr.mxu0 0.0
        %2582 = vmatpush1.msra.mxu0 %v684
        %2583 = vmatprep.subr.mxu0 0.0
        %2584 = vmatpush1.msra.mxu0 %v685
        %2585 = vmatprep.subr.mxu0 0.0
        %2586 = vmatpush1.msra.mxu0 %v686
        %2587 = vmatprep.subr.mxu0 0.0
        %2588 = vmatpush1.msra.mxu0 %v687
        %2589 = vmatprep.subr.mxu0 0.0
        %2590 = vmatpush1.msra.mxu0 %v688
        %2591 = vmatprep.mubr.f32.mxu0 %v1399
        %2592 = vmatmul.mubr.f32.gmra.mrb[0].mxu0 %v1397
        %v2593 = vpop.f32.mrb[0].mxu0
        %v2594 = vadd.f32 %v2524, %v2593
        %v2595 = vpop.f32.mrb[0].mxu0
        %2596 = vdwg.mxu0
        %2597 = vmatprep.subr.mxu0 0.0
        %2598 = vmatpush1.msra.mxu0 %v689
        %2599 = vmatprep.subr.mxu0 0.0
        %2600 = vmatpush1.msra.mxu0 %v690
        %2601 = vmatprep.subr.mxu0 0.0
        %2602 = vmatpush1.msra.mxu0 %v691
        %2603 = vmatprep.subr.mxu0 0.0
        %2604 = vmatpush1.msra.mxu0 %v692
        %2605 = vmatprep.subr.mxu0 0.0
        %2606 = vmatpush1.msra.mxu0 %v693
        %2607 = vmatprep.subr.mxu0 0.0
        %2608 = vmatpush1.msra.mxu0 %v694
        %2609 = vmatprep.subr.mxu0 0.0
        %2610 = vmatpush1.msra.mxu0 %v695
        %2611 = vmatprep.subr.mxu0 0.0
        %2612 = vmatpush1.msra.mxu0 %v696
        %2613 = vmatprep.subr.mxu0 0.0
        %2614 = vmatpush1.msra.mxu0 %v697
        %2615 = vmatprep.subr.mxu0 0.0
        %2616 = vmatpush1.msra.mxu0 %v698
        %2617 = vmatprep.subr.mxu0 0.0
        %2618 = vmatpush1.msra.mxu0 %v699
        %2619 = vmatprep.subr.mxu0 0.0
        %2620 = vmatpush1.msra.mxu0 %v700
        %2621 = vmatprep.subr.mxu0 0.0
        %2622 = vmatpush1.msra.mxu0 %v701
        %2623 = vmatprep.subr.mxu0 0.0
        %2624 = vmatpush1.msra.mxu0 %v702
        %2625 = vmatprep.subr.mxu0 0.0
        %2626 = vmatpush1.msra.mxu0 %v703
        %2627 = vmatprep.subr.mxu0 0.0
        %2628 = vmatpush1.msra.mxu0 %v704
        %2629 = vmatprep.subr.mxu0 0.0
        %2630 = vmatpush1.msra.mxu0 %v705
        %2631 = vmatprep.subr.mxu0 0.0
        %2632 = vmatpush1.msra.mxu0 %v706
        %2633 = vmatprep.subr.mxu0 0.0
        %2634 = vmatpush1.msra.mxu0 %v707
        %2635 = vmatprep.subr.mxu0 0.0
        %2636 = vmatpush1.msra.mxu0 %v708
        %2637 = vmatprep.subr.mxu0 0.0
        %2638 = vmatpush1.msra.mxu0 %v709
        %2639 = vmatprep.subr.mxu0 0.0
        %2640 = vmatpush1.msra.mxu0 %v710
        %2641 = vmatprep.subr.mxu0 0.0
        %2642 = vmatpush1.msra.mxu0 %v711
        %2643 = vmatprep.subr.mxu0 0.0
        %2644 = vmatpush1.msra.mxu0 %v712
        %2645 = vmatprep.subr.mxu0 0.0
        %2646 = vmatpush1.msra.mxu0 %v713
        %2647 = vmatprep.subr.mxu0 0.0
        %2648 = vmatpush1.msra.mxu0 %v714
        %2649 = vmatprep.subr.mxu0 0.0
        %2650 = vmatpush1.msra.mxu0 %v715
        %2651 = vmatprep.subr.mxu0 0.0
        %2652 = vmatpush1.msra.mxu0 %v716
        %2653 = vmatprep.subr.mxu0 0.0
        %2654 = vmatpush1.msra.mxu0 %v717
        %2655 = vmatprep.subr.mxu0 0.0
        %2656 = vmatpush1.msra.mxu0 %v718
        %2657 = vmatprep.subr.mxu0 0.0
        %2658 = vmatpush1.msra.mxu0 %v719
        %2659 = vmatprep.subr.mxu0 0.0
        %2660 = vmatpush1.msra.mxu0 %v720
        %2661 = vmatprep.mubr.f32.mxu0 %v1415
        %2662 = vmatmul.mubr.f32.gmra.mrb[0].mxu0 %v1407
        %v2663 = vpop.f32.mrb[0].mxu0
        %v2664 = vadd.f32 %v2594, %v2663
        %v2665 = vpop.f32.mrb[0].mxu0
        %2666 = vdwg.mxu0
        %2667 = vmatprep.subr.mxu0 0.0
        %2668 = vmatpush1.msra.mxu0 %v721
        %2669 = vmatprep.subr.mxu0 0.0
        %2670 = vmatpush1.msra.mxu0 %v722
        %2671 = vmatprep.subr.mxu0 0.0
        %2672 = vmatpush1.msra.mxu0 %v723
        %2673 = vmatprep.subr.mxu0 0.0
        %2674 = vmatpush1.msra.mxu0 %v724
        %2675 = vmatprep.subr.mxu0 0.0
        %2676 = vmatpush1.msra.mxu0 %v725
        %2677 = vmatprep.subr.mxu0 0.0
        %2678 = vmatpush1.msra.mxu0 %v726
        %2679 = vmatprep.subr.mxu0 0.0
        %2680 = vmatpush1.msra.mxu0 %v727
        %2681 = vmatprep.subr.mxu0 0.0
        %2682 = vmatpush1.msra.mxu0 %v728
        %2683 = vmatprep.subr.mxu0 0.0
        %2684 = vmatpush1.msra.mxu0 %v729
        %2685 = vmatprep.subr.mxu0 0.0
        %2686 = vmatpush1.msra.mxu0 %v730
        %2687 = vmatprep.subr.mxu0 0.0
        %2688 = vmatpush1.msra.mxu0 %v731
        %2689 = vmatprep.subr.mxu0 0.0
        %2690 = vmatpush1.msra.mxu0 %v732
        %2691 = vmatprep.subr.mxu0 0.0
        %2692 = vmatpush1.msra.mxu0 %v733
        %2693 = vmatprep.subr.mxu0 0.0
        %2694 = vmatpush1.msra.mxu0 %v734
        %2695 = vmatprep.subr.mxu0 0.0
        %2696 = vmatpush1.msra.mxu0 %v735
        %2697 = vmatprep.subr.mxu0 0.0
        %2698 = vmatpush1.msra.mxu0 %v736
        %2699 = vmatprep.subr.mxu0 0.0
        %2700 = vmatpush1.msra.mxu0 %v737
        %2701 = vmatprep.subr.mxu0 0.0
        %2702 = vmatpush1.msra.mxu0 %v738
        %2703 = vmatprep.subr.mxu0 0.0
        %2704 = vmatpush1.msra.mxu0 %v739
        %2705 = vmatprep.subr.mxu0 0.0
        %2706 = vmatpush1.msra.mxu0 %v740
        %2707 = vmatprep.subr.mxu0 0.0
        %2708 = vmatpush1.msra.mxu0 %v741
        %2709 = vmatprep.subr.mxu0 0.0
        %2710 = vmatpush1.msra.mxu0 %v742
        %2711 = vmatprep.subr.mxu0 0.0
        %2712 = vmatpush1.msra.mxu0 %v743
        %2713 = vmatprep.subr.mxu0 0.0
        %2714 = vmatpush1.msra.mxu0 %v744
        %2715 = vmatprep.subr.mxu0 0.0
        %2716 = vmatpush1.msra.mxu0 %v745
        %2717 = vmatprep.subr.mxu0 0.0
        %2718 = vmatpush1.msra.mxu0 %v746
        %2719 = vmatprep.subr.mxu0 0.0
        %2720 = vmatpush1.msra.mxu0 %v747
        %2721 = vmatprep.subr.mxu0 0.0
        %2722 = vmatpush1.msra.mxu0 %v748
        %2723 = vmatprep.subr.mxu0 0.0
        %2724 = vmatpush1.msra.mxu0 %v749
        %2725 = vmatprep.subr.mxu0 0.0
        %2726 = vmatpush1.msra.mxu0 %v750
        %2727 = vmatprep.subr.mxu0 0.0
        %2728 = vmatpush1.msra.mxu0 %v751
        %2729 = vmatprep.subr.mxu0 0.0
        %2730 = vmatpush1.msra.mxu0 %v752
        %2731 = vmatprep.mubr.f32.mxu0 %v1416
        %2732 = vmatmul.mubr.f32.gmra.mrb[0].mxu0 %v1414
        %v2733 = vpop.f32.mrb[0].mxu0
        %v2734 = vadd.f32 %v2664, %v2733
        %v2735 = vpop.f32.mrb[0].mxu0
        %2736 = vdwg.mxu0
        %2737 = vmatprep.subr.mxu0 0.0
        %2738 = vmatpush1.msra.mxu0 %v753
        %2739 = vmatprep.subr.mxu0 0.0
        %2740 = vmatpush1.msra.mxu0 %v754
        %2741 = vmatprep.subr.mxu0 0.0
        %2742 = vmatpush1.msra.mxu0 %v755
        %2743 = vmatprep.subr.mxu0 0.0
        %2744 = vmatpush1.msra.mxu0 %v756
        %2745 = vmatprep.subr.mxu0 0.0
        %2746 = vmatpush1.msra.mxu0 %v757
        %2747 = vmatprep.subr.mxu0 0.0
        %2748 = vmatpush1.msra.mxu0 %v758
        %2749 = vmatprep.subr.mxu0 0.0
        %2750 = vmatpush1.msra.mxu0 %v759
        %2751 = vmatprep.subr.mxu0 0.0
        %2752 = vmatpush1.msra.mxu0 %v760
        %2753 = vmatprep.subr.mxu0 0.0
        %2754 = vmatpush1.msra.mxu0 %v761
        %2755 = vmatprep.subr.mxu0 0.0
        %2756 = vmatpush1.msra.mxu0 %v762
        %2757 = vmatprep.subr.mxu0 0.0
        %2758 = vmatpush1.msra.mxu0 %v763
        %2759 = vmatprep.subr.mxu0 0.0
        %2760 = vmatpush1.msra.mxu0 %v764
        %2761 = vmatprep.subr.mxu0 0.0
        %2762 = vmatpush1.msra.mxu0 %v765
        %2763 = vmatprep.subr.mxu0 0.0
        %2764 = vmatpush1.msra.mxu0 %v766
        %2765 = vmatprep.subr.mxu0 0.0
        %2766 = vmatpush1.msra.mxu0 %v767
        %2767 = vmatprep.subr.mxu0 0.0
        %2768 = vmatpush1.msra.mxu0 %v768
        %2769 = vmatprep.subr.mxu0 0.0
        %2770 = vmatpush1.msra.mxu0 %v769
        %2771 = vmatprep.subr.mxu0 0.0
        %2772 = vmatpush1.msra.mxu0 %v770
        %2773 = vmatprep.subr.mxu0 0.0
        %2774 = vmatpush1.msra.mxu0 %v771
        %2775 = vmatprep.subr.mxu0 0.0
        %2776 = vmatpush1.msra.mxu0 %v772
        %2777 = vmatprep.subr.mxu0 0.0
        %2778 = vmatpush1.msra.mxu0 %v773
        %2779 = vmatprep.subr.mxu0 0.0
        %2780 = vmatpush1.msra.mxu0 %v774
        %2781 = vmatprep.subr.mxu0 0.0
        %2782 = vmatpush1.msra.mxu0 %v775
        %2783 = vmatprep.subr.mxu0 0.0
        %2784 = vmatpush1.msra.mxu0 %v776
        %2785 = vmatprep.subr.mxu0 0.0
        %2786 = vmatpush1.msra.mxu0 %v777
        %2787 = vmatprep.subr.mxu0 0.0
        %2788 = vmatpush1.msra.mxu0 %v778
        %2789 = vmatprep.subr.mxu0 0.0
        %2790 = vmatpush1.msra.mxu0 %v779
        %2791 = vmatprep.subr.mxu0 0.0
        %2792 = vmatpush1.msra.mxu0 %v780
        %2793 = vmatprep.subr.mxu0 0.0
        %2794 = vmatpush1.msra.mxu0 %v781
        %2795 = vmatprep.subr.mxu0 0.0
        %2796 = vmatpush1.msra.mxu0 %v782
        %2797 = vmatprep.subr.mxu0 0.0
        %2798 = vmatpush1.msra.mxu0 %v783
        %2799 = vmatprep.subr.mxu0 0.0
        %2800 = vmatpush1.msra.mxu0 %v784
        %2801 = vmatprep.mubr.f32.mxu0 %v1432
        %2802 = vmatmul.mubr.f32.gmra.mrb[0].mxu0 %v1424
        %v2803 = vpop.f32.mrb[0].mxu0
        %v2804 = vadd.f32 %v2734, %v2803
        %v2805 = vpop.f32.mrb[0].mxu0
        %2806 = vdwg.mxu0
        %2807 = vmatprep.subr.mxu0 0.0
        %2808 = vmatpush1.msra.mxu0 %v785
        %2809 = vmatprep.subr.mxu0 0.0
        %2810 = vmatpush1.msra.mxu0 %v786
        %2811 = vmatprep.subr.mxu0 0.0
        %2812 = vmatpush1.msra.mxu0 %v787
        %2813 = vmatprep.subr.mxu0 0.0
        %2814 = vmatpush1.msra.mxu0 %v788
        %2815 = vmatprep.subr.mxu0 0.0
        %2816 = vmatpush1.msra.mxu0 %v789
        %2817 = vmatprep.subr.mxu0 0.0
        %2818 = vmatpush1.msra.mxu0 %v790
        %2819 = vmatprep.subr.mxu0 0.0
        %2820 = vmatpush1.msra.mxu0 %v791
        %2821 = vmatprep.subr.mxu0 0.0
        %2822 = vmatpush1.msra.mxu0 %v792
        %2823 = vmatprep.subr.mxu0 0.0
        %2824 = vmatpush1.msra.mxu0 %v793
        %2825 = vmatprep.subr.mxu0 0.0
        %2826 = vmatpush1.msra.mxu0 %v794
        %2827 = vmatprep.subr.mxu0 0.0
        %2828 = vmatpush1.msra.mxu0 %v795
        %2829 = vmatprep.subr.mxu0 0.0
        %2830 = vmatpush1.msra.mxu0 %v796
        %2831 = vmatprep.subr.mxu0 0.0
        %2832 = vmatpush1.msra.mxu0 %v797
        %2833 = vmatprep.subr.mxu0 0.0
        %2834 = vmatpush1.msra.mxu0 %v798
        %2835 = vmatprep.subr.mxu0 0.0
        %2836 = vmatpush1.msra.mxu0 %v799
        %2837 = vmatprep.subr.mxu0 0.0
        %2838 = vmatpush1.msra.mxu0 %v800
        %2839 = vmatprep.subr.mxu0 0.0
        %2840 = vmatpush1.msra.mxu0 %v801
        %2841 = vmatprep.subr.mxu0 0.0
        %2842 = vmatpush1.msra.mxu0 %v802
        %2843 = vmatprep.subr.mxu0 0.0
        %2844 = vmatpush1.msra.mxu0 %v803
        %2845 = vmatprep.subr.mxu0 0.0
        %2846 = vmatpush1.msra.mxu0 %v804
        %2847 = vmatprep.subr.mxu0 0.0
        %2848 = vmatpush1.msra.mxu0 %v805
        %2849 = vmatprep.subr.mxu0 0.0
        %2850 = vmatpush1.msra.mxu0 %v806
        %2851 = vmatprep.subr.mxu0 0.0
        %2852 = vmatpush1.msra.mxu0 %v807
        %2853 = vmatprep.subr.mxu0 0.0
        %2854 = vmatpush1.msra.mxu0 %v808
        %2855 = vmatprep.subr.mxu0 0.0
        %2856 = vmatpush1.msra.mxu0 %v809
        %2857 = vmatprep.subr.mxu0 0.0
        %2858 = vmatpush1.msra.mxu0 %v810
        %2859 = vmatprep.subr.mxu0 0.0
        %2860 = vmatpush1.msra.mxu0 %v811
        %2861 = vmatprep.subr.mxu0 0.0
        %2862 = vmatpush1.msra.mxu0 %v812
        %2863 = vmatprep.subr.mxu0 0.0
        %2864 = vmatpush1.msra.mxu0 %v813
        %2865 = vmatprep.subr.mxu0 0.0
        %2866 = vmatpush1.msra.mxu0 %v814
        %2867 = vmatprep.subr.mxu0 0.0
        %2868 = vmatpush1.msra.mxu0 %v815
        %2869 = vmatprep.subr.mxu0 0.0
        %2870 = vmatpush1.msra.mxu0 %v816
        %2871 = vmatprep.mubr.f32.mxu0 %v1433
        %2872 = vmatmul.mubr.f32.gmra.mrb[0].mxu0 %v1431
        %v2873 = vpop.f32.mrb[0].mxu0
        %v2874 = vadd.f32 %v2804, %v2873
        %v2875 = vpop.f32.mrb[0].mxu0
        %2876 = vdwg.mxu0
        %2877 = vmatprep.subr.mxu0 0.0
        %2878 = vmatpush1.msra.mxu0 %v817
        %2879 = vmatprep.subr.mxu0 0.0
        %2880 = vmatpush1.msra.mxu0 %v818
        %2881 = vmatprep.subr.mxu0 0.0
        %2882 = vmatpush1.msra.mxu0 %v819
        %2883 = vmatprep.subr.mxu0 0.0
        %2884 = vmatpush1.msra.mxu0 %v820
        %2885 = vmatprep.subr.mxu0 0.0
        %2886 = vmatpush1.msra.mxu0 %v821
        %2887 = vmatprep.subr.mxu0 0.0
        %2888 = vmatpush1.msra.mxu0 %v822
        %2889 = vmatprep.subr.mxu0 0.0
        %2890 = vmatpush1.msra.mxu0 %v823
        %2891 = vmatprep.subr.mxu0 0.0
        %2892 = vmatpush1.msra.mxu0 %v824
        %2893 = vmatprep.subr.mxu0 0.0
        %2894 = vmatpush1.msra.mxu0 %v825
        %2895 = vmatprep.subr.mxu0 0.0
        %2896 = vmatpush1.msra.mxu0 %v826
        %2897 = vmatprep.subr.mxu0 0.0
        %2898 = vmatpush1.msra.mxu0 %v827
        %2899 = vmatprep.subr.mxu0 0.0
        %2900 = vmatpush1.msra.mxu0 %v828
        %2901 = vmatprep.subr.mxu0 0.0
        %2902 = vmatpush1.msra.mxu0 %v829
        %2903 = vmatprep.subr.mxu0 0.0
        %2904 = vmatpush1.msra.mxu0 %v830
        %2905 = vmatprep.subr.mxu0 0.0
        %2906 = vmatpush1.msra.mxu0 %v831
        %2907 = vmatprep.subr.mxu0 0.0
        %2908 = vmatpush1.msra.mxu0 %v832
        %2909 = vmatprep.subr.mxu0 0.0
        %2910 = vmatpush1.msra.mxu0 %v833
        %2911 = vmatprep.subr.mxu0 0.0
        %2912 = vmatpush1.msra.mxu0 %v834
        %2913 = vmatprep.subr.mxu0 0.0
        %2914 = vmatpush1.msra.mxu0 %v835
        %2915 = vmatprep.subr.mxu0 0.0
        %2916 = vmatpush1.msra.mxu0 %v836
        %2917 = vmatprep.subr.mxu0 0.0
        %2918 = vmatpush1.msra.mxu0 %v837
        %2919 = vmatprep.subr.mxu0 0.0
        %2920 = vmatpush1.msra.mxu0 %v838
        %2921 = vmatprep.subr.mxu0 0.0
        %2922 = vmatpush1.msra.mxu0 %v839
        %2923 = vmatprep.subr.mxu0 0.0
        %2924 = vmatpush1.msra.mxu0 %v840
        %2925 = vmatprep.subr.mxu0 0.0
        %2926 = vmatpush1.msra.mxu0 %v841
        %2927 = vmatprep.subr.mxu0 0.0
        %2928 = vmatpush1.msra.mxu0 %v842
        %2929 = vmatprep.subr.mxu0 0.0
        %2930 = vmatpush1.msra.mxu0 %v843
        %2931 = vmatprep.subr.mxu0 0.0
        %2932 = vmatpush1.msra.mxu0 %v844
        %2933 = vmatprep.subr.mxu0 0.0
        %2934 = vmatpush1.msra.mxu0 %v845
        %2935 = vmatprep.subr.mxu0 0.0
        %2936 = vmatpush1.msra.mxu0 %v846
        %2937 = vmatprep.subr.mxu0 0.0
        %2938 = vmatpush1.msra.mxu0 %v847
        %2939 = vmatprep.subr.mxu0 0.0
        %2940 = vmatpush1.msra.mxu0 %v848
        %2941 = vmatprep.mubr.f32.mxu0 %v1449
        %2942 = vmatmul.mubr.f32.gmra.mrb[0].mxu0 %v1441
        %v2943 = vpop.f32.mrb[0].mxu0
        %v2944 = vadd.f32 %v2874, %v2943
        %v2945 = vpop.f32.mrb[0].mxu0
        %2946 = vdwg.mxu0
        %2947 = vmatprep.subr.mxu0 0.0
        %2948 = vmatpush1.msra.mxu0 %v849
        %2949 = vmatprep.subr.mxu0 0.0
        %2950 = vmatpush1.msra.mxu0 %v850
        %2951 = vmatprep.subr.mxu0 0.0
        %2952 = vmatpush1.msra.mxu0 %v851
        %2953 = vmatprep.subr.mxu0 0.0
        %2954 = vmatpush1.msra.mxu0 %v852
        %2955 = vmatprep.subr.mxu0 0.0
        %2956 = vmatpush1.msra.mxu0 %v853
        %2957 = vmatprep.subr.mxu0 0.0
        %2958 = vmatpush1.msra.mxu0 %v854
        %2959 = vmatprep.subr.mxu0 0.0
        %2960 = vmatpush1.msra.mxu0 %v855
        %2961 = vmatprep.subr.mxu0 0.0
        %2962 = vmatpush1.msra.mxu0 %v856
        %2963 = vmatprep.subr.mxu0 0.0
        %2964 = vmatpush1.msra.mxu0 %v857
        %2965 = vmatprep.subr.mxu0 0.0
        %2966 = vmatpush1.msra.mxu0 %v858
        %2967 = vmatprep.subr.mxu0 0.0
        %2968 = vmatpush1.msra.mxu0 %v859
        %2969 = vmatprep.subr.mxu0 0.0
        %2970 = vmatpush1.msra.mxu0 %v860
        %2971 = vmatprep.subr.mxu0 0.0
        %2972 = vmatpush1.msra.mxu0 %v861
        %2973 = vmatprep.subr.mxu0 0.0
        %2974 = vmatpush1.msra.mxu0 %v862
        %2975 = vmatprep.subr.mxu0 0.0
        %2976 = vmatpush1.msra.mxu0 %v863
        %2977 = vmatprep.subr.mxu0 0.0
        %2978 = vmatpush1.msra.mxu0 %v864
        %2979 = vmatprep.subr.mxu0 0.0
        %2980 = vmatpush1.msra.mxu0 %v865
        %2981 = vmatprep.subr.mxu0 0.0
        %2982 = vmatpush1.msra.mxu0 %v866
        %2983 = vmatprep.subr.mxu0 0.0
        %2984 = vmatpush1.msra.mxu0 %v867
        %2985 = vmatprep.subr.mxu0 0.0
        %2986 = vmatpush1.msra.mxu0 %v868
        %2987 = vmatprep.subr.mxu0 0.0
        %2988 = vmatpush1.msra.mxu0 %v869
        %2989 = vmatprep.subr.mxu0 0.0
        %2990 = vmatpush1.msra.mxu0 %v870
        %2991 = vmatprep.subr.mxu0 0.0
        %2992 = vmatpush1.msra.mxu0 %v871
        %2993 = vmatprep.subr.mxu0 0.0
        %2994 = vmatpush1.msra.mxu0 %v872
        %2995 = vmatprep.subr.mxu0 0.0
        %2996 = vmatpush1.msra.mxu0 %v873
        %2997 = vmatprep.subr.mxu0 0.0
        %2998 = vmatpush1.msra.mxu0 %v874
        %2999 = vmatprep.subr.mxu0 0.0
        %3000 = vmatpush1.msra.mxu0 %v875
        %3001 = vmatprep.subr.mxu0 0.0
        %3002 = vmatpush1.msra.mxu0 %v876
        %3003 = vmatprep.subr.mxu0 0.0
        %3004 = vmatpush1.msra.mxu0 %v877
        %3005 = vmatprep.subr.mxu0 0.0
        %3006 = vmatpush1.msra.mxu0 %v878
        %3007 = vmatprep.subr.mxu0 0.0
        %3008 = vmatpush1.msra.mxu0 %v879
        %3009 = vmatprep.subr.mxu0 0.0
        %3010 = vmatpush1.msra.mxu0 %v880
        %3011 = vmatprep.mubr.f32.mxu0 %v1450
        %3012 = vmatmul.mubr.f32.gmra.mrb[0].mxu0 %v1448
        %v3013 = vpop.f32.mrb[0].mxu0
        %v3014 = vadd.f32 %v2944, %v3013
        %v3015 = vpop.f32.mrb[0].mxu0
        %3016 = vdwg.mxu0
        %3017 = vmatprep.subr.mxu0 0.0
        %3018 = vmatpush1.msra.mxu0 %v881
        %3019 = vmatprep.subr.mxu0 0.0
        %3020 = vmatpush1.msra.mxu0 %v882
        %3021 = vmatprep.subr.mxu0 0.0
        %3022 = vmatpush1.msra.mxu0 %v883
        %3023 = vmatprep.subr.mxu0 0.0
        %3024 = vmatpush1.msra.mxu0 %v884
        %3025 = vmatprep.subr.mxu0 0.0
        %3026 = vmatpush1.msra.mxu0 %v885
        %3027 = vmatprep.subr.mxu0 0.0
        %3028 = vmatpush1.msra.mxu0 %v886
        %3029 = vmatprep.subr.mxu0 0.0
        %3030 = vmatpush1.msra.mxu0 %v887
        %3031 = vmatprep.subr.mxu0 0.0
        %3032 = vmatpush1.msra.mxu0 %v888
        %3033 = vmatprep.subr.mxu0 0.0
        %3034 = vmatpush1.msra.mxu0 %v889
        %3035 = vmatprep.subr.mxu0 0.0
        %3036 = vmatpush1.msra.mxu0 %v890
        %3037 = vmatprep.subr.mxu0 0.0
        %3038 = vmatpush1.msra.mxu0 %v891
        %3039 = vmatprep.subr.mxu0 0.0
        %3040 = vmatpush1.msra.mxu0 %v892
        %3041 = vmatprep.subr.mxu0 0.0
        %3042 = vmatpush1.msra.mxu0 %v893
        %3043 = vmatprep.subr.mxu0 0.0
        %3044 = vmatpush1.msra.mxu0 %v894
        %3045 = vmatprep.subr.mxu0 0.0
        %3046 = vmatpush1.msra.mxu0 %v895
        %3047 = vmatprep.subr.mxu0 0.0
        %3048 = vmatpush1.msra.mxu0 %v896
        %3049 = vmatprep.subr.mxu0 0.0
        %3050 = vmatpush1.msra.mxu0 %v897
        %3051 = vmatprep.subr.mxu0 0.0
        %3052 = vmatpush1.msra.mxu0 %v898
        %3053 = vmatprep.subr.mxu0 0.0
        %3054 = vmatpush1.msra.mxu0 %v899
        %3055 = vmatprep.subr.mxu0 0.0
        %3056 = vmatpush1.msra.mxu0 %v900
        %3057 = vmatprep.subr.mxu0 0.0
        %3058 = vmatpush1.msra.mxu0 %v901
        %3059 = vmatprep.subr.mxu0 0.0
        %3060 = vmatpush1.msra.mxu0 %v902
        %3061 = vmatprep.subr.mxu0 0.0
        %3062 = vmatpush1.msra.mxu0 %v903
        %3063 = vmatprep.subr.mxu0 0.0
        %3064 = vmatpush1.msra.mxu0 %v904
        %3065 = vmatprep.subr.mxu0 0.0
        %3066 = vmatpush1.msra.mxu0 %v905
        %3067 = vmatprep.subr.mxu0 0.0
        %3068 = vmatpush1.msra.mxu0 %v906
        %3069 = vmatprep.subr.mxu0 0.0
        %3070 = vmatpush1.msra.mxu0 %v907
        %3071 = vmatprep.subr.mxu0 0.0
        %3072 = vmatpush1.msra.mxu0 %v908
        %3073 = vmatprep.subr.mxu0 0.0
        %3074 = vmatpush1.msra.mxu0 %v909
        %3075 = vmatprep.subr.mxu0 0.0
        %3076 = vmatpush1.msra.mxu0 %v910
        %3077 = vmatprep.subr.mxu0 0.0
        %3078 = vmatpush1.msra.mxu0 %v911
        %3079 = vmatprep.subr.mxu0 0.0
        %3080 = vmatpush1.msra.mxu0 %v912
        %3081 = vmatprep.mubr.f32.mxu0 %v1466
        %3082 = vmatmul.mubr.f32.gmra.mrb[0].mxu0 %v1458
        %v3083 = vpop.f32.mrb[0].mxu0
        %v3084 = vadd.f32 %v3014, %v3083
        %v3085 = vpop.f32.mrb[0].mxu0
        %3086 = vdwg.mxu0
        %3087 = vmatprep.subr.mxu0 0.0
        %3088 = vmatpush1.msra.mxu0 %v913
        %3089 = vmatprep.subr.mxu0 0.0
        %3090 = vmatpush1.msra.mxu0 %v914
        %3091 = vmatprep.subr.mxu0 0.0
        %3092 = vmatpush1.msra.mxu0 %v915
        %3093 = vmatprep.subr.mxu0 0.0
        %3094 = vmatpush1.msra.mxu0 %v916
        %3095 = vmatprep.subr.mxu0 0.0
        %3096 = vmatpush1.msra.mxu0 %v917
        %3097 = vmatprep.subr.mxu0 0.0
        %3098 = vmatpush1.msra.mxu0 %v918
        %3099 = vmatprep.subr.mxu0 0.0
        %3100 = vmatpush1.msra.mxu0 %v919
        %3101 = vmatprep.subr.mxu0 0.0
        %3102 = vmatpush1.msra.mxu0 %v920
        %3103 = vmatprep.subr.mxu0 0.0
        %3104 = vmatpush1.msra.mxu0 %v921
        %3105 = vmatprep.subr.mxu0 0.0
        %3106 = vmatpush1.msra.mxu0 %v922
        %3107 = vmatprep.subr.mxu0 0.0
        %3108 = vmatpush1.msra.mxu0 %v923
        %3109 = vmatprep.subr.mxu0 0.0
        %3110 = vmatpush1.msra.mxu0 %v924
        %3111 = vmatprep.subr.mxu0 0.0
        %3112 = vmatpush1.msra.mxu0 %v925
        %3113 = vmatprep.subr.mxu0 0.0
        %3114 = vmatpush1.msra.mxu0 %v926
        %3115 = vmatprep.subr.mxu0 0.0
        %3116 = vmatpush1.msra.mxu0 %v927
        %3117 = vmatprep.subr.mxu0 0.0
        %3118 = vmatpush1.msra.mxu0 %v928
        %3119 = vmatprep.subr.mxu0 0.0
        %3120 = vmatpush1.msra.mxu0 %v929
        %3121 = vmatprep.subr.mxu0 0.0
        %3122 = vmatpush1.msra.mxu0 %v930
        %3123 = vmatprep.subr.mxu0 0.0
        %3124 = vmatpush1.msra.mxu0 %v931
        %3125 = vmatprep.subr.mxu0 0.0
        %3126 = vmatpush1.msra.mxu0 %v932
        %3127 = vmatprep.subr.mxu0 0.0
        %3128 = vmatpush1.msra.mxu0 %v933
        %3129 = vmatprep.subr.mxu0 0.0
        %3130 = vmatpush1.msra.mxu0 %v934
        %3131 = vmatprep.subr.mxu0 0.0
        %3132 = vmatpush1.msra.mxu0 %v935
        %3133 = vmatprep.subr.mxu0 0.0
        %3134 = vmatpush1.msra.mxu0 %v936
        %3135 = vmatprep.subr.mxu0 0.0
        %3136 = vmatpush1.msra.mxu0 %v937
        %3137 = vmatprep.subr.mxu0 0.0
        %3138 = vmatpush1.msra.mxu0 %v938
        %3139 = vmatprep.subr.mxu0 0.0
        %3140 = vmatpush1.msra.mxu0 %v939
        %3141 = vmatprep.subr.mxu0 0.0
        %3142 = vmatpush1.msra.mxu0 %v940
        %3143 = vmatprep.subr.mxu0 0.0
        %3144 = vmatpush1.msra.mxu0 %v941
        %3145 = vmatprep.subr.mxu0 0.0
        %3146 = vmatpush1.msra.mxu0 %v942
        %3147 = vmatprep.subr.mxu0 0.0
        %3148 = vmatpush1.msra.mxu0 %v943
        %3149 = vmatprep.subr.mxu0 0.0
        %3150 = vmatpush1.msra.mxu0 %v944
        %3151 = vmatprep.mubr.f32.mxu0 %v1467
        %3152 = vmatmul.mubr.f32.gmra.mrb[0].mxu0 %v1465
        %v3153 = vpop.f32.mrb[0].mxu0
        %v3154 = vadd.f32 %v3084, %v3153
        %v3155 = vpop.f32.mrb[0].mxu0
        %3156 = vdwg.mxu0
        %3157 = vmatprep.subr.mxu0 0.0
        %3158 = vmatpush1.msra.mxu0 %v945
        %3159 = vmatprep.subr.mxu0 0.0
        %3160 = vmatpush1.msra.mxu0 %v946
        %3161 = vmatprep.subr.mxu0 0.0
        %3162 = vmatpush1.msra.mxu0 %v947
        %3163 = vmatprep.subr.mxu0 0.0
        %3164 = vmatpush1.msra.mxu0 %v948
        %3165 = vmatprep.subr.mxu0 0.0
        %3166 = vmatpush1.msra.mxu0 %v949
        %3167 = vmatprep.subr.mxu0 0.0
        %3168 = vmatpush1.msra.mxu0 %v950
        %3169 = vmatprep.subr.mxu0 0.0
        %3170 = vmatpush1.msra.mxu0 %v951
        %3171 = vmatprep.subr.mxu0 0.0
        %3172 = vmatpush1.msra.mxu0 %v952
        %3173 = vmatprep.subr.mxu0 0.0
        %3174 = vmatpush1.msra.mxu0 %v953
        %3175 = vmatprep.subr.mxu0 0.0
        %3176 = vmatpush1.msra.mxu0 %v954
        %3177 = vmatprep.subr.mxu0 0.0
        %3178 = vmatpush1.msra.mxu0 %v955
        %3179 = vmatprep.subr.mxu0 0.0
        %3180 = vmatpush1.msra.mxu0 %v956
        %3181 = vmatprep.subr.mxu0 0.0
        %3182 = vmatpush1.msra.mxu0 %v957
        %3183 = vmatprep.subr.mxu0 0.0
        %3184 = vmatpush1.msra.mxu0 %v958
        %3185 = vmatprep.subr.mxu0 0.0
        %3186 = vmatpush1.msra.mxu0 %v959
        %3187 = vmatprep.subr.mxu0 0.0
        %3188 = vmatpush1.msra.mxu0 %v960
        %3189 = vmatprep.subr.mxu0 0.0
        %3190 = vmatpush1.msra.mxu0 %v961
        %3191 = vmatprep.subr.mxu0 0.0
        %3192 = vmatpush1.msra.mxu0 %v962
        %3193 = vmatprep.subr.mxu0 0.0
        %3194 = vmatpush1.msra.mxu0 %v963
        %3195 = vmatprep.subr.mxu0 0.0
        %3196 = vmatpush1.msra.mxu0 %v964
        %3197 = vmatprep.subr.mxu0 0.0
        %3198 = vmatpush1.msra.mxu0 %v965
        %3199 = vmatprep.subr.mxu0 0.0
        %3200 = vmatpush1.msra.mxu0 %v966
        %3201 = vmatprep.subr.mxu0 0.0
        %3202 = vmatpush1.msra.mxu0 %v967
        %3203 = vmatprep.subr.mxu0 0.0
        %3204 = vmatpush1.msra.mxu0 %v968
        %3205 = vmatprep.subr.mxu0 0.0
        %3206 = vmatpush1.msra.mxu0 %v969
        %3207 = vmatprep.subr.mxu0 0.0
        %3208 = vmatpush1.msra.mxu0 %v970
        %3209 = vmatprep.subr.mxu0 0.0
        %3210 = vmatpush1.msra.mxu0 %v971
        %3211 = vmatprep.subr.mxu0 0.0
        %3212 = vmatpush1.msra.mxu0 %v972
        %3213 = vmatprep.subr.mxu0 0.0
        %3214 = vmatpush1.msra.mxu0 %v973
        %3215 = vmatprep.subr.mxu0 0.0
        %3216 = vmatpush1.msra.mxu0 %v974
        %3217 = vmatprep.subr.mxu0 0.0
        %3218 = vmatpush1.msra.mxu0 %v975
        %3219 = vmatprep.subr.mxu0 0.0
        %3220 = vmatpush1.msra.mxu0 %v976
        %3221 = vmatprep.mubr.f32.mxu0 %v1483
        %3222 = vmatmul.mubr.f32.gmra.mrb[0].mxu0 %v1475
        %v3223 = vpop.f32.mrb[0].mxu0
        %v3224 = vadd.f32 %v3154, %v3223
        %v3225 = vpop.f32.mrb[0].mxu0
        %3226 = vdwg.mxu0
        %3227 = vmatprep.subr.mxu0 0.0
        %3228 = vmatpush1.msra.mxu0 %v977
        %3229 = vmatprep.subr.mxu0 0.0
        %3230 = vmatpush1.msra.mxu0 %v978
        %3231 = vmatprep.subr.mxu0 0.0
        %3232 = vmatpush1.msra.mxu0 %v979
        %3233 = vmatprep.subr.mxu0 0.0
        %3234 = vmatpush1.msra.mxu0 %v980
        %3235 = vmatprep.subr.mxu0 0.0
        %3236 = vmatpush1.msra.mxu0 %v981
        %3237 = vmatprep.subr.mxu0 0.0
        %3238 = vmatpush1.msra.mxu0 %v982
        %3239 = vmatprep.subr.mxu0 0.0
        %3240 = vmatpush1.msra.mxu0 %v983
        %3241 = vmatprep.subr.mxu0 0.0
        %3242 = vmatpush1.msra.mxu0 %v984
        %3243 = vmatprep.subr.mxu0 0.0
        %3244 = vmatpush1.msra.mxu0 %v985
        %3245 = vmatprep.subr.mxu0 0.0
        %3246 = vmatpush1.msra.mxu0 %v986
        %3247 = vmatprep.subr.mxu0 0.0
        %3248 = vmatpush1.msra.mxu0 %v987
        %3249 = vmatprep.subr.mxu0 0.0
        %3250 = vmatpush1.msra.mxu0 %v988
        %3251 = vmatprep.subr.mxu0 0.0
        %3252 = vmatpush1.msra.mxu0 %v989
        %3253 = vmatprep.subr.mxu0 0.0
        %3254 = vmatpush1.msra.mxu0 %v990
        %3255 = vmatprep.subr.mxu0 0.0
        %3256 = vmatpush1.msra.mxu0 %v991
        %3257 = vmatprep.subr.mxu0 0.0
        %3258 = vmatpush1.msra.mxu0 %v992
        %3259 = vmatprep.subr.mxu0 0.0
        %3260 = vmatpush1.msra.mxu0 %v993
        %3261 = vmatprep.subr.mxu0 0.0
        %3262 = vmatpush1.msra.mxu0 %v994
        %3263 = vmatprep.subr.mxu0 0.0
        %3264 = vmatpush1.msra.mxu0 %v995
        %3265 = vmatprep.subr.mxu0 0.0
        %3266 = vmatpush1.msra.mxu0 %v996
        %3267 = vmatprep.subr.mxu0 0.0
        %3268 = vmatpush1.msra.mxu0 %v997
        %3269 = vmatprep.subr.mxu0 0.0
        %3270 = vmatpush1.msra.mxu0 %v998
        %3271 = vmatprep.subr.mxu0 0.0
        %3272 = vmatpush1.msra.mxu0 %v999
        %3273 = vmatprep.subr.mxu0 0.0
        %3274 = vmatpush1.msra.mxu0 %v1000
        %3275 = vmatprep.subr.mxu0 0.0
        %3276 = vmatpush1.msra.mxu0 %v1001
        %3277 = vmatprep.subr.mxu0 0.0
        %3278 = vmatpush1.msra.mxu0 %v1002
        %3279 = vmatprep.subr.mxu0 0.0
        %3280 = vmatpush1.msra.mxu0 %v1003
        %3281 = vmatprep.subr.mxu0 0.0
        %3282 = vmatpush1.msra.mxu0 %v1004
        %3283 = vmatprep.subr.mxu0 0.0
        %3284 = vmatpush1.msra.mxu0 %v1005
        %3285 = vmatprep.subr.mxu0 0.0
        %3286 = vmatpush1.msra.mxu0 %v1006
        %3287 = vmatprep.subr.mxu0 0.0
        %3288 = vmatpush1.msra.mxu0 %v1007
        %3289 = vmatprep.subr.mxu0 0.0
        %3290 = vmatpush1.msra.mxu0 %v1008
        %3291 = vmatprep.mubr.f32.mxu0 %v1484
        %3292 = vmatmul.mubr.f32.gmra.mrb[0].mxu0 %v1482
        %v3293 = vpop.f32.mrb[0].mxu0
        %v3294 = vadd.f32 %v3224, %v3293
        %v3295 = vpop.f32.mrb[0].mxu0
        %3296 = vdwg.mxu0
        %3297 = vmatprep.subr.mxu0 0.0
        %3298 = vmatpush1.msra.mxu0 %v1009
        %3299 = vmatprep.subr.mxu0 0.0
        %3300 = vmatpush1.msra.mxu0 %v1010
        %3301 = vmatprep.subr.mxu0 0.0
        %3302 = vmatpush1.msra.mxu0 %v1011
        %3303 = vmatprep.subr.mxu0 0.0
        %3304 = vmatpush1.msra.mxu0 %v1012
        %3305 = vmatprep.subr.mxu0 0.0
        %3306 = vmatpush1.msra.mxu0 %v1013
        %3307 = vmatprep.subr.mxu0 0.0
        %3308 = vmatpush1.msra.mxu0 %v1014
        %3309 = vmatprep.subr.mxu0 0.0
        %3310 = vmatpush1.msra.mxu0 %v1015
        %3311 = vmatprep.subr.mxu0 0.0
        %3312 = vmatpush1.msra.mxu0 %v1016
        %3313 = vmatprep.subr.mxu0 0.0
        %3314 = vmatpush1.msra.mxu0 %v1017
        %3315 = vmatprep.subr.mxu0 0.0
        %3316 = vmatpush1.msra.mxu0 %v1018
        %3317 = vmatprep.subr.mxu0 0.0
        %3318 = vmatpush1.msra.mxu0 %v1019
        %3319 = vmatprep.subr.mxu0 0.0
        %3320 = vmatpush1.msra.mxu0 %v1020
        %3321 = vmatprep.subr.mxu0 0.0
        %3322 = vmatpush1.msra.mxu0 %v1021
        %3323 = vmatprep.subr.mxu0 0.0
        %3324 = vmatpush1.msra.mxu0 %v1022
        %3325 = vmatprep.subr.mxu0 0.0
        %3326 = vmatpush1.msra.mxu0 %v1023
        %3327 = vmatprep.subr.mxu0 0.0
        %3328 = vmatpush1.msra.mxu0 %v1024
        %3329 = vmatprep.subr.mxu0 0.0
        %3330 = vmatpush1.msra.mxu0 %v1025
        %3331 = vmatprep.subr.mxu0 0.0
        %3332 = vmatpush1.msra.mxu0 %v1026
        %3333 = vmatprep.subr.mxu0 0.0
        %3334 = vmatpush1.msra.mxu0 %v1027
        %3335 = vmatprep.subr.mxu0 0.0
        %3336 = vmatpush1.msra.mxu0 %v1028
        %3337 = vmatprep.subr.mxu0 0.0
        %3338 = vmatpush1.msra.mxu0 %v1029
        %3339 = vmatprep.subr.mxu0 0.0
        %3340 = vmatpush1.msra.mxu0 %v1030
        %3341 = vmatprep.subr.mxu0 0.0
        %3342 = vmatpush1.msra.mxu0 %v1031
        %3343 = vmatprep.subr.mxu0 0.0
        %3344 = vmatpush1.msra.mxu0 %v1032
        %3345 = vmatprep.subr.mxu0 0.0
        %3346 = vmatpush1.msra.mxu0 %v1033
        %3347 = vmatprep.subr.mxu0 0.0
        %3348 = vmatpush1.msra.mxu0 %v1034
        %3349 = vmatprep.subr.mxu0 0.0
        %3350 = vmatpush1.msra.mxu0 %v1035
        %3351 = vmatprep.subr.mxu0 0.0
        %3352 = vmatpush1.msra.mxu0 %v1036
        %3353 = vmatprep.subr.mxu0 0.0
        %3354 = vmatpush1.msra.mxu0 %v1037
        %3355 = vmatprep.subr.mxu0 0.0
        %3356 = vmatpush1.msra.mxu0 %v1038
        %3357 = vmatprep.subr.mxu0 0.0
        %3358 = vmatpush1.msra.mxu0 %v1039
        %3359 = vmatprep.subr.mxu0 0.0
        %3360 = vmatpush1.msra.mxu0 %v1040
        %3361 = vmatprep.mubr.f32.mxu0 %v1500
        %3362 = vmatmul.mubr.f32.gmra.mrb[0].mxu0 %v1492
        %v3363 = vpop.f32.mrb[0].mxu0
        %v3364 = vadd.f32 %v3294, %v3363
        %v3365 = vpop.f32.mrb[0].mxu0
        %3366 = vdwg.mxu0
        %3367 = vmatprep.subr.mxu0 0.0
        %3368 = vmatpush1.msra.mxu0 %v1041
        %3369 = vmatprep.subr.mxu0 0.0
        %3370 = vmatpush1.msra.mxu0 %v1042
        %3371 = vmatprep.subr.mxu0 0.0
        %3372 = vmatpush1.msra.mxu0 %v1043
        %3373 = vmatprep.subr.mxu0 0.0
        %3374 = vmatpush1.msra.mxu0 %v1044
        %3375 = vmatprep.subr.mxu0 0.0
        %3376 = vmatpush1.msra.mxu0 %v1045
        %3377 = vmatprep.subr.mxu0 0.0
        %3378 = vmatpush1.msra.mxu0 %v1046
        %3379 = vmatprep.subr.mxu0 0.0
        %3380 = vmatpush1.msra.mxu0 %v1047
        %3381 = vmatprep.subr.mxu0 0.0
        %3382 = vmatpush1.msra.mxu0 %v1048
        %3383 = vmatprep.subr.mxu0 0.0
        %3384 = vmatpush1.msra.mxu0 %v1049
        %3385 = vmatprep.subr.mxu0 0.0
        %3386 = vmatpush1.msra.mxu0 %v1050
        %3387 = vmatprep.subr.mxu0 0.0
        %3388 = vmatpush1.msra.mxu0 %v1051
        %3389 = vmatprep.subr.mxu0 0.0
        %3390 = vmatpush1.msra.mxu0 %v1052
        %3391 = vmatprep.subr.mxu0 0.0
        %3392 = vmatpush1.msra.mxu0 %v1053
        %3393 = vmatprep.subr.mxu0 0.0
        %3394 = vmatpush1.msra.mxu0 %v1054
        %3395 = vmatprep.subr.mxu0 0.0
        %3396 = vmatpush1.msra.mxu0 %v1055
        %3397 = vmatprep.subr.mxu0 0.0
        %3398 = vmatpush1.msra.mxu0 %v1056
        %3399 = vmatprep.subr.mxu0 0.0
        %3400 = vmatpush1.msra.mxu0 %v1057
        %3401 = vmatprep.subr.mxu0 0.0
        %3402 = vmatpush1.msra.mxu0 %v1058
        %3403 = vmatprep.subr.mxu0 0.0
        %3404 = vmatpush1.msra.mxu0 %v1059
        %3405 = vmatprep.subr.mxu0 0.0
        %3406 = vmatpush1.msra.mxu0 %v1060
        %3407 = vmatprep.subr.mxu0 0.0
        %3408 = vmatpush1.msra.mxu0 %v1061
        %3409 = vmatprep.subr.mxu0 0.0
        %3410 = vmatpush1.msra.mxu0 %v1062
        %3411 = vmatprep.subr.mxu0 0.0
        %3412 = vmatpush1.msra.mxu0 %v1063
        %3413 = vmatprep.subr.mxu0 0.0
        %3414 = vmatpush1.msra.mxu0 %v1064
        %3415 = vmatprep.subr.mxu0 0.0
        %3416 = vmatpush1.msra.mxu0 %v1065
        %3417 = vmatprep.subr.mxu0 0.0
        %3418 = vmatpush1.msra.mxu0 %v1066
        %3419 = vmatprep.subr.mxu0 0.0
        %3420 = vmatpush1.msra.mxu0 %v1067
        %3421 = vmatprep.subr.mxu0 0.0
        %3422 = vmatpush1.msra.mxu0 %v1068
        %3423 = vmatprep.subr.mxu0 0.0
        %3424 = vmatpush1.msra.mxu0 %v1069
        %3425 = vmatprep.subr.mxu0 0.0
        %3426 = vmatpush1.msra.mxu0 %v1070
        %3427 = vmatprep.subr.mxu0 0.0
        %3428 = vmatpush1.msra.mxu0 %v1071
        %3429 = vmatprep.subr.mxu0 0.0
        %3430 = vmatpush1.msra.mxu0 %v1072
        %3431 = vmatprep.mubr.f32.mxu0 %v1501
        %3432 = vmatmul.mubr.f32.gmra.mrb[0].mxu0 %v1499
        %v3433 = vpop.f32.mrb[0].mxu0
        %v3434 = vadd.f32 %v3364, %v3433
        %v3435 = vpop.f32.mrb[0].mxu0
        %3436 = vdwg.mxu0
        %3437 = vmatprep.subr.mxu0 0.0
        %3438 = vmatpush1.msra.mxu0 %v1073
        %3439 = vmatprep.subr.mxu0 0.0
        %3440 = vmatpush1.msra.mxu0 %v1074
        %3441 = vmatprep.subr.mxu0 0.0
        %3442 = vmatpush1.msra.mxu0 %v1075
        %3443 = vmatprep.subr.mxu0 0.0
        %3444 = vmatpush1.msra.mxu0 %v1076
        %3445 = vmatprep.subr.mxu0 0.0
        %3446 = vmatpush1.msra.mxu0 %v1077
        %3447 = vmatprep.subr.mxu0 0.0
        %3448 = vmatpush1.msra.mxu0 %v1078
        %3449 = vmatprep.subr.mxu0 0.0
        %3450 = vmatpush1.msra.mxu0 %v1079
        %3451 = vmatprep.subr.mxu0 0.0
        %3452 = vmatpush1.msra.mxu0 %v1080
        %3453 = vmatprep.subr.mxu0 0.0
        %3454 = vmatpush1.msra.mxu0 %v1081
        %3455 = vmatprep.subr.mxu0 0.0
        %3456 = vmatpush1.msra.mxu0 %v1082
        %3457 = vmatprep.subr.mxu0 0.0
        %3458 = vmatpush1.msra.mxu0 %v1083
        %3459 = vmatprep.subr.mxu0 0.0
        %3460 = vmatpush1.msra.mxu0 %v1084
        %3461 = vmatprep.subr.mxu0 0.0
        %3462 = vmatpush1.msra.mxu0 %v1085
        %3463 = vmatprep.subr.mxu0 0.0
        %3464 = vmatpush1.msra.mxu0 %v1086
        %3465 = vmatprep.subr.mxu0 0.0
        %3466 = vmatpush1.msra.mxu0 %v1087
        %3467 = vmatprep.subr.mxu0 0.0
        %3468 = vmatpush1.msra.mxu0 %v1088
        %3469 = vmatprep.subr.mxu0 0.0
        %3470 = vmatpush1.msra.mxu0 %v1089
        %3471 = vmatprep.subr.mxu0 0.0
        %3472 = vmatpush1.msra.mxu0 %v1090
        %3473 = vmatprep.subr.mxu0 0.0
        %3474 = vmatpush1.msra.mxu0 %v1091
        %3475 = vmatprep.subr.mxu0 0.0
        %3476 = vmatpush1.msra.mxu0 %v1092
        %3477 = vmatprep.subr.mxu0 0.0
        %3478 = vmatpush1.msra.mxu0 %v1093
        %3479 = vmatprep.subr.mxu0 0.0
        %3480 = vmatpush1.msra.mxu0 %v1094
        %3481 = vmatprep.subr.mxu0 0.0
        %3482 = vmatpush1.msra.mxu0 %v1095
        %3483 = vmatprep.subr.mxu0 0.0
        %3484 = vmatpush1.msra.mxu0 %v1096
        %3485 = vmatprep.subr.mxu0 0.0
        %3486 = vmatpush1.msra.mxu0 %v1097
        %3487 = vmatprep.subr.mxu0 0.0
        %3488 = vmatpush1.msra.mxu0 %v1098
        %3489 = vmatprep.subr.mxu0 0.0
        %3490 = vmatpush1.msra.mxu0 %v1099
        %3491 = vmatprep.subr.mxu0 0.0
        %3492 = vmatpush1.msra.mxu0 %v1100
        %3493 = vmatprep.subr.mxu0 0.0
        %3494 = vmatpush1.msra.mxu0 %v1101
        %3495 = vmatprep.subr.mxu0 0.0
        %3496 = vmatpush1.msra.mxu0 %v1102
        %3497 = vmatprep.subr.mxu0 0.0
        %3498 = vmatpush1.msra.mxu0 %v1103
        %3499 = vmatprep.subr.mxu0 0.0
        %3500 = vmatpush1.msra.mxu0 %v1104
        %3501 = vmatprep.mubr.f32.mxu0 %v1517
        %3502 = vmatmul.mubr.f32.gmra.mrb[0].mxu0 %v1509
        %v3503 = vpop.f32.mrb[0].mxu0
        %v3504 = vadd.f32 %v3434, %v3503
        %v3505 = vpop.f32.mrb[0].mxu0
        %3506 = vdwg.mxu0
        %3507 = vmatprep.subr.mxu0 0.0
        %3508 = vmatpush1.msra.mxu0 %v1105
        %3509 = vmatprep.subr.mxu0 0.0
        %3510 = vmatpush1.msra.mxu0 %v1106
        %3511 = vmatprep.subr.mxu0 0.0
        %3512 = vmatpush1.msra.mxu0 %v1107
        %3513 = vmatprep.subr.mxu0 0.0
        %3514 = vmatpush1.msra.mxu0 %v1108
        %3515 = vmatprep.subr.mxu0 0.0
        %3516 = vmatpush1.msra.mxu0 %v1109
        %3517 = vmatprep.subr.mxu0 0.0
        %3518 = vmatpush1.msra.mxu0 %v1110
        %3519 = vmatprep.subr.mxu0 0.0
        %3520 = vmatpush1.msra.mxu0 %v1111
        %3521 = vmatprep.subr.mxu0 0.0
        %3522 = vmatpush1.msra.mxu0 %v1112
        %3523 = vmatprep.subr.mxu0 0.0
        %3524 = vmatpush1.msra.mxu0 %v1113
        %3525 = vmatprep.subr.mxu0 0.0
        %3526 = vmatpush1.msra.mxu0 %v1114
        %3527 = vmatprep.subr.mxu0 0.0
        %3528 = vmatpush1.msra.mxu0 %v1115
        %3529 = vmatprep.subr.mxu0 0.0
        %3530 = vmatpush1.msra.mxu0 %v1116
        %3531 = vmatprep.subr.mxu0 0.0
        %3532 = vmatpush1.msra.mxu0 %v1117
        %3533 = vmatprep.subr.mxu0 0.0
        %3534 = vmatpush1.msra.mxu0 %v1118
        %3535 = vmatprep.subr.mxu0 0.0
        %3536 = vmatpush1.msra.mxu0 %v1119
        %3537 = vmatprep.subr.mxu0 0.0
        %3538 = vmatpush1.msra.mxu0 %v1120
        %3539 = vmatprep.subr.mxu0 0.0
        %3540 = vmatpush1.msra.mxu0 %v1121
        %3541 = vmatprep.subr.mxu0 0.0
        %3542 = vmatpush1.msra.mxu0 %v1122
        %3543 = vmatprep.subr.mxu0 0.0
        %3544 = vmatpush1.msra.mxu0 %v1123
        %3545 = vmatprep.subr.mxu0 0.0
        %3546 = vmatpush1.msra.mxu0 %v1124
        %3547 = vmatprep.subr.mxu0 0.0
        %3548 = vmatpush1.msra.mxu0 %v1125
        %3549 = vmatprep.subr.mxu0 0.0
        %3550 = vmatpush1.msra.mxu0 %v1126
        %3551 = vmatprep.subr.mxu0 0.0
        %3552 = vmatpush1.msra.mxu0 %v1127
        %3553 = vmatprep.subr.mxu0 0.0
        %3554 = vmatpush1.msra.mxu0 %v1128
        %3555 = vmatprep.subr.mxu0 0.0
        %3556 = vmatpush1.msra.mxu0 %v1129
        %3557 = vmatprep.subr.mxu0 0.0
        %3558 = vmatpush1.msra.mxu0 %v1130
        %3559 = vmatprep.subr.mxu0 0.0
        %3560 = vmatpush1.msra.mxu0 %v1131
        %3561 = vmatprep.subr.mxu0 0.0
        %3562 = vmatpush1.msra.mxu0 %v1132
        %3563 = vmatprep.subr.mxu0 0.0
        %3564 = vmatpush1.msra.mxu0 %v1133
        %3565 = vmatprep.subr.mxu0 0.0
        %3566 = vmatpush1.msra.mxu0 %v1134
        %3567 = vmatprep.subr.mxu0 0.0
        %3568 = vmatpush1.msra.mxu0 %v1135
        %3569 = vmatprep.subr.mxu0 0.0
        %3570 = vmatpush1.msra.mxu0 %v1136
        %3571 = vmatprep.mubr.f32.mxu0 %v1518
        %3572 = vmatmul.mubr.f32.gmra.mrb[0].mxu0 %v1516
        %v3573 = vpop.f32.mrb[0].mxu0
        %v3574 = vadd.f32 %v3504, %v3573
        %v3575 = vpop.f32.mrb[0].mxu0
        %3576 = vdwg.mxu0
        %3577 = vmatprep.subr.mxu0 0.0
        %3578 = vmatpush1.msra.mxu0 %v1137
        %3579 = vmatprep.subr.mxu0 0.0
        %3580 = vmatpush1.msra.mxu0 %v1138
        %3581 = vmatprep.subr.mxu0 0.0
        %3582 = vmatpush1.msra.mxu0 %v1139
        %3583 = vmatprep.subr.mxu0 0.0
        %3584 = vmatpush1.msra.mxu0 %v1140
        %3585 = vmatprep.subr.mxu0 0.0
        %3586 = vmatpush1.msra.mxu0 %v1141
        %3587 = vmatprep.subr.mxu0 0.0
        %3588 = vmatpush1.msra.mxu0 %v1142
        %3589 = vmatprep.subr.mxu0 0.0
        %3590 = vmatpush1.msra.mxu0 %v1143
        %3591 = vmatprep.subr.mxu0 0.0
        %3592 = vmatpush1.msra.mxu0 %v1144
        %3593 = vmatprep.subr.mxu0 0.0
        %3594 = vmatpush1.msra.mxu0 %v1145
        %3595 = vmatprep.subr.mxu0 0.0
        %3596 = vmatpush1.msra.mxu0 %v1146
        %3597 = vmatprep.subr.mxu0 0.0
        %3598 = vmatpush1.msra.mxu0 %v1147
        %3599 = vmatprep.subr.mxu0 0.0
        %3600 = vmatpush1.msra.mxu0 %v1148
        %3601 = vmatprep.subr.mxu0 0.0
        %3602 = vmatpush1.msra.mxu0 %v1149
        %3603 = vmatprep.subr.mxu0 0.0
        %3604 = vmatpush1.msra.mxu0 %v1150
        %3605 = vmatprep.subr.mxu0 0.0
        %3606 = vmatpush1.msra.mxu0 %v1151
        %3607 = vmatprep.subr.mxu0 0.0
        %3608 = vmatpush1.msra.mxu0 %v1152
        %3609 = vmatprep.subr.mxu0 0.0
        %3610 = vmatpush1.msra.mxu0 %v1153
        %3611 = vmatprep.subr.mxu0 0.0
        %3612 = vmatpush1.msra.mxu0 %v1154
        %3613 = vmatprep.subr.mxu0 0.0
        %3614 = vmatpush1.msra.mxu0 %v1155
        %3615 = vmatprep.subr.mxu0 0.0
        %3616 = vmatpush1.msra.mxu0 %v1156
        %3617 = vmatprep.subr.mxu0 0.0
        %3618 = vmatpush1.msra.mxu0 %v1157
        %3619 = vmatprep.subr.mxu0 0.0
        %3620 = vmatpush1.msra.mxu0 %v1158
        %3621 = vmatprep.subr.mxu0 0.0
        %3622 = vmatpush1.msra.mxu0 %v1159
        %3623 = vmatprep.subr.mxu0 0.0
        %3624 = vmatpush1.msra.mxu0 %v1160
        %3625 = vmatprep.subr.mxu0 0.0
        %3626 = vmatpush1.msra.mxu0 %v1161
        %3627 = vmatprep.subr.mxu0 0.0
        %3628 = vmatpush1.msra.mxu0 %v1162
        %3629 = vmatprep.subr.mxu0 0.0
        %3630 = vmatpush1.msra.mxu0 %v1163
        %3631 = vmatprep.subr.mxu0 0.0
        %3632 = vmatpush1.msra.mxu0 %v1164
        %3633 = vmatprep.subr.mxu0 0.0
        %3634 = vmatpush1.msra.mxu0 %v1165
        %3635 = vmatprep.subr.mxu0 0.0
        %3636 = vmatpush1.msra.mxu0 %v1166
        %3637 = vmatprep.subr.mxu0 0.0
        %3638 = vmatpush1.msra.mxu0 %v1167
        %3639 = vmatprep.subr.mxu0 0.0
        %3640 = vmatpush1.msra.mxu0 %v1168
        %3641 = vmatprep.mubr.f32.mxu0 %v1534
        %3642 = vmatmul.mubr.f32.gmra.mrb[0].mxu0 %v1526
        %v3643 = vpop.f32.mrb[0].mxu0
        %v3644 = vadd.f32 %v3574, %v3643
        %v3645 = vpop.f32.mrb[0].mxu0
        %3646 = vdwg.mxu0
        %3647 = vmatprep.subr.mxu0 0.0
        %3648 = vmatpush1.msra.mxu0 %v1169
        %3649 = vmatprep.subr.mxu0 0.0
        %3650 = vmatpush1.msra.mxu0 %v1170
        %3651 = vmatprep.subr.mxu0 0.0
        %3652 = vmatpush1.msra.mxu0 %v1171
        %3653 = vmatprep.subr.mxu0 0.0
        %3654 = vmatpush1.msra.mxu0 %v1172
        %3655 = vmatprep.subr.mxu0 0.0
        %3656 = vmatpush1.msra.mxu0 %v1173
        %3657 = vmatprep.subr.mxu0 0.0
        %3658 = vmatpush1.msra.mxu0 %v1174
        %3659 = vmatprep.subr.mxu0 0.0
        %3660 = vmatpush1.msra.mxu0 %v1175
        %3661 = vmatprep.subr.mxu0 0.0
        %3662 = vmatpush1.msra.mxu0 %v1176
        %3663 = vmatprep.subr.mxu0 0.0
        %3664 = vmatpush1.msra.mxu0 %v1177
        %3665 = vmatprep.subr.mxu0 0.0
        %3666 = vmatpush1.msra.mxu0 %v1178
        %3667 = vmatprep.subr.mxu0 0.0
        %3668 = vmatpush1.msra.mxu0 %v1179
        %3669 = vmatprep.subr.mxu0 0.0
        %3670 = vmatpush1.msra.mxu0 %v1180
        %3671 = vmatprep.subr.mxu0 0.0
        %3672 = vmatpush1.msra.mxu0 %v1181
        %3673 = vmatprep.subr.mxu0 0.0
        %3674 = vmatpush1.msra.mxu0 %v1182
        %3675 = vmatprep.subr.mxu0 0.0
        %3676 = vmatpush1.msra.mxu0 %v1183
        %3677 = vmatprep.subr.mxu0 0.0
        %3678 = vmatpush1.msra.mxu0 %v1184
        %3679 = vmatprep.subr.mxu0 0.0
        %3680 = vmatpush1.msra.mxu0 %v1185
        %3681 = vmatprep.subr.mxu0 0.0
        %3682 = vmatpush1.msra.mxu0 %v1186
        %3683 = vmatprep.subr.mxu0 0.0
        %3684 = vmatpush1.msra.mxu0 %v1187
        %3685 = vmatprep.subr.mxu0 0.0
        %3686 = vmatpush1.msra.mxu0 %v1188
        %3687 = vmatprep.subr.mxu0 0.0
        %3688 = vmatpush1.msra.mxu0 %v1189
        %3689 = vmatprep.subr.mxu0 0.0
        %3690 = vmatpush1.msra.mxu0 %v1190
        %3691 = vmatprep.subr.mxu0 0.0
        %3692 = vmatpush1.msra.mxu0 %v1191
        %3693 = vmatprep.subr.mxu0 0.0
        %3694 = vmatpush1.msra.mxu0 %v1192
        %3695 = vmatprep.subr.mxu0 0.0
        %3696 = vmatpush1.msra.mxu0 %v1193
        %3697 = vmatprep.subr.mxu0 0.0
        %3698 = vmatpush1.msra.mxu0 %v1194
        %3699 = vmatprep.subr.mxu0 0.0
        %3700 = vmatpush1.msra.mxu0 %v1195
        %3701 = vmatprep.subr.mxu0 0.0
        %3702 = vmatpush1.msra.mxu0 %v1196
        %3703 = vmatprep.subr.mxu0 0.0
        %3704 = vmatpush1.msra.mxu0 %v1197
        %3705 = vmatprep.subr.mxu0 0.0
        %3706 = vmatpush1.msra.mxu0 %v1198
        %3707 = vmatprep.subr.mxu0 0.0
        %3708 = vmatpush1.msra.mxu0 %v1199
        %3709 = vmatprep.subr.mxu0 0.0
        %3710 = vmatpush1.msra.mxu0 %v1200
        %3711 = vmatprep.mubr.f32.mxu0 %v1535
        %3712 = vmatmul.mubr.f32.gmra.mrb[0].mxu0 %v1533
        %v3713 = vpop.f32.mrb[0].mxu0
        %v3714 = vadd.f32 %v3644, %v3713
        %v3715 = vpop.f32.mrb[0].mxu0
        %3716 = vdwg.mxu0
        %3717 = vmatprep.subr.mxu0 0.0
        %3718 = vmatpush1.msra.mxu0 %v1201
        %3719 = vmatprep.subr.mxu0 0.0
        %3720 = vmatpush1.msra.mxu0 %v1202
        %3721 = vmatprep.subr.mxu0 0.0
        %3722 = vmatpush1.msra.mxu0 %v1203
        %3723 = vmatprep.subr.mxu0 0.0
        %3724 = vmatpush1.msra.mxu0 %v1204
        %3725 = vmatprep.subr.mxu0 0.0
        %3726 = vmatpush1.msra.mxu0 %v1205
        %3727 = vmatprep.subr.mxu0 0.0
        %3728 = vmatpush1.msra.mxu0 %v1206
        %3729 = vmatprep.subr.mxu0 0.0
        %3730 = vmatpush1.msra.mxu0 %v1207
        %3731 = vmatprep.subr.mxu0 0.0
        %3732 = vmatpush1.msra.mxu0 %v1208
        %3733 = vmatprep.subr.mxu0 0.0
        %3734 = vmatpush1.msra.mxu0 %v1209
        %3735 = vmatprep.subr.mxu0 0.0
        %3736 = vmatpush1.msra.mxu0 %v1210
        %3737 = vmatprep.subr.mxu0 0.0
        %3738 = vmatpush1.msra.mxu0 %v1211
        %3739 = vmatprep.subr.mxu0 0.0
        %3740 = vmatpush1.msra.mxu0 %v1212
        %3741 = vmatprep.subr.mxu0 0.0
        %3742 = vmatpush1.msra.mxu0 %v1213
        %3743 = vmatprep.subr.mxu0 0.0
        %3744 = vmatpush1.msra.mxu0 %v1214
        %3745 = vmatprep.subr.mxu0 0.0
        %3746 = vmatpush1.msra.mxu0 %v1215
        %3747 = vmatprep.subr.mxu0 0.0
        %3748 = vmatpush1.msra.mxu0 %v1216
        %3749 = vmatprep.subr.mxu0 0.0
        %3750 = vmatpush1.msra.mxu0 %v1217
        %3751 = vmatprep.subr.mxu0 0.0
        %3752 = vmatpush1.msra.mxu0 %v1218
        %3753 = vmatprep.subr.mxu0 0.0
        %3754 = vmatpush1.msra.mxu0 %v1219
        %3755 = vmatprep.subr.mxu0 0.0
        %3756 = vmatpush1.msra.mxu0 %v1220
        %3757 = vmatprep.subr.mxu0 0.0
        %3758 = vmatpush1.msra.mxu0 %v1221
        %3759 = vmatprep.subr.mxu0 0.0
        %3760 = vmatpush1.msra.mxu0 %v1222
        %3761 = vmatprep.subr.mxu0 0.0
        %3762 = vmatpush1.msra.mxu0 %v1223
        %3763 = vmatprep.subr.mxu0 0.0
        %3764 = vmatpush1.msra.mxu0 %v1224
        %3765 = vmatprep.subr.mxu0 0.0
        %3766 = vmatpush1.msra.mxu0 %v1225
        %3767 = vmatprep.subr.mxu0 0.0
        %3768 = vmatpush1.msra.mxu0 %v1226
        %3769 = vmatprep.subr.mxu0 0.0
        %3770 = vmatpush1.msra.mxu0 %v1227
        %3771 = vmatprep.subr.mxu0 0.0
        %3772 = vmatpush1.msra.mxu0 %v1228
        %3773 = vmatprep.subr.mxu0 0.0
        %3774 = vmatpush1.msra.mxu0 %v1229
        %3775 = vmatprep.subr.mxu0 0.0
        %3776 = vmatpush1.msra.mxu0 %v1230
        %3777 = vmatprep.subr.mxu0 0.0
        %3778 = vmatpush1.msra.mxu0 %v1231
        %3779 = vmatprep.subr.mxu0 0.0
        %3780 = vmatpush1.msra.mxu0 %v1232
        %3781 = vmatprep.mubr.f32.mxu0 %v1551
        %3782 = vmatmul.mubr.f32.gmra.mrb[0].mxu0 %v1543
        %v3783 = vpop.f32.mrb[0].mxu0
        %v3784 = vadd.f32 %v3714, %v3783
        %v3785 = vpop.f32.mrb[0].mxu0
        %3786 = vdwg.mxu0
        %3787 = vmatprep.subr.mxu0 0.0
        %3788 = vmatpush1.msra.mxu0 %v1233
        %3789 = vmatprep.subr.mxu0 0.0
        %3790 = vmatpush1.msra.mxu0 %v1234
        %3791 = vmatprep.subr.mxu0 0.0
        %3792 = vmatpush1.msra.mxu0 %v1235
        %3793 = vmatprep.subr.mxu0 0.0
        %3794 = vmatpush1.msra.mxu0 %v1236
        %3795 = vmatprep.subr.mxu0 0.0
        %3796 = vmatpush1.msra.mxu0 %v1237
        %3797 = vmatprep.subr.mxu0 0.0
        %3798 = vmatpush1.msra.mxu0 %v1238
        %3799 = vmatprep.subr.mxu0 0.0
        %3800 = vmatpush1.msra.mxu0 %v1239
        %3801 = vmatprep.subr.mxu0 0.0
        %3802 = vmatpush1.msra.mxu0 %v1240
        %3803 = vmatprep.subr.mxu0 0.0
        %3804 = vmatpush1.msra.mxu0 %v1241
        %3805 = vmatprep.subr.mxu0 0.0
        %3806 = vmatpush1.msra.mxu0 %v1242
        %3807 = vmatprep.subr.mxu0 0.0
        %3808 = vmatpush1.msra.mxu0 %v1243
        %3809 = vmatprep.subr.mxu0 0.0
        %3810 = vmatpush1.msra.mxu0 %v1244
        %3811 = vmatprep.subr.mxu0 0.0
        %3812 = vmatpush1.msra.mxu0 %v1245
        %3813 = vmatprep.subr.mxu0 0.0
        %3814 = vmatpush1.msra.mxu0 %v1246
        %3815 = vmatprep.subr.mxu0 0.0
        %3816 = vmatpush1.msra.mxu0 %v1247
        %3817 = vmatprep.subr.mxu0 0.0
        %3818 = vmatpush1.msra.mxu0 %v1248
        %3819 = vmatprep.subr.mxu0 0.0
        %3820 = vmatpush1.msra.mxu0 %v1249
        %3821 = vmatprep.subr.mxu0 0.0
        %3822 = vmatpush1.msra.mxu0 %v1250
        %3823 = vmatprep.subr.mxu0 0.0
        %3824 = vmatpush1.msra.mxu0 %v1251
        %3825 = vmatprep.subr.mxu0 0.0
        %3826 = vmatpush1.msra.mxu0 %v1252
        %3827 = vmatprep.subr.mxu0 0.0
        %3828 = vmatpush1.msra.mxu0 %v1253
        %3829 = vmatprep.subr.mxu0 0.0
        %3830 = vmatpush1.msra.mxu0 %v1254
        %3831 = vmatprep.subr.mxu0 0.0
        %3832 = vmatpush1.msra.mxu0 %v1255
        %3833 = vmatprep.subr.mxu0 0.0
        %3834 = vmatpush1.msra.mxu0 %v1256
        %3835 = vmatprep.subr.mxu0 0.0
        %3836 = vmatpush1.msra.mxu0 %v1257
        %3837 = vmatprep.subr.mxu0 0.0
        %3838 = vmatpush1.msra.mxu0 %v1258
        %3839 = vmatprep.subr.mxu0 0.0
        %3840 = vmatpush1.msra.mxu0 %v1259
        %3841 = vmatprep.subr.mxu0 0.0
        %3842 = vmatpush1.msra.mxu0 %v1260
        %3843 = vmatprep.subr.mxu0 0.0
        %3844 = vmatpush1.msra.mxu0 %v1261
        %3845 = vmatprep.subr.mxu0 0.0
        %3846 = vmatpush1.msra.mxu0 %v1262
        %3847 = vmatprep.subr.mxu0 0.0
        %3848 = vmatpush1.msra.mxu0 %v1263
        %3849 = vmatprep.subr.mxu0 0.0
        %3850 = vmatpush1.msra.mxu0 %v1264
        %3851 = vmatprep.mubr.f32.mxu0 %v1552
        %3852 = vmatmul.mubr.f32.gmra.mrb[0].mxu0 %v1550
        %v3853 = vpop.f32.mrb[0].mxu0
        %v3854 = vadd.f32 %v3784, %v3853
        %v3855 = vpop.f32.mrb[0].mxu0
        %3856 = vdwg.mxu0
        %v3857 = vadd.f32 %v224, %v3854
        %3858 = vst [vmem:[#allocation2] sm:$0x3] %v3857
        %p3859 = scmp.eq.s32.totalorder %s21, 16
        // Predicated region
        $region37: #{cnn_model_forward.2} parent=27 // pred_check
          %p3860 = pneg %p3859
        $region38: #{cnn_model_forward.2} parent=27 // pred_check_branch
          %3862 = sbr.rel (%p3860) target = $region40
        $region39: #{cnn_model_forward.2} parent=27 // pred_region
          %v3863 = vld [vmem:[#allocation2] sm:$0x3]
          %3864 = vst [vmem:[%s218] sm:$0x3] %v3863
        $region40: #{cnn_model_forward.2} parent=27 // pred_fallthru
          _
        %p3865 = scmp.lt.s32.totalorder %s20, 1
        %s3866 = scalar_select %p3865, %s20, 1
        %s3867 = smul.addr %s3866, 2
        %s3868 = scalar_lea.vmem %s2, %s3867
        // Predicated region
        $region41: #{cnn_model_forward.2} parent=27 // pred_check
          %p3869 = pneg %p106
        $region42: #{cnn_model_forward.2} parent=27 // pred_check_branch
          %3871 = sbr.rel (%p3869) target = $region44
        $region43: #{cnn_model_forward.2} parent=27 // pred_region
          _
        $region44: #{cnn_model_forward.2} parent=27 // pred_fallthru
          _
      $region28: #{cnn_model_forward.2} parent=5 // pred_fallthru
        _
      %p3872 = scmp.le.s32.totalorder 2, %s11
      // Predicated region
      $region45: #{cnn_model_forward.2} parent=5 // pred_check
        %p3873 = pneg %p3872
      $region46: #{cnn_model_forward.2} parent=5 // pred_check_branch
        %3875 = sbr.rel (%p3873) target = $region48
      $region47: #{cnn_model_forward.2} parent=5 // pred_region
        %s3876 = ssub.s32 %s11, 2
        // Predicated region
        $region49: #{cnn_model_forward.2} parent=47 // pred_check
          %p3877 = pneg %p112
        $region50: #{cnn_model_forward.2} parent=47 // pred_check_branch
          %3879 = sbr.rel (%p3877) target = $region52
        $region51: #{cnn_model_forward.2} parent=47 // pred_region
          %p3880 = scmp.lt.s32.totalorder %s22, 1
          %s3881 = scalar_select %p3880, %s22, 1
          %s3882 = smul.addr %s3881, 2
          %s3883 = scalar_lea.vmem %s2, %s3882
        $region52: #{cnn_model_forward.2} parent=47 // pred_fallthru
          _
      $region48: #{cnn_model_forward.2} parent=5 // pred_fallthru
        _
    $region6: #{cnn_model_forward.2} parent=1 // loop_footer
      %s15 = sadd.s32 1, %s11
    $region7: #{cnn_model_forward.2} parent=1 // loop_footer_branch
      %10 = sbr.rel target = $region3
    $region8: #{cnn_model_forward.2} parent=1 // loop_exit
      _
    %3884 = vsyncpa [#allocation4], 1
    %s3885 = scalar_lea.sflag [#allocation4], 1
    %3886 = vsyncpa %s3885, 1

</llo_original>
